<compile_context>
chip_gen: v6e
topology: v6e:2x2x1
jax: 0.10.0
libtpu: 0.0.40
codegen_flags: <defaults>
</compile_context>

<pallas_src>
import functools

import jax
import jax.numpy as jnp
from jax.experimental import pallas as pl
from jax.experimental.pallas import tpu as pltpu

EPS = 1e-5
_INV_SQRT2 = 0.7071067811865476


def _gelu_exact(x):
    # PyTorch nn.GELU() default: exact erf-based GELU (kept in f32).
    return 0.5 * x * (1.0 + jax.lax.erf(x * _INV_SQRT2))


# ---------------------------------------------------------------------------
# Generation-aware VMEM budgeting / tile selection.
# ---------------------------------------------------------------------------
def _vmem_capacity_bytes():
    try:
        info = pltpu.get_tpu_info()
        cap = getattr(info, "vmem_capacity_bytes", None)
        if cap:
            return int(cap)
    except Exception:
        pass
    return 64 << 20                      # conservative fallback (v7x per-TC)


def _vmem_limit(block_bytes, scratch_bytes=0):
    # Inputs/outputs are double-buffered by the Pallas pipeline.
    total = 2 * block_bytes + scratch_bytes
    total = int(total * 1.5) + (2 << 20)             # headroom for internals
    cap = (_vmem_capacity_bytes() * 3) // 4          # ~48 MiB v7x, ~96 MiB v5e/v6e
    return max(min(total, cap), 8 << 20)


def _pick_row_tile(r, target=4096):
    """Largest multiple-of-8 divisor of r (<= target) giving >=2 grid steps."""
    cap = min(target, max(8, r // 2))
    for cand in range(cap, 7, -1):
        if r % cand == 0 and cand % 8 == 0:
            return cand
    return r


def _pick_h_tile(h, w, cin, cout, vmem_budget):
    """Largest divisor of h whose working set fits the budget; keep >=2 steps."""
    best = 1
    for cand in range(1, h + 1):
        if h % cand:
            continue
        need = 4 * (2 * cand * w * (cin + 2 * cout)       # dbl-buffered in/out/res
                    + (cand + 2) * (w + 2) * cin          # xpad scratch
                    + 2 * (2 * w * cin + 2 * cin + 9 * cin * cout))
        if need <= vmem_budget:
            best = cand
    if best >= h and h >= 2:
        # Keep at least 2 H-steps per image (pipeline depth / 2nd TC on v7x).
        for cand in range(h // 2, 0, -1):
            if h % cand == 0:
                return cand
    return best


# ---------------------------------------------------------------------------
# Kernel 1: per-channel batch statistics, finalized directly to (scale, shift).
# The two resident (1,C) outputs hold sum / sum-of-squares during the grid
# reduction, then are overwritten with gamma*rsqrt(var+eps) and
# beta - mean*scale in the last step.
# ---------------------------------------------------------------------------
def _bn_stats_kernel(x_ref, g_ref, b_ref, scale_ref, shift_ref, *, total_rows):
    i = pl.program_id(0)

    @pl.when(i == 0)
    def _init():
        scale_ref[...] = jnp.zeros_like(scale_ref)
        shift_ref[...] = jnp.zeros_like(shift_ref)

    x = x_ref[...].astype(jnp.float32)                # f32 accumulation
    scale_ref[...] += jnp.sum(x, axis=0, keepdims=True)        # running sum
    shift_ref[...] += jnp.sum(x * x, axis=0, keepdims=True)    # running sum sq

    @pl.when(i == pl.num_programs(0) - 1)
    def _finalize():
        mu = scale_ref[...] / total_rows
        # NOTE: E[x^2]-E[x]^2 can cancel for |mean| >> std; clamped at 0 and
        # accumulated in f32, which is adequate at these activation scales.
        var = shift_ref[...] / total_rows - mu * mu
        rstd = jax.lax.rsqrt(jnp.maximum(var, 0.0) + EPS)
        sc = g_ref[...] * rstd
        scale_ref[...] = sc
        shift_ref[...] = b_ref[...] - mu * sc


def bn_scale_shift(x_nhwc, gamma, beta):
    """Per-channel BN (biased batch stats) folded with affine -> (scale, shift)."""
    n, h, w, c = x_nhwc.shape
    r = n * h * w
    x2 = x_nhwc.reshape(r, c)                         # free collapse, no copy
    g = gamma.reshape(1, c).astype(jnp.float32)
    b = beta.reshape(1, c).astype(jnp.float32)
    tr = _pick_row_tile(r)
    block_bytes = (tr * c + 4 * c) * 4
    return pl.pallas_call(
        functools.partial(_bn_stats_kernel, total_rows=float(r)),
        out_shape=(jax.ShapeDtypeStruct((1, c), jnp.float32),
                   jax.ShapeDtypeStruct((1, c), jnp.float32)),
        grid=(r // tr,),
        in_specs=[pl.BlockSpec((tr, c), lambda i: (i, 0)),
                  pl.BlockSpec((1, c), lambda i: (0, 0)),
                  pl.BlockSpec((1, c), lambda i: (0, 0))],
        out_specs=(pl.BlockSpec((1, c), lambda i: (0, 0)),
                   pl.BlockSpec((1, c), lambda i: (0, 0))),
        compiler_params=pltpu.CompilerParams(
            dimension_semantics=("arbitrary",),       # reduction: outputs resident
            vmem_limit_bytes=_vmem_limit(block_bytes)),
    )(x2, g, b)


# ---------------------------------------------------------------------------
# Kernel 2: fused  GELU(x*scale + shift) -> 3x3 conv (SAME, no bias)
#           [+ residual]  [+ per-tile sum / sum-sq of the conv output].
# Grid: (batch, H tiles).  Padding + halo assembled in a VMEM scratch buffer.
# ---------------------------------------------------------------------------
def _bn_gelu_conv_kernel(x_top_ref, x_mid_ref, x_bot_ref, scale_ref, shift_ref,
                         w_ref, *rest, th, with_residual, emit_stats,
                         compute_dtype):
    rest = list(rest)
    res_ref = rest.pop(0) if with_residual else None
    o_ref = rest.pop(0)
    stats_ref = rest.pop(0) if emit_stats else None
    xpad_ref = rest.pop(0)

    i = pl.program_id(1)
    n_h = pl.num_programs(1)
    w_out = o_ref.shape[2]
    cin = x_mid_ref.shape[3]
    cout = o_ref.shape[3]

    scale = scale_ref[...].reshape(1, 1, cin)
    shift = shift_ref[...].reshape(1, 1, cin)

    def norm_gelu(v):                                 # v: (rows, W, Cin) -> f32
        return _gelu_exact(v.astype(jnp.float32) * scale + shift)

    # --- Assemble the zero-padded, normalized+GELU'd tile in VMEM -----------
    # No full-tile memset: only the two side columns are zeroed every step
    # (tiny masked stores); the halo rows are either real neighbor rows or
    # zeros at the image border.
    zcol = jnp.zeros((th + 2, 1, cin), jnp.float32)
    xpad_ref[:, 0:1, :] = zcol
    xpad_ref[:, w_out + 1:w_out + 2, :] = zcol
    xpad_ref[1:th + 1, 1:w_out + 1, :] = norm_gelu(x_mid_ref[0])

    zrow = jnp.zeros((1, w_out, cin), jnp.float32)

    @pl.when(i == 0)                                  # image top: zero padding
    def _top_zero():
        xpad_ref[0:1, 1:w_out + 1, :] = zrow

    @pl.when(i > 0)                                   # real top halo row
    def _top_halo():
        xpad_ref[0:1, 1:w_out + 1, :] = norm_gelu(x_top_ref[0])

    @pl.when(i == n_h - 1)                            # image bottom: zero padding
    def _bot_zero():
        xpad_ref[th + 1:th + 2, 1:w_out + 1, :] = zrow

    @pl.when(i < n_h - 1)                             # real bottom halo row
    def _bot_halo():
        xpad_ref[th + 1:th + 2, 1:w_out + 1, :] = norm_gelu(x_bot_ref[0])

    # --- 3x3 conv as 3 matmuls with K = 3*Cin --------------------------------
    # The three width-shifted views are concatenated once along the lane dim;
    # the dy taps are then cheap leading-axis slices of that buffer, so only
    # 3 (not 9) materializations happen and the MXU contraction is 3x deeper.
    x0 = xpad_ref[:, 0:w_out, :]
    x1 = xpad_ref[:, 1:w_out + 1, :]
    x2 = xpad_ref[:, 2:w_out + 2, :]
    xcat = jnp.concatenate([x0, x1, x2], axis=-1).astype(compute_dtype)

    acc = None                                        # chained dot; f32 accum
    for dy in range(3):
        wrow = jnp.concatenate([w_ref[dy, 0], w_ref[dy, 1], w_ref[dy, 2]],
                               axis=0).astype(compute_dtype)      # (3*Cin, Cout)
        patch = xcat[dy:dy + th].reshape(th * w_out, 3 * cin)
        d = jnp.dot(patch, wrow, preferred_element_type=jnp.float32)
        acc = d if acc is None else acc + d

    if emit_stats:
        # Per-tile partial sum / sum-of-squares of the conv output; reduced in
        # the wrapper -> avoids a second full HBM read for BN2 statistics.
        s = jnp.sum(acc, axis=0, keepdims=True)                  # (1, Cout)
        ss = jnp.sum(acc * acc, axis=0, keepdims=True)
        stats_ref[...] = jnp.concatenate([s, ss], axis=0).reshape(1, 1, 2, cout)

    out = acc.reshape(th, w_out, cout)
    if with_residual:
        out = out + res_ref[0].astype(jnp.float32)
    o_ref[0] = out.astype(o_ref.dtype)


def bn_gelu_conv3x3(x_nhwc, scale, shift, w_hwio, residual=None,
                    emit_stats=False):
    """Fused GELU(x*scale+shift) -> conv3x3 (stride 1, pad 1) [+ residual]."""
    n, h, w, cin = x_nhwc.shape
    cout = w_hwio.shape[-1]
    vmem_budget = _vmem_capacity_bytes() // 2
    th = _pick_h_tile(h, w, cin, cout, vmem_budget)
    n_h = h // th
    with_res = residual is not None
    # bf16 operands (f32 acc) pay off only at lane-dense widths.
    compute_dtype = jnp.bfloat16 if min(cin, cout) >= 64 else jnp.float32

    in_specs = [
        # 1-row top halo (clamped at image top; replaced by zeros at i==0)
        pl.BlockSpec((1, 1, w, cin),
                     lambda b, i: (b, jnp.maximum(i * th - 1, 0), 0, 0)),
        # main H tile
        pl.BlockSpec((1, th, w, cin), lambda b, i: (b, i, 0, 0)),
        # 1-row bottom halo (clamped at image bottom; zeros at the last tile)
        pl.BlockSpec((1, 1, w, cin),
                     lambda b, i: (b, jnp.minimum((i + 1) * th, h - 1), 0, 0)),
        pl.BlockSpec((1, cin), lambda b, i: (0, 0)),              # scale
        pl.BlockSpec((1, cin), lambda b, i: (0, 0)),              # shift
        pl.BlockSpec((3, 3, cin, cout), lambda b, i: (0, 0, 0, 0)),  # weights
    ]
    args = [x_nhwc, x_nhwc, x_nhwc, scale, shift, w_hwio]
    if with_res:
        in_specs.append(pl.BlockSpec((1, th, w, cout), lambda b, i: (b, i, 0, 0)))
        args.append(residual)

    out_shapes = [jax.ShapeDtypeStruct((n, h, w, cout), x_nhwc.dtype)]
    out_specs = [pl.BlockSpec((1, th, w, cout), lambda b, i: (b, i, 0, 0))]
    if emit_stats:
        out_shapes.append(jax.ShapeDtypeStruct((n, n_h, 2, cout), jnp.float32))
        out_specs.append(pl.BlockSpec((1, 1, 2, cout), lambda b, i: (b, i, 0, 0)))

    block_bytes = 4 * ((th + 2) * w * cin + 2 * cin + 9 * cin * cout
                       + (1 + int(with_res)) * th * w * cout
                       + (2 * cout if emit_stats else 0))
    scratch_bytes = 4 * (th + 2) * (w + 2) * cin

    kernel = functools.partial(_bn_gelu_conv_kernel, th=th,
                               with_residual=with_res, emit_stats=emit_stats,
                               compute_dtype=compute_dtype)
    result = pl.pallas_call(
        kernel,
        out_shape=tuple(out_shapes) if emit_stats else out_shapes[0],
        grid=(n, n_h),
        in_specs=in_specs,
        out_specs=tuple(out_specs) if emit_stats else out_specs[0],
        scratch_shapes=[pltpu.VMEM((th + 2, w + 2, cin), jnp.float32)],
        compiler_params=pltpu.CompilerParams(
            dimension_semantics=("parallel", "parallel"),
            vmem_limit_bytes=_vmem_limit(block_bytes, scratch_bytes)),
    )(*args)
    return result


# ---------------------------------------------------------------------------
# BasicBlock forward (NCHW in / NCHW out, like the PyTorch module).
# ---------------------------------------------------------------------------
@jax.jit
def basic_block_forward(x_nchw, params):
    x = jnp.transpose(x_nchw, (0, 2, 3, 1))           # NCHW -> NHWC
    identity = x
    n, h, w, _ = x.shape

    # bn1 (batch stats) folded to scale/shift inside the stats kernel, then
    # GELU + conv1 fused; conv1 also emits per-tile partial stats of its
    # output so bn2 needs NO extra HBM pass over the activation.
    scale1, shift1 = bn_scale_shift(x, params["bn1_w"], params["bn1_b"])
    out, stats = bn_gelu_conv3x3(x, scale1, shift1, params["conv1_w"],
                                 emit_stats=True)

    total = float(n * h * w)
    s = jnp.sum(stats[:, :, 0, :], axis=(0, 1))        # (Cout,)
    ss = jnp.sum(stats[:, :, 1, :], axis=(0, 1))
    mu2 = s / total
    var2 = jnp.maximum(ss / total - mu2 * mu2, 0.0)
    rstd2 = jax.lax.rsqrt(var2 + EPS)
    scale2_f = params["bn2_w"] * rstd2
    shift2_f = params["bn2_b"] - mu2 * scale2_f
    scale2 = scale2_f.reshape(1, -1)
    shift2 = shift2_f.reshape(1, -1)

    # bn2 + affine + GELU + conv2 + residual add fused
    out = bn_gelu_conv3x3(out, scale2, shift2, params["conv2_w"],
                          residual=identity)

    return jnp.transpose(out, (0, 3, 1, 2))            # NHWC -> NCHW


# ---------------------------------------------------------------------------
# Pure-JAX reference (for correctness check only).
# ---------------------------------------------------------------------------
def ref_forward(x_nchw, params):
    x = jnp.transpose(x_nchw, (0, 2, 3, 1))

    def bn(y, wt, bs):
        mean = y.mean(axis=(0, 1, 2), keepdims=True)
        var = y.var(axis=(0, 1, 2), keepdims=True)
        yn = (y - mean) / jnp.sqrt(var + EPS)
        return wt.reshape(1, 1, 1, -1) * yn + bs.reshape(1, 1, 1, -1)

    def conv(y, wt):
        return jax.lax.conv_general_dilated(
            y, wt, (1, 1), "SAME",
            dimension_numbers=("NHWC", "HWIO", "NHWC"))

    identity = x
    out = _gelu_exact(bn(x, params["bn1_w"], params["bn1_b"]))
    out = conv(out, params["conv1_w"])
    out = _gelu_exact(bn(out, params["bn2_w"], params["bn2_b"]))
    out = conv(out, params["conv2_w"])
    out = out + identity
    return jnp.transpose(out, (0, 3, 1, 2))


def init_params(key, inplanes, planes):
    k1, k2 = jax.random.split(key)
    return {
        # intra_BN_2d affine params (ones / zeros, as in __init__)
        "bn1_w": jnp.ones((inplanes,), jnp.float32),
        "bn1_b": jnp.zeros((inplanes,), jnp.float32),
        "bn2_w": jnp.ones((planes,), jnp.float32),
        "bn2_b": jnp.zeros((planes,), jnp.float32),
        # conv weights in HWIO layout (PyTorch OIHW -> HWIO)
        "conv1_w": 0.1 * jax.random.normal(k1, (3, 3, inplanes, planes), jnp.float32),
        "conv2_w": 0.1 * jax.random.normal(k2, (3, 3, planes, planes), jnp.float32),
    }


if __name__ == "__main__":
    key = jax.random.PRNGKey(0)
    kx, kp = jax.random.split(key)

    N, C, H, W = 2, 4, 16, 16          # inplanes = planes = 4, stride = 1
    x = jax.random.normal(kx, (N, C, H, W), jnp.float32)
    params = init_params(kp, C, C)

    out = basic_block_forward(x, params)
    out = jax.block_until_ready(out)

    ref = ref_forward(x, params)
    assert out.shape == (N, C, H, W)
    assert jnp.allclose(out, ref, atol=2e-4, rtol=2e-4), (
        float(jnp.max(jnp.abs(out - ref))))

    print("KERNEL_OK")
</pallas_src>

<mosaic_0001>
module attributes {stable_mosaic.version = 11 : i64} {
  func.func @_bn_stats_kernel(%arg0: i32, %arg1: memref<256x4xf32, #tpu.memory_space<vmem>>, %arg2: memref<1x4xf32, #tpu.memory_space<vmem>>, %arg3: memref<1x4xf32, #tpu.memory_space<vmem>>, %arg4: memref<1x4xf32, #tpu.memory_space<vmem>>, %arg5: memref<1x4xf32, #tpu.memory_space<vmem>>) attributes {dimension_semantics = [#tpu.dimension_semantics<arbitrary>], iteration_bounds = array<i64: 2>, scalar_prefetch = 0 : i64, scratch_operands = 0 : i64, tpu.core_type = #tpu.core_type<tc>, window_params = [{transform_indices = @transform_0, window_bounds = array<i64: 256, 4>}, {pipeline_mode = #tpu.pipeline_mode<synchronous>, transform_indices = @transform_1, window_bounds = array<i64: 1, 4>}, {pipeline_mode = #tpu.pipeline_mode<synchronous>, transform_indices = @transform_2, window_bounds = array<i64: 1, 4>}, {pipeline_mode = #tpu.pipeline_mode<synchronous>, transform_indices = @transform_3, window_bounds = array<i64: 1, 4>}, {pipeline_mode = #tpu.pipeline_mode<synchronous>, transform_indices = @transform_4, window_bounds = array<i64: 1, 4>}]} {
    %c0_i32 = arith.constant 0 : i32
    %0 = arith.cmpi eq, %arg0, %c0_i32 : i32
    %1 = arith.extui %0 : i1 to i32
    %c0_i32_0 = arith.constant 0 : i32
    %2 = arith.cmpi ne, %1, %c0_i32_0 : i32
    scf.if %2 {
      %cst_12 = arith.constant 0.000000e+00 : f32
      %18 = vector.broadcast %cst_12 : f32 to vector<1x4xf32>
      %c0_13 = arith.constant 0 : index
      %c0_14 = arith.constant 0 : index
      %19 = vector.load %arg4[%c0_13, %c0_14] : memref<1x4xf32, #tpu.memory_space<vmem>>, vector<1x4xf32>
      tpu.vector_store %arg4[%c0_13, %c0_14], %18 {strides = array<i32>} : memref<1x4xf32, #tpu.memory_space<vmem>>, vector<1x4xf32>,
      %cst_15 = arith.constant 0.000000e+00 : f32
      %20 = vector.broadcast %cst_15 : f32 to vector<1x4xf32>
      %c0_16 = arith.constant 0 : index
      %c0_17 = arith.constant 0 : index
      %21 = vector.load %arg5[%c0_16, %c0_17] : memref<1x4xf32, #tpu.memory_space<vmem>>, vector<1x4xf32>
      tpu.vector_store %arg5[%c0_16, %c0_17], %20 {strides = array<i32>} : memref<1x4xf32, #tpu.memory_space<vmem>>, vector<1x4xf32>,
    } else {
    }
    %c0 = arith.constant 0 : index
    %c0_1 = arith.constant 0 : index
    %3 = vector.load %arg1[%c0, %c0_1] : memref<256x4xf32, #tpu.memory_space<vmem>>, vector<256x4xf32>
    %c0_2 = arith.constant 0 : index
    %c0_3 = arith.constant 0 : index
    %4 = vector.load %arg4[%c0_2, %c0_3] : memref<1x4xf32, #tpu.memory_space<vmem>>, vector<1x4xf32>
    %cst = arith.constant dense<0.000000e+00> : vector<4xf32>
    %5 = vector.multi_reduction <add>, %3, %cst [0] : vector<256x4xf32> to vector<4xf32>
    %6 = vector.shape_cast %5 : vector<4xf32> to vector<1x4xf32>
    %7 = arith.addf %4, %6 : vector<1x4xf32>
    %c0_4 = arith.constant 0 : index
    %c0_5 = arith.constant 0 : index
    %8 = vector.load %arg4[%c0_4, %c0_5] : memref<1x4xf32, #tpu.memory_space<vmem>>, vector<1x4xf32>
    tpu.vector_store %arg4[%c0_4, %c0_5], %7 {strides = array<i32>} : memref<1x4xf32, #tpu.memory_space<vmem>>, vector<1x4xf32>,
    %c0_6 = arith.constant 0 : index
    %c0_7 = arith.constant 0 : index
    %9 = vector.load %arg5[%c0_6, %c0_7] : memref<1x4xf32, #tpu.memory_space<vmem>>, vector<1x4xf32>
    %10 = arith.mulf %3, %3 : vector<256x4xf32>
    %cst_8 = arith.constant dense<0.000000e+00> : vector<4xf32>
    %11 = vector.multi_reduction <add>, %10, %cst_8 [0] : vector<256x4xf32> to vector<4xf32>
    %12 = vector.shape_cast %11 : vector<4xf32> to vector<1x4xf32>
    %13 = arith.addf %9, %12 : vector<1x4xf32>
    %c0_9 = arith.constant 0 : index
    %c0_10 = arith.constant 0 : index
    %14 = vector.load %arg5[%c0_9, %c0_10] : memref<1x4xf32, #tpu.memory_space<vmem>>, vector<1x4xf32>
    tpu.vector_store %arg5[%c0_9, %c0_10], %13 {strides = array<i32>} : memref<1x4xf32, #tpu.memory_space<vmem>>, vector<1x4xf32>,
    %c1_i32 = arith.constant 1 : i32
    %15 = arith.cmpi eq, %arg0, %c1_i32 : i32
    %16 = arith.extui %15 : i1 to i32
    %c0_i32_11 = arith.constant 0 : i32
    %17 = arith.cmpi ne, %16, %c0_i32_11 : i32
    scf.if %17 {
      %c0_12 = arith.constant 0 : index
      %c0_13 = arith.constant 0 : index
      %18 = vector.load %arg4[%c0_12, %c0_13] : memref<1x4xf32, #tpu.memory_space<vmem>>, vector<1x4xf32>
      %cst_14 = arith.constant 5.120000e+02 : f32
      %19 = vector.broadcast %cst_14 : f32 to vector<1x4xf32>
      %20 = arith.divf %18, %19 : vector<1x4xf32>
      %c0_15 = arith.constant 0 : index
      %c0_16 = arith.constant 0 : index
      %21 = vector.load %arg5[%c0_15, %c0_16] : memref<1x4xf32, #tpu.memory_space<vmem>>, vector<1x4xf32>
      %cst_17 = arith.constant 5.120000e+02 : f32
      %22 = vector.broadcast %cst_17 : f32 to vector<1x4xf32>
      %23 = arith.divf %21, %22 : vector<1x4xf32>
      %24 = arith.mulf %20, %20 : vector<1x4xf32>
      %25 = arith.subf %23, %24 : vector<1x4xf32>
      %cst_18 = arith.constant 0.000000e+00 : f32
      %26 = vector.broadcast %cst_18 : f32 to vector<1x4xf32>
      %27 = arith.maximumf %25, %26 : vector<1x4xf32>
      %cst_19 = arith.constant 9.99999974E-6 : f32
      %28 = vector.broadcast %cst_19 : f32 to vector<1x4xf32>
      %29 = arith.addf %27, %28 : vector<1x4xf32>
      %30 = math.rsqrt %29 : vector<1x4xf32>
      %c0_20 = arith.constant 0 : index
      %c0_21 = arith.constant 0 : index
      %31 = vector.load %arg2[%c0_20, %c0_21] : memref<1x4xf32, #tpu.memory_space<vmem>>, vector<1x4xf32>
      %32 = arith.mulf %31, %30 : vector<1x4xf32>
      %c0_22 = arith.constant 0 : index
      %c0_23 = arith.constant 0 : index
      %33 = vector.load %arg4[%c0_22, %c0_23] : memref<1x4xf32, #tpu.memory_space<vmem>>, vector<1x4xf32>
      tpu.vector_store %arg4[%c0_22, %c0_23], %32 {strides = array<i32>} : memref<1x4xf32, #tpu.memory_space<vmem>>, vector<1x4xf32>,
      %c0_24 = arith.constant 0 : index
      %c0_25 = arith.constant 0 : index
      %34 = vector.load %arg3[%c0_24, %c0_25] : memref<1x4xf32, #tpu.memory_space<vmem>>, vector<1x4xf32>
      %35 = arith.mulf %20, %32 : vector<1x4xf32>
      %36 = arith.subf %34, %35 : vector<1x4xf32>
      %c0_26 = arith.constant 0 : index
      %c0_27 = arith.constant 0 : index
      %37 = vector.load %arg5[%c0_26, %c0_27] : memref<1x4xf32, #tpu.memory_space<vmem>>, vector<1x4xf32>
      tpu.vector_store %arg5[%c0_26, %c0_27], %36 {strides = array<i32>} : memref<1x4xf32, #tpu.memory_space<vmem>>, vector<1x4xf32>,
    } else {
    }
    return
  }
  func.func @transform_0(%arg0: i32) -> (i32, i32) {
    %c0_i32 = arith.constant 0 : i32
    %c0_i32_0 = arith.constant 0 : i32
    return %arg0, %c0_i32 : i32, i32
  }
  func.func @transform_1(%arg0: i32) -> (i32, i32) {
    %c0_i32 = arith.constant 0 : i32
    %c0_i32_0 = arith.constant 0 : i32
    %c0_i32_1 = arith.constant 0 : i32
    return %c0_i32, %c0_i32_0 : i32, i32
  }
  func.func @transform_2(%arg0: i32) -> (i32, i32) {
    %c0_i32 = arith.constant 0 : i32
    %c0_i32_0 = arith.constant 0 : i32
    %c0_i32_1 = arith.constant 0 : i32
    return %c0_i32, %c0_i32_0 : i32, i32
  }
  func.func @transform_3(%arg0: i32) -> (i32, i32) {
    %c0_i32 = arith.constant 0 : i32
    %c0_i32_0 = arith.constant 0 : i32
    %c0_i32_1 = arith.constant 0 : i32
    return %c0_i32, %c0_i32_0 : i32, i32
  }
  func.func @transform_4(%arg0: i32) -> (i32, i32) {
    %c0_i32 = arith.constant 0 : i32
    %c0_i32_0 = arith.constant 0 : i32
    %c0_i32_1 = arith.constant 0 : i32
    return %c0_i32, %c0_i32_0 : i32, i32
  }
}

module attributes {stable_mosaic.version = 11 : i64} {
  func.func @_bn_gelu_conv_kernel(%arg0: i32, %arg1: i32, %arg2: memref<1x1x16x4xf32, #tpu.memory_space<vmem>>, %arg3: memref<1x8x16x4xf32, #tpu.memory_space<vmem>>, %arg4: memref<1x1x16x4xf32, #tpu.memory_space<vmem>>, %arg5: memref<1x4xf32, #tpu.memory_space<vmem>>, %arg6: memref<1x4xf32, #tpu.memory_space<vmem>>, %arg7: memref<3x3x4x4xf32, #tpu.memory_space<vmem>>, %arg8: memref<1x8x16x4xf32, #tpu.memory_space<vmem>>, %arg9: memref<1x1x2x4xf32, #tpu.memory_space<vmem>>, %arg10: memref<10x18x4xf32, #tpu.memory_space<vmem>>) attributes {dimension_semantics = [#tpu.dimension_semantics<parallel>, #tpu.dimension_semantics<parallel>], iteration_bounds = array<i64: 2, 2>, scalar_prefetch = 0 : i64, scratch_operands = 1 : i64, tpu.core_type = #tpu.core_type<tc>, window_params = [{transform_indices = @transform_0, window_bounds = array<i64: 1, 1, 16, 4>}, {transform_indices = @transform_1, window_bounds = array<i64: 1, 8, 16, 4>}, {transform_indices = @transform_2, window_bounds = array<i64: 1, 1, 16, 4>}, {pipeline_mode = #tpu.pipeline_mode<synchronous>, transform_indices = @transform_3, window_bounds = array<i64: 1, 4>}, {pipeline_mode = #tpu.pipeline_mode<synchronous>, transform_indices = @transform_4, window_bounds = array<i64: 1, 4>}, {pipeline_mode = #tpu.pipeline_mode<synchronous>, transform_indices = @transform_5, window_bounds = array<i64: 3, 3, 4, 4>}, {transform_indices = @transform_6, window_bounds = array<i64: 1, 8, 16, 4>}, {transform_indices = @transform_7, window_bounds = array<i64: 1, 1, 2, 4>}]} {
    %c0 = arith.constant 0 : index
    %c0_0 = arith.constant 0 : index
    %0 = vector.load %arg5[%c0, %c0_0] : memref<1x4xf32, #tpu.memory_space<vmem>>, vector<1x4xf32>
    %1 = vector.shape_cast %0 : vector<1x4xf32> to vector<1x1x4xf32>
    %c0_1 = arith.constant 0 : index
    %c0_2 = arith.constant 0 : index
    %2 = vector.load %arg6[%c0_1, %c0_2] : memref<1x4xf32, #tpu.memory_space<vmem>>, vector<1x4xf32>
    %3 = vector.shape_cast %2 : vector<1x4xf32> to vector<1x1x4xf32>
    %cst = arith.constant 0.000000e+00 : f32
    %4 = vector.broadcast %cst : f32 to vector<10x1x4xf32>
    %c0_3 = arith.constant 0 : index
    %c0_4 = arith.constant 0 : index
    %c0_5 = arith.constant 0 : index
    %5 = vector.load %arg10[%c0_3, %c0_4, %c0_5] : memref<10x18x4xf32, #tpu.memory_space<vmem>>, vector<10x1x4xf32>
    tpu.vector_store %arg10[%c0_3, %c0_4, %c0_5], %4 {strides = array<i32>} : memref<10x18x4xf32, #tpu.memory_space<vmem>>, vector<10x1x4xf32>,
    %c0_6 = arith.constant 0 : index
    %c17 = arith.constant 17 : index
    %c0_7 = arith.constant 0 : index
    %6 = vector.load %arg10[%c0_6, %c17, %c0_7] : memref<10x18x4xf32, #tpu.memory_space<vmem>>, vector<10x1x4xf32>
    tpu.vector_store %arg10[%c0_6, %c17, %c0_7], %4 {strides = array<i32>} : memref<10x18x4xf32, #tpu.memory_space<vmem>>, vector<10x1x4xf32>,
    %c0_8 = arith.constant 0 : index
    %c0_9 = arith.constant 0 : index
    %c0_10 = arith.constant 0 : index
    %c0_11 = arith.constant 0 : index
    %7 = vector.load %arg3[%c0_8, %c0_9, %c0_10, %c0_11] : memref<1x8x16x4xf32, #tpu.memory_space<vmem>>, vector<1x8x16x4xf32>
    %8 = vector.shape_cast %7 : vector<1x8x16x4xf32> to vector<8x16x4xf32>
    %9 = vector.broadcast %1 : vector<1x1x4xf32> to vector<8x16x4xf32>
    %10 = arith.mulf %8, %9 : vector<8x16x4xf32>
    %11 = vector.broadcast %3 : vector<1x1x4xf32> to vector<8x16x4xf32>
    %12 = arith.addf %10, %11 : vector<8x16x4xf32>
    %cst_12 = arith.constant 5.000000e-01 : f32
    %13 = vector.broadcast %cst_12 : f32 to vector<8x16x4xf32>
    %14 = arith.mulf %13, %12 : vector<8x16x4xf32>
    %cst_13 = arith.constant 0.707106769 : f32
    %15 = vector.broadcast %cst_13 : f32 to vector<8x16x4xf32>
    %16 = arith.mulf %12, %15 : vector<8x16x4xf32>
    %17 = math.erf %16 : vector<8x16x4xf32>
    %cst_14 = arith.constant 1.000000e+00 : f32
    %18 = vector.broadcast %cst_14 : f32 to vector<8x16x4xf32>
    %19 = arith.addf %18, %17 : vector<8x16x4xf32>
    %20 = arith.mulf %14, %19 : vector<8x16x4xf32>
    %c1 = arith.constant 1 : index
    %c1_15 = arith.constant 1 : index
    %c0_16 = arith.constant 0 : index
    %21 = vector.load %arg10[%c1, %c1_15, %c0_16] : memref<10x18x4xf32, #tpu.memory_space<vmem>>, vector<8x16x4xf32>
    tpu.vector_store %arg10[%c1, %c1_15, %c0_16], %20 {strides = array<i32>} : memref<10x18x4xf32, #tpu.memory_space<vmem>>, vector<8x16x4xf32>,
    %cst_17 = arith.constant 0.000000e+00 : f32
    %22 = vector.broadcast %cst_17 : f32 to vector<1x16x4xf32>
    %c0_i32 = arith.constant 0 : i32
    %23 = arith.cmpi eq, %arg1, %c0_i32 : i32
    %24 = arith.extui %23 : i1 to i32
    %c0_i32_18 = arith.constant 0 : i32
    %25 = arith.cmpi ne, %24, %c0_i32_18 : i32
    scf.if %25 {
      %c0_81 = arith.constant 0 : index
      %c1_82 = arith.constant 1 : index
      %c0_83 = arith.constant 0 : index
      %83 = vector.load %arg10[%c0_81, %c1_82, %c0_83] : memref<10x18x4xf32, #tpu.memory_space<vmem>>, vector<1x16x4xf32>
      tpu.vector_store %arg10[%c0_81, %c1_82, %c0_83], %22 {strides = array<i32>} : memref<10x18x4xf32, #tpu.memory_space<vmem>>, vector<1x16x4xf32>,
    } else {
    }
    %c0_i32_19 = arith.constant 0 : i32
    %26 = arith.cmpi sgt, %arg1, %c0_i32_19 : i32
    %27 = arith.extui %26 : i1 to i32
    %c0_i32_20 = arith.constant 0 : i32
    %28 = arith.cmpi ne, %27, %c0_i32_20 : i32
    scf.if %28 {
      %c0_81 = arith.constant 0 : index
      %c0_82 = arith.constant 0 : index
      %c0_83 = arith.constant 0 : index
      %c0_84 = arith.constant 0 : index
      %83 = vector.load %arg2[%c0_81, %c0_82, %c0_83, %c0_84] : memref<1x1x16x4xf32, #tpu.memory_space<vmem>>, vector<1x1x16x4xf32>
      %84 = vector.shape_cast %83 : vector<1x1x16x4xf32> to vector<1x16x4xf32>
      %85 = vector.broadcast %1 : vector<1x1x4xf32> to vector<1x16x4xf32>
      %86 = arith.mulf %84, %85 : vector<1x16x4xf32>
      %87 = vector.broadcast %3 : vector<1x1x4xf32> to vector<1x16x4xf32>
      %88 = arith.addf %86, %87 : vector<1x16x4xf32>
      %cst_85 = arith.constant 5.000000e-01 : f32
      %89 = vector.broadcast %cst_85 : f32 to vector<1x16x4xf32>
      %90 = arith.mulf %89, %88 : vector<1x16x4xf32>
      %cst_86 = arith.constant 0.707106769 : f32
      %91 = vector.broadcast %cst_86 : f32 to vector<1x16x4xf32>
      %92 = arith.mulf %88, %91 : vector<1x16x4xf32>
      %93 = math.erf %92 : vector<1x16x4xf32>
      %cst_87 = arith.constant 1.000000e+00 : f32
      %94 = vector.broadcast %cst_87 : f32 to vector<1x16x4xf32>
      %95 = arith.addf %94, %93 : vector<1x16x4xf32>
      %96 = arith.mulf %90, %95 : vector<1x16x4xf32>
      %c0_88 = arith.constant 0 : index
      %c1_89 = arith.constant 1 : index
      %c0_90 = arith.constant 0 : index
      %97 = vector.load %arg10[%c0_88, %c1_89, %c0_90] : memref<10x18x4xf32, #tpu.memory_space<vmem>>, vector<1x16x4xf32>
      tpu.vector_store %arg10[%c0_88, %c1_89, %c0_90], %96 {strides = array<i32>} : memref<10x18x4xf32, #tpu.memory_space<vmem>>, vector<1x16x4xf32>,
    } else {
    }
    %c1_i32 = arith.constant 1 : i32
    %29 = arith.cmpi eq, %arg1, %c1_i32 : i32
    %30 = arith.extui %29 : i1 to i32
    %c0_i32_21 = arith.constant 0 : i32
    %31 = arith.cmpi ne, %30, %c0_i32_21 : i32
    scf.if %31 {
      %c9 = arith.constant 9 : index
      %c1_81 = arith.constant 1 : index
      %c0_82 = arith.constant 0 : index
      %83 = vector.load %arg10[%c9, %c1_81, %c0_82] : memref<10x18x4xf32, #tpu.memory_space<vmem>>, vector<1x16x4xf32>
      tpu.vector_store %arg10[%c9, %c1_81, %c0_82], %22 {strides = array<i32>} : memref<10x18x4xf32, #tpu.memory_space<vmem>>, vector<1x16x4xf32>,
    } else {
    }
    %c1_i32_22 = arith.constant 1 : i32
    %32 = arith.cmpi slt, %arg1, %c1_i32_22 : i32
    %33 = arith.extui %32 : i1 to i32
    %c0_i32_23 = arith.constant 0 : i32
    %34 = arith.cmpi ne, %33, %c0_i32_23 : i32
    scf.if %34 {
      %c0_81 = arith.constant 0 : index
      %c0_82 = arith.constant 0 : index
      %c0_83 = arith.constant 0 : index
      %c0_84 = arith.constant 0 : index
      %83 = vector.load %arg4[%c0_81, %c0_82, %c0_83, %c0_84] : memref<1x1x16x4xf32, #tpu.memory_space<vmem>>, vector<1x1x16x4xf32>
      %84 = vector.shape_cast %83 : vector<1x1x16x4xf32> to vector<1x16x4xf32>
      %85 = vector.broadcast %1 : vector<1x1x4xf32> to vector<1x16x4xf32>
      %86 = arith.mulf %84, %85 : vector<1x16x4xf32>
      %87 = vector.broadcast %3 : vector<1x1x4xf32> to vector<1x16x4xf32>
      %88 = arith.addf %86, %87 : vector<1x16x4xf32>
      %cst_85 = arith.constant 5.000000e-01 : f32
      %89 = vector.broadcast %cst_85 : f32 to vector<1x16x4xf32>
      %90 = arith.mulf %89, %88 : vector<1x16x4xf32>
      %cst_86 = arith.constant 0.707106769 : f32
      %91 = vector.broadcast %cst_86 : f32 to vector<1x16x4xf32>
      %92 = arith.mulf %88, %91 : vector<1x16x4xf32>
      %93 = math.erf %92 : vector<1x16x4xf32>
      %cst_87 = arith.constant 1.000000e+00 : f32
      %94 = vector.broadcast %cst_87 : f32 to vector<1x16x4xf32>
      %95 = arith.addf %94, %93 : vector<1x16x4xf32>
      %96 = arith.mulf %90, %95 : vector<1x16x4xf32>
      %c9 = arith.constant 9 : index
      %c1_88 = arith.constant 1 : index
      %c0_89 = arith.constant 0 : index
      %97 = vector.load %arg10[%c9, %c1_88, %c0_89] : memref<10x18x4xf32, #tpu.memory_space<vmem>>, vector<1x16x4xf32>
      tpu.vector_store %arg10[%c9, %c1_88, %c0_89], %96 {strides = array<i32>} : memref<10x18x4xf32, #tpu.memory_space<vmem>>, vector<1x16x4xf32>,
    } else {
    }
    %c0_24 = arith.constant 0 : index
    %c0_25 = arith.constant 0 : index
    %c0_26 = arith.constant 0 : index
    %35 = vector.load %arg10[%c0_24, %c0_25, %c0_26] : memref<10x18x4xf32, #tpu.memory_space<vmem>>, vector<10x16x4xf32>
    %c0_27 = arith.constant 0 : index
    %c1_28 = arith.constant 1 : index
    %c0_29 = arith.constant 0 : index
    %36 = vector.load %arg10[%c0_27, %c1_28, %c0_29] : memref<10x18x4xf32, #tpu.memory_space<vmem>>, vector<10x16x4xf32>
    %c0_30 = arith.constant 0 : index
    %c2 = arith.constant 2 : index
    %c0_31 = arith.constant 0 : index
    %37 = vector.load %arg10[%c0_30, %c2, %c0_31] : memref<10x18x4xf32, #tpu.memory_space<vmem>>, vector<10x16x4xf32>
    %38 = tpu.concatenate %35, %36, %37 in 2 : vector<10x16x4xf32>, vector<10x16x4xf32>, vector<10x16x4xf32> -> vector<10x16x12xf32>
    %c0_32 = arith.constant 0 : index
    %c0_33 = arith.constant 0 : index
    %c0_34 = arith.constant 0 : index
    %c0_35 = arith.constant 0 : index
    %39 = vector.load %arg7[%c0_32, %c0_33, %c0_34, %c0_35] : memref<3x3x4x4xf32, #tpu.memory_space<vmem>>, vector<1x1x4x4xf32>
    %40 = vector.shape_cast %39 : vector<1x1x4x4xf32> to vector<4x4xf32>
    %c0_36 = arith.constant 0 : index
    %c1_37 = arith.constant 1 : index
    %c0_38 = arith.constant 0 : index
    %c0_39 = arith.constant 0 : index
    %41 = vector.load %arg7[%c0_36, %c1_37, %c0_38, %c0_39] : memref<3x3x4x4xf32, #tpu.memory_space<vmem>>, vector<1x1x4x4xf32>
    %42 = vector.shape_cast %41 : vector<1x1x4x4xf32> to vector<4x4xf32>
    %c0_40 = arith.constant 0 : index
    %c2_41 = arith.constant 2 : index
    %c0_42 = arith.constant 0 : index
    %c0_43 = arith.constant 0 : index
    %43 = vector.load %arg7[%c0_40, %c2_41, %c0_42, %c0_43] : memref<3x3x4x4xf32, #tpu.memory_space<vmem>>, vector<1x1x4x4xf32>
    %44 = vector.shape_cast %43 : vector<1x1x4x4xf32> to vector<4x4xf32>
    %45 = tpu.concatenate %40, %42, %44 in 0 : vector<4x4xf32>, vector<4x4xf32>, vector<4x4xf32> -> vector<12x4xf32>
    %46 = vector.extract_strided_slice %38 {offsets = [0, 0, 0], sizes = [8, 16, 12], strides = [1, 1, 1]} : vector<10x16x12xf32> to vector<8x16x12xf32>
    %47 = vector.shape_cast %46 : vector<8x16x12xf32> to vector<128x12xf32>
    %cst_44 = arith.constant dense<0.000000e+00> : vector<128x4xf32>
    %48 = tpu.matmul %47, %45, %cst_44 {dimension_numbers = #tpu.dot_dimension_numbers<[1], [0], [0], [1], [0, 0, 1, 1], [], []>} : vector<128x12xf32>, vector<12x4xf32>, vector<128x4xf32> -> vector<128x4xf32>
    %c1_45 = arith.constant 1 : index
    %c0_46 = arith.constant 0 : index
    %c0_47 = arith.constant 0 : index
    %c0_48 = arith.constant 0 : index
    %49 = vector.load %arg7[%c1_45, %c0_46, %c0_47, %c0_48] : memref<3x3x4x4xf32, #tpu.memory_space<vmem>>, vector<1x1x4x4xf32>
    %50 = vector.shape_cast %49 : vector<1x1x4x4xf32> to vector<4x4xf32>
    %c1_49 = arith.constant 1 : index
    %c1_50 = arith.constant 1 : index
    %c0_51 = arith.constant 0 : index
    %c0_52 = arith.constant 0 : index
    %51 = vector.load %arg7[%c1_49, %c1_50, %c0_51, %c0_52] : memref<3x3x4x4xf32, #tpu.memory_space<vmem>>, vector<1x1x4x4xf32>
    %52 = vector.shape_cast %51 : vector<1x1x4x4xf32> to vector<4x4xf32>
    %c1_53 = arith.constant 1 : index
    %c2_54 = arith.constant 2 : index
    %c0_55 = arith.constant 0 : index
    %c0_56 = arith.constant 0 : index
    %53 = vector.load %arg7[%c1_53, %c2_54, %c0_55, %c0_56] : memref<3x3x4x4xf32, #tpu.memory_space<vmem>>, vector<1x1x4x4xf32>
    %54 = vector.shape_cast %53 : vector<1x1x4x4xf32> to vector<4x4xf32>
    %55 = tpu.concatenate %50, %52, %54 in 0 : vector<4x4xf32>, vector<4x4xf32>, vector<4x4xf32> -> vector<12x4xf32>
    %56 = vector.extract_strided_slice %38 {offsets = [1, 0, 0], sizes = [8, 16, 12], strides = [1, 1, 1]} : vector<10x16x12xf32> to vector<8x16x12xf32>
    %57 = vector.shape_cast %56 : vector<8x16x12xf32> to vector<128x12xf32>
    %cst_57 = arith.constant dense<0.000000e+00> : vector<128x4xf32>
    %58 = tpu.matmul %57, %55, %cst_57 {dimension_numbers = #tpu.dot_dimension_numbers<[1], [0], [0], [1], [0, 0, 1, 1], [], []>} : vector<128x12xf32>, vector<12x4xf32>, vector<128x4xf32> -> vector<128x4xf32>
    %59 = arith.addf %48, %58 : vector<128x4xf32>
    %c2_58 = arith.constant 2 : index
    %c0_59 = arith.constant 0 : index
    %c0_60 = arith.constant 0 : index
    %c0_61 = arith.constant 0 : index
    %60 = vector.load %arg7[%c2_58, %c0_59, %c0_60, %c0_61] : memref<3x3x4x4xf32, #tpu.memory_space<vmem>>, vector<1x1x4x4xf32>
    %61 = vector.shape_cast %60 : vector<1x1x4x4xf32> to vector<4x4xf32>
    %c2_62 = arith.constant 2 : index
    %c1_63 = arith.constant 1 : index
    %c0_64 = arith.constant 0 : index
    %c0_65 = arith.constant 0 : index
    %62 = vector.load %arg7[%c2_62, %c1_63, %c0_64, %c0_65] : memref<3x3x4x4xf32, #tpu.memory_space<vmem>>, vector<1x1x4x4xf32>
    %63 = vector.shape_cast %62 : vector<1x1x4x4xf32> to vector<4x4xf32>
    %c2_66 = arith.constant 2 : index
    %c2_67 = arith.constant 2 : index
    %c0_68 = arith.constant 0 : index
    %c0_69 = arith.constant 0 : index
    %64 = vector.load %arg7[%c2_66, %c2_67, %c0_68, %c0_69] : memref<3x3x4x4xf32, #tpu.memory_space<vmem>>, vector<1x1x4x4xf32>
    %65 = vector.shape_cast %64 : vector<1x1x4x4xf32> to vector<4x4xf32>
    %66 = tpu.concatenate %61, %63, %65 in 0 : vector<4x4xf32>, vector<4x4xf32>, vector<4x4xf32> -> vector<12x4xf32>
    %67 = vector.extract_strided_slice %38 {offsets = [2, 0, 0], sizes = [8, 16, 12], strides = [1, 1, 1]} : vector<10x16x12xf32> to vector<8x16x12xf32>
    %68 = vector.shape_cast %67 : vector<8x16x12xf32> to vector<128x12xf32>
    %cst_70 = arith.constant dense<0.000000e+00> : vector<128x4xf32>
    %69 = tpu.matmul %68, %66, %cst_70 {dimension_numbers = #tpu.dot_dimension_numbers<[1], [0], [0], [1], [0, 0, 1, 1], [], []>} : vector<128x12xf32>, vector<12x4xf32>, vector<128x4xf32> -> vector<128x4xf32>
    %70 = arith.addf %59, %69 : vector<128x4xf32>
    %cst_71 = arith.constant dense<0.000000e+00> : vector<4xf32>
    %71 = vector.multi_reduction <add>, %70, %cst_71 [0] : vector<128x4xf32> to vector<4xf32>
    %72 = vector.shape_cast %71 : vector<4xf32> to vector<1x4xf32>
    %73 = arith.mulf %70, %70 : vector<128x4xf32>
    %cst_72 = arith.constant dense<0.000000e+00> : vector<4xf32>
    %74 = vector.multi_reduction <add>, %73, %cst_72 [0] : vector<128x4xf32> to vector<4xf32>
    %75 = vector.shape_cast %74 : vector<4xf32> to vector<1x4xf32>
    %76 = tpu.concatenate %72, %75 in 0 : vector<1x4xf32>, vector<1x4xf32> -> vector<2x4xf32>
    %77 = vector.shape_cast %76 : vector<2x4xf32> to vector<1x1x2x4xf32>
    %c0_73 = arith.constant 0 : index
    %c0_74 = arith.constant 0 : index
    %c0_75 = arith.constant 0 : index
    %c0_76 = arith.constant 0 : index
    %78 = vector.load %arg9[%c0_73, %c0_74, %c0_75, %c0_76] : memref<1x1x2x4xf32, #tpu.memory_space<vmem>>, vector<1x1x2x4xf32>
    tpu.vector_store %arg9[%c0_73, %c0_74, %c0_75, %c0_76], %77 {strides = array<i32>} : memref<1x1x2x4xf32, #tpu.memory_space<vmem>>, vector<1x1x2x4xf32>,
    %79 = vector.shape_cast %70 : vector<128x4xf32> to vector<8x16x4xf32>
    %c0_77 = arith.constant 0 : index
    %c0_78 = arith.constant 0 : index
    %c0_79 = arith.constant 0 : index
    %c0_80 = arith.constant 0 : index
    %80 = vector.load %arg8[%c0_77, %c0_78, %c0_79, %c0_80] : memref<1x8x16x4xf32, #tpu.memory_space<vmem>>, vector<1x8x16x4xf32>
    %81 = vector.shape_cast %80 : vector<1x8x16x4xf32> to vector<8x16x4xf32>
    %82 = vector.shape_cast %79 : vector<8x16x4xf32> to vector<1x8x16x4xf32>
    tpu.vector_store %arg8[%c0_77, %c0_78, %c0_79, %c0_80], %82 {strides = array<i32>} : memref<1x8x16x4xf32, #tpu.memory_space<vmem>>, vector<1x8x16x4xf32>,
    return
  }
  func.func @transform_0(%arg0: i32, %arg1: i32) -> (i32, i32, i32, i32) {
    %c8_i32 = arith.constant 8 : i32
    %0 = arith.muli %arg1, %c8_i32 : i32
    %c1_i32 = arith.constant 1 : i32
    %1 = arith.subi %0, %c1_i32 : i32
    %c0_i32 = arith.constant 0 : i32
    %2 = arith.maxsi %1, %c0_i32 : i32
    %c0_i32_0 = arith.constant 0 : i32
    %c0_i32_1 = arith.constant 0 : i32
    %c0_i32_2 = arith.constant 0 : i32
    return %arg0, %2, %c0_i32_0, %c0_i32_1 : i32, i32, i32, i32
  }
  func.func @transform_1(%arg0: i32, %arg1: i32) -> (i32, i32, i32, i32) {
    %c0_i32 = arith.constant 0 : i32
    %c0_i32_0 = arith.constant 0 : i32
    %c0_i32_1 = arith.constant 0 : i32
    return %arg0, %arg1, %c0_i32, %c0_i32_0 : i32, i32, i32, i32
  }
  func.func @transform_2(%arg0: i32, %arg1: i32) -> (i32, i32, i32, i32) {
    %c1_i32 = arith.constant 1 : i32
    %0 = arith.addi %arg1, %c1_i32 : i32
    %c8_i32 = arith.constant 8 : i32
    %1 = arith.muli %0, %c8_i32 : i32
    %c15_i32 = arith.constant 15 : i32
    %2 = arith.minsi %1, %c15_i32 : i32
    %c0_i32 = arith.constant 0 : i32
    %c0_i32_0 = arith.constant 0 : i32
    %c0_i32_1 = arith.constant 0 : i32
    return %arg0, %2, %c0_i32, %c0_i32_0 : i32, i32, i32, i32
  }
  func.func @transform_3(%arg0: i32, %arg1: i32) -> (i32, i32) {
    %c0_i32 = arith.constant 0 : i32
    %c0_i32_0 = arith.constant 0 : i32
    %c0_i32_1 = arith.constant 0 : i32
    return %c0_i32, %c0_i32_0 : i32, i32
  }
  func.func @transform_4(%arg0: i32, %arg1: i32) -> (i32, i32) {
    %c0_i32 = arith.constant 0 : i32
    %c0_i32_0 = arith.constant 0 : i32
    %c0_i32_1 = arith.constant 0 : i32
    return %c0_i32, %c0_i32_0 : i32, i32
  }
  func.func @transform_5(%arg0: i32, %arg1: i32) -> (i32, i32, i32, i32) {
    %c0_i32 = arith.constant 0 : i32
    %c0_i32_0 = arith.constant 0 : i32
    %c0_i32_1 = arith.constant 0 : i32
    %c0_i32_2 = arith.constant 0 : i32
    %c0_i32_3 = arith.constant 0 : i32
    return %c0_i32, %c0_i32_0, %c0_i32_1, %c0_i32_2 : i32, i32, i32, i32
  }
  func.func @transform_6(%arg0: i32, %arg1: i32) -> (i32, i32, i32, i32) {
    %c0_i32 = arith.constant 0 : i32
    %c0_i32_0 = arith.constant 0 : i32
    %c0_i32_1 = arith.constant 0 : i32
    return %arg0, %arg1, %c0_i32, %c0_i32_0 : i32, i32, i32, i32
  }
  func.func @transform_7(%arg0: i32, %arg1: i32) -> (i32, i32, i32, i32) {
    %c0_i32 = arith.constant 0 : i32
    %c0_i32_0 = arith.constant 0 : i32
    %c0_i32_1 = arith.constant 0 : i32
    return %arg0, %arg1, %c0_i32, %c0_i32_0 : i32, i32, i32, i32
  }
}

module attributes {stable_mosaic.version = 11 : i64} {
  func.func @_bn_gelu_conv_kernel(%arg0: i32, %arg1: i32, %arg2: memref<1x1x16x4xf32, #tpu.memory_space<vmem>>, %arg3: memref<1x8x16x4xf32, #tpu.memory_space<vmem>>, %arg4: memref<1x1x16x4xf32, #tpu.memory_space<vmem>>, %arg5: memref<1x4xf32, #tpu.memory_space<vmem>>, %arg6: memref<1x4xf32, #tpu.memory_space<vmem>>, %arg7: memref<3x3x4x4xf32, #tpu.memory_space<vmem>>, %arg8: memref<1x8x16x4xf32, #tpu.memory_space<vmem>>, %arg9: memref<1x8x16x4xf32, #tpu.memory_space<vmem>>, %arg10: memref<10x18x4xf32, #tpu.memory_space<vmem>>) attributes {dimension_semantics = [#tpu.dimension_semantics<parallel>, #tpu.dimension_semantics<parallel>], iteration_bounds = array<i64: 2, 2>, scalar_prefetch = 0 : i64, scratch_operands = 1 : i64, tpu.core_type = #tpu.core_type<tc>, window_params = [{transform_indices = @transform_0, window_bounds = array<i64: 1, 1, 16, 4>}, {transform_indices = @transform_1, window_bounds = array<i64: 1, 8, 16, 4>}, {transform_indices = @transform_2, window_bounds = array<i64: 1, 1, 16, 4>}, {pipeline_mode = #tpu.pipeline_mode<synchronous>, transform_indices = @transform_3, window_bounds = array<i64: 1, 4>}, {pipeline_mode = #tpu.pipeline_mode<synchronous>, transform_indices = @transform_4, window_bounds = array<i64: 1, 4>}, {pipeline_mode = #tpu.pipeline_mode<synchronous>, transform_indices = @transform_5, window_bounds = array<i64: 3, 3, 4, 4>}, {transform_indices = @transform_6, window_bounds = array<i64: 1, 8, 16, 4>}, {transform_indices = @transform_7, window_bounds = array<i64: 1, 8, 16, 4>}]} {
    %c0 = arith.constant 0 : index
    %c0_0 = arith.constant 0 : index
    %0 = vector.load %arg5[%c0, %c0_0] : memref<1x4xf32, #tpu.memory_space<vmem>>, vector<1x4xf32>
    %1 = vector.shape_cast %0 : vector<1x4xf32> to vector<1x1x4xf32>
    %c0_1 = arith.constant 0 : index
    %c0_2 = arith.constant 0 : index
    %2 = vector.load %arg6[%c0_1, %c0_2] : memref<1x4xf32, #tpu.memory_space<vmem>>, vector<1x4xf32>
    %3 = vector.shape_cast %2 : vector<1x4xf32> to vector<1x1x4xf32>
    %cst = arith.constant 0.000000e+00 : f32
    %4 = vector.broadcast %cst : f32 to vector<10x1x4xf32>
    %c0_3 = arith.constant 0 : index
    %c0_4 = arith.constant 0 : index
    %c0_5 = arith.constant 0 : index
    %5 = vector.load %arg10[%c0_3, %c0_4, %c0_5] : memref<10x18x4xf32, #tpu.memory_space<vmem>>, vector<10x1x4xf32>
    tpu.vector_store %arg10[%c0_3, %c0_4, %c0_5], %4 {strides = array<i32>} : memref<10x18x4xf32, #tpu.memory_space<vmem>>, vector<10x1x4xf32>,
    %c0_6 = arith.constant 0 : index
    %c17 = arith.constant 17 : index
    %c0_7 = arith.constant 0 : index
    %6 = vector.load %arg10[%c0_6, %c17, %c0_7] : memref<10x18x4xf32, #tpu.memory_space<vmem>>, vector<10x1x4xf32>
    tpu.vector_store %arg10[%c0_6, %c17, %c0_7], %4 {strides = array<i32>} : memref<10x18x4xf32, #tpu.memory_space<vmem>>, vector<10x1x4xf32>,
    %c0_8 = arith.constant 0 : index
    %c0_9 = arith.constant 0 : index
    %c0_10 = arith.constant 0 : index
    %c0_11 = arith.constant 0 : index
    %7 = vector.load %arg3[%c0_8, %c0_9, %c0_10, %c0_11] : memref<1x8x16x4xf32, #tpu.memory_space<vmem>>, vector<1x8x16x4xf32>
    %8 = vector.shape_cast %7 : vector<1x8x16x4xf32> to vector<8x16x4xf32>
    %9 = vector.broadcast %1 : vector<1x1x4xf32> to vector<8x16x4xf32>
    %10 = arith.mulf %8, %9 : vector<8x16x4xf32>
    %11 = vector.broadcast %3 : vector<1x1x4xf32> to vector<8x16x4xf32>
    %12 = arith.addf %10, %11 : vector<8x16x4xf32>
    %cst_12 = arith.constant 5.000000e-01 : f32
    %13 = vector.broadcast %cst_12 : f32 to vector<8x16x4xf32>
    %14 = arith.mulf %13, %12 : vector<8x16x4xf32>
    %cst_13 = arith.constant 0.707106769 : f32
    %15 = vector.broadcast %cst_13 : f32 to vector<8x16x4xf32>
    %16 = arith.mulf %12, %15 : vector<8x16x4xf32>
    %17 = math.erf %16 : vector<8x16x4xf32>
    %cst_14 = arith.constant 1.000000e+00 : f32
    %18 = vector.broadcast %cst_14 : f32 to vector<8x16x4xf32>
    %19 = arith.addf %18, %17 : vector<8x16x4xf32>
    %20 = arith.mulf %14, %19 : vector<8x16x4xf32>
    %c1 = arith.constant 1 : index
    %c1_15 = arith.constant 1 : index
    %c0_16 = arith.constant 0 : index
    %21 = vector.load %arg10[%c1, %c1_15, %c0_16] : memref<10x18x4xf32, #tpu.memory_space<vmem>>, vector<8x16x4xf32>
    tpu.vector_store %arg10[%c1, %c1_15, %c0_16], %20 {strides = array<i32>} : memref<10x18x4xf32, #tpu.memory_space<vmem>>, vector<8x16x4xf32>,
    %cst_17 = arith.constant 0.000000e+00 : f32
    %22 = vector.broadcast %cst_17 : f32 to vector<1x16x4xf32>
    %c0_i32 = arith.constant 0 : i32
    %23 = arith.cmpi eq, %arg1, %c0_i32 : i32
    %24 = arith.extui %23 : i1 to i32
    %c0_i32_18 = arith.constant 0 : i32
    %25 = arith.cmpi ne, %24, %c0_i32_18 : i32
    scf.if %25 {
      %c0_79 = arith.constant 0 : index
      %c1_80 = arith.constant 1 : index
      %c0_81 = arith.constant 0 : index
      %78 = vector.load %arg10[%c0_79, %c1_80, %c0_81] : memref<10x18x4xf32, #tpu.memory_space<vmem>>, vector<1x16x4xf32>
      tpu.vector_store %arg10[%c0_79, %c1_80, %c0_81], %22 {strides = array<i32>} : memref<10x18x4xf32, #tpu.memory_space<vmem>>, vector<1x16x4xf32>,
    } else {
    }
    %c0_i32_19 = arith.constant 0 : i32
    %26 = arith.cmpi sgt, %arg1, %c0_i32_19 : i32
    %27 = arith.extui %26 : i1 to i32
    %c0_i32_20 = arith.constant 0 : i32
    %28 = arith.cmpi ne, %27, %c0_i32_20 : i32
    scf.if %28 {
      %c0_79 = arith.constant 0 : index
      %c0_80 = arith.constant 0 : index
      %c0_81 = arith.constant 0 : index
      %c0_82 = arith.constant 0 : index
      %78 = vector.load %arg2[%c0_79, %c0_80, %c0_81, %c0_82] : memref<1x1x16x4xf32, #tpu.memory_space<vmem>>, vector<1x1x16x4xf32>
      %79 = vector.shape_cast %78 : vector<1x1x16x4xf32> to vector<1x16x4xf32>
      %80 = vector.broadcast %1 : vector<1x1x4xf32> to vector<1x16x4xf32>
      %81 = arith.mulf %79, %80 : vector<1x16x4xf32>
      %82 = vector.broadcast %3 : vector<1x1x4xf32> to vector<1x16x4xf32>
      %83 = arith.addf %81, %82 : vector<1x16x4xf32>
      %cst_83 = arith.constant 5.000000e-01 : f32
      %84 = vector.broadcast %cst_83 : f32 to vector<1x16x4xf32>
      %85 = arith.mulf %84, %83 : vector<1x16x4xf32>
      %cst_84 = arith.constant 0.707106769 : f32
      %86 = vector.broadcast %cst_84 : f32 to vector<1x16x4xf32>
      %87 = arith.mulf %83, %86 : vector<1x16x4xf32>
      %88 = math.erf %87 : vector<1x16x4xf32>
      %cst_85 = arith.constant 1.000000e+00 : f32
      %89 = vector.broadcast %cst_85 : f32 to vector<1x16x4xf32>
      %90 = arith.addf %89, %88 : vector<1x16x4xf32>
      %91 = arith.mulf %85, %90 : vector<1x16x4xf32>
      %c0_86 = arith.constant 0 : index
      %c1_87 = arith.constant 1 : index
      %c0_88 = arith.constant 0 : index
      %92 = vector.load %arg10[%c0_86, %c1_87, %c0_88] : memref<10x18x4xf32, #tpu.memory_space<vmem>>, vector<1x16x4xf32>
      tpu.vector_store %arg10[%c0_86, %c1_87, %c0_88], %91 {strides = array<i32>} : memref<10x18x4xf32, #tpu.memory_space<vmem>>, vector<1x16x4xf32>,
    } else {
    }
    %c1_i32 = arith.constant 1 : i32
    %29 = arith.cmpi eq, %arg1, %c1_i32 : i32
    %30 = arith.extui %29 : i1 to i32
    %c0_i32_21 = arith.constant 0 : i32
    %31 = arith.cmpi ne, %30, %c0_i32_21 : i32
    scf.if %31 {
      %c9 = arith.constant 9 : index
      %c1_79 = arith.constant 1 : index
      %c0_80 = arith.constant 0 : index
      %78 = vector.load %arg10[%c9, %c1_79, %c0_80] : memref<10x18x4xf32, #tpu.memory_space<vmem>>, vector<1x16x4xf32>
      tpu.vector_store %arg10[%c9, %c1_79, %c0_80], %22 {strides = array<i32>} : memref<10x18x4xf32, #tpu.memory_space<vmem>>, vector<1x16x4xf32>,
    } else {
    }
    %c1_i32_22 = arith.constant 1 : i32
    %32 = arith.cmpi slt, %arg1, %c1_i32_22 : i32
    %33 = arith.extui %32 : i1 to i32
    %c0_i32_23 = arith.constant 0 : i32
    %34 = arith.cmpi ne, %33, %c0_i32_23 : i32
    scf.if %34 {
      %c0_79 = arith.constant 0 : index
      %c0_80 = arith.constant 0 : index
      %c0_81 = arith.constant 0 : index
      %c0_82 = arith.constant 0 : index
      %78 = vector.load %arg4[%c0_79, %c0_80, %c0_81, %c0_82] : memref<1x1x16x4xf32, #tpu.memory_space<vmem>>, vector<1x1x16x4xf32>
      %79 = vector.shape_cast %78 : vector<1x1x16x4xf32> to vector<1x16x4xf32>
      %80 = vector.broadcast %1 : vector<1x1x4xf32> to vector<1x16x4xf32>
      %81 = arith.mulf %79, %80 : vector<1x16x4xf32>
      %82 = vector.broadcast %3 : vector<1x1x4xf32> to vector<1x16x4xf32>
      %83 = arith.addf %81, %82 : vector<1x16x4xf32>
      %cst_83 = arith.constant 5.000000e-01 : f32
      %84 = vector.broadcast %cst_83 : f32 to vector<1x16x4xf32>
      %85 = arith.mulf %84, %83 : vector<1x16x4xf32>
      %cst_84 = arith.constant 0.707106769 : f32
      %86 = vector.broadcast %cst_84 : f32 to vector<1x16x4xf32>
      %87 = arith.mulf %83, %86 : vector<1x16x4xf32>
      %88 = math.erf %87 : vector<1x16x4xf32>
      %cst_85 = arith.constant 1.000000e+00 : f32
      %89 = vector.broadcast %cst_85 : f32 to vector<1x16x4xf32>
      %90 = arith.addf %89, %88 : vector<1x16x4xf32>
      %91 = arith.mulf %85, %90 : vector<1x16x4xf32>
      %c9 = arith.constant 9 : index
      %c1_86 = arith.constant 1 : index
      %c0_87 = arith.constant 0 : index
      %92 = vector.load %arg10[%c9, %c1_86, %c0_87] : memref<10x18x4xf32, #tpu.memory_space<vmem>>, vector<1x16x4xf32>
      tpu.vector_store %arg10[%c9, %c1_86, %c0_87], %91 {strides = array<i32>} : memref<10x18x4xf32, #tpu.memory_space<vmem>>, vector<1x16x4xf32>,
    } else {
    }
    %c0_24 = arith.constant 0 : index
    %c0_25 = arith.constant 0 : index
    %c0_26 = arith.constant 0 : index
    %35 = vector.load %arg10[%c0_24, %c0_25, %c0_26] : memref<10x18x4xf32, #tpu.memory_space<vmem>>, vector<10x16x4xf32>
    %c0_27 = arith.constant 0 : index
    %c1_28 = arith.constant 1 : index
    %c0_29 = arith.constant 0 : index
    %36 = vector.load %arg10[%c0_27, %c1_28, %c0_29] : memref<10x18x4xf32, #tpu.memory_space<vmem>>, vector<10x16x4xf32>
    %c0_30 = arith.constant 0 : index
    %c2 = arith.constant 2 : index
    %c0_31 = arith.constant 0 : index
    %37 = vector.load %arg10[%c0_30, %c2, %c0_31] : memref<10x18x4xf32, #tpu.memory_space<vmem>>, vector<10x16x4xf32>
    %38 = tpu.concatenate %35, %36, %37 in 2 : vector<10x16x4xf32>, vector<10x16x4xf32>, vector<10x16x4xf32> -> vector<10x16x12xf32>
    %c0_32 = arith.constant 0 : index
    %c0_33 = arith.constant 0 : index
    %c0_34 = arith.constant 0 : index
    %c0_35 = arith.constant 0 : index
    %39 = vector.load %arg7[%c0_32, %c0_33, %c0_34, %c0_35] : memref<3x3x4x4xf32, #tpu.memory_space<vmem>>, vector<1x1x4x4xf32>
    %40 = vector.shape_cast %39 : vector<1x1x4x4xf32> to vector<4x4xf32>
    %c0_36 = arith.constant 0 : index
    %c1_37 = arith.constant 1 : index
    %c0_38 = arith.constant 0 : index
    %c0_39 = arith.constant 0 : index
    %41 = vector.load %arg7[%c0_36, %c1_37, %c0_38, %c0_39] : memref<3x3x4x4xf32, #tpu.memory_space<vmem>>, vector<1x1x4x4xf32>
    %42 = vector.shape_cast %41 : vector<1x1x4x4xf32> to vector<4x4xf32>
    %c0_40 = arith.constant 0 : index
    %c2_41 = arith.constant 2 : index
    %c0_42 = arith.constant 0 : index
    %c0_43 = arith.constant 0 : index
    %43 = vector.load %arg7[%c0_40, %c2_41, %c0_42, %c0_43] : memref<3x3x4x4xf32, #tpu.memory_space<vmem>>, vector<1x1x4x4xf32>
    %44 = vector.shape_cast %43 : vector<1x1x4x4xf32> to vector<4x4xf32>
    %45 = tpu.concatenate %40, %42, %44 in 0 : vector<4x4xf32>, vector<4x4xf32>, vector<4x4xf32> -> vector<12x4xf32>
    %46 = vector.extract_strided_slice %38 {offsets = [0, 0, 0], sizes = [8, 16, 12], strides = [1, 1, 1]} : vector<10x16x12xf32> to vector<8x16x12xf32>
    %47 = vector.shape_cast %46 : vector<8x16x12xf32> to vector<128x12xf32>
    %cst_44 = arith.constant dense<0.000000e+00> : vector<128x4xf32>
    %48 = tpu.matmul %47, %45, %cst_44 {dimension_numbers = #tpu.dot_dimension_numbers<[1], [0], [0], [1], [0, 0, 1, 1], [], []>} : vector<128x12xf32>, vector<12x4xf32>, vector<128x4xf32> -> vector<128x4xf32>
    %c1_45 = arith.constant 1 : index
    %c0_46 = arith.constant 0 : index
    %c0_47 = arith.constant 0 : index
    %c0_48 = arith.constant 0 : index
    %49 = vector.load %arg7[%c1_45, %c0_46, %c0_47, %c0_48] : memref<3x3x4x4xf32, #tpu.memory_space<vmem>>, vector<1x1x4x4xf32>
    %50 = vector.shape_cast %49 : vector<1x1x4x4xf32> to vector<4x4xf32>
    %c1_49 = arith.constant 1 : index
    %c1_50 = arith.constant 1 : index
    %c0_51 = arith.constant 0 : index
    %c0_52 = arith.constant 0 : index
    %51 = vector.load %arg7[%c1_49, %c1_50, %c0_51, %c0_52] : memref<3x3x4x4xf32, #tpu.memory_space<vmem>>, vector<1x1x4x4xf32>
    %52 = vector.shape_cast %51 : vector<1x1x4x4xf32> to vector<4x4xf32>
    %c1_53 = arith.constant 1 : index
    %c2_54 = arith.constant 2 : index
    %c0_55 = arith.constant 0 : index
    %c0_56 = arith.constant 0 : index
    %53 = vector.load %arg7[%c1_53, %c2_54, %c0_55, %c0_56] : memref<3x3x4x4xf32, #tpu.memory_space<vmem>>, vector<1x1x4x4xf32>
    %54 = vector.shape_cast %53 : vector<1x1x4x4xf32> to vector<4x4xf32>
    %55 = tpu.concatenate %50, %52, %54 in 0 : vector<4x4xf32>, vector<4x4xf32>, vector<4x4xf32> -> vector<12x4xf32>
    %56 = vector.extract_strided_slice %38 {offsets = [1, 0, 0], sizes = [8, 16, 12], strides = [1, 1, 1]} : vector<10x16x12xf32> to vector<8x16x12xf32>
    %57 = vector.shape_cast %56 : vector<8x16x12xf32> to vector<128x12xf32>
    %cst_57 = arith.constant dense<0.000000e+00> : vector<128x4xf32>
    %58 = tpu.matmul %57, %55, %cst_57 {dimension_numbers = #tpu.dot_dimension_numbers<[1], [0], [0], [1], [0, 0, 1, 1], [], []>} : vector<128x12xf32>, vector<12x4xf32>, vector<128x4xf32> -> vector<128x4xf32>
    %59 = arith.addf %48, %58 : vector<128x4xf32>
    %c2_58 = arith.constant 2 : index
    %c0_59 = arith.constant 0 : index
    %c0_60 = arith.constant 0 : index
    %c0_61 = arith.constant 0 : index
    %60 = vector.load %arg7[%c2_58, %c0_59, %c0_60, %c0_61] : memref<3x3x4x4xf32, #tpu.memory_space<vmem>>, vector<1x1x4x4xf32>
    %61 = vector.shape_cast %60 : vector<1x1x4x4xf32> to vector<4x4xf32>
    %c2_62 = arith.constant 2 : index
    %c1_63 = arith.constant 1 : index
    %c0_64 = arith.constant 0 : index
    %c0_65 = arith.constant 0 : index
    %62 = vector.load %arg7[%c2_62, %c1_63, %c0_64, %c0_65] : memref<3x3x4x4xf32, #tpu.memory_space<vmem>>, vector<1x1x4x4xf32>
    %63 = vector.shape_cast %62 : vector<1x1x4x4xf32> to vector<4x4xf32>
    %c2_66 = arith.constant 2 : index
    %c2_67 = arith.constant 2 : index
    %c0_68 = arith.constant 0 : index
    %c0_69 = arith.constant 0 : index
    %64 = vector.load %arg7[%c2_66, %c2_67, %c0_68, %c0_69] : memref<3x3x4x4xf32, #tpu.memory_space<vmem>>, vector<1x1x4x4xf32>
    %65 = vector.shape_cast %64 : vector<1x1x4x4xf32> to vector<4x4xf32>
    %66 = tpu.concatenate %61, %63, %65 in 0 : vector<4x4xf32>, vector<4x4xf32>, vector<4x4xf32> -> vector<12x4xf32>
    %67 = vector.extract_strided_slice %38 {offsets = [2, 0, 0], sizes = [8, 16, 12], strides = [1, 1, 1]} : vector<10x16x12xf32> to vector<8x16x12xf32>
    %68 = vector.shape_cast %67 : vector<8x16x12xf32> to vector<128x12xf32>
    %cst_70 = arith.constant dense<0.000000e+00> : vector<128x4xf32>
    %69 = tpu.matmul %68, %66, %cst_70 {dimension_numbers = #tpu.dot_dimension_numbers<[1], [0], [0], [1], [0, 0, 1, 1], [], []>} : vector<128x12xf32>, vector<12x4xf32>, vector<128x4xf32> -> vector<128x4xf32>
    %70 = arith.addf %59, %69 : vector<128x4xf32>
    %71 = vector.shape_cast %70 : vector<128x4xf32> to vector<8x16x4xf32>
    %c0_71 = arith.constant 0 : index
    %c0_72 = arith.constant 0 : index
    %c0_73 = arith.constant 0 : index
    %c0_74 = arith.constant 0 : index
    %72 = vector.load %arg8[%c0_71, %c0_72, %c0_73, %c0_74] : memref<1x8x16x4xf32, #tpu.memory_space<vmem>>, vector<1x8x16x4xf32>
    %73 = vector.shape_cast %72 : vector<1x8x16x4xf32> to vector<8x16x4xf32>
    %74 = arith.addf %71, %73 : vector<8x16x4xf32>
    %c0_75 = arith.constant 0 : index
    %c0_76 = arith.constant 0 : index
    %c0_77 = arith.constant 0 : index
    %c0_78 = arith.constant 0 : index
    %75 = vector.load %arg9[%c0_75, %c0_76, %c0_77, %c0_78] : memref<1x8x16x4xf32, #tpu.memory_space<vmem>>, vector<1x8x16x4xf32>
    %76 = vector.shape_cast %75 : vector<1x8x16x4xf32> to vector<8x16x4xf32>
    %77 = vector.shape_cast %74 : vector<8x16x4xf32> to vector<1x8x16x4xf32>
    tpu.vector_store %arg9[%c0_75, %c0_76, %c0_77, %c0_78], %77 {strides = array<i32>} : memref<1x8x16x4xf32, #tpu.memory_space<vmem>>, vector<1x8x16x4xf32>,
    return
  }
  func.func @transform_0(%arg0: i32, %arg1: i32) -> (i32, i32, i32, i32) {
    %c8_i32 = arith.constant 8 : i32
    %0 = arith.muli %arg1, %c8_i32 : i32
    %c1_i32 = arith.constant 1 : i32
    %1 = arith.subi %0, %c1_i32 : i32
    %c0_i32 = arith.constant 0 : i32
    %2 = arith.maxsi %1, %c0_i32 : i32
    %c0_i32_0 = arith.constant 0 : i32
    %c0_i32_1 = arith.constant 0 : i32
    %c0_i32_2 = arith.constant 0 : i32
    return %arg0, %2, %c0_i32_0, %c0_i32_1 : i32, i32, i32, i32
  }
  func.func @transform_1(%arg0: i32, %arg1: i32) -> (i32, i32, i32, i32) {
    %c0_i32 = arith.constant 0 : i32
    %c0_i32_0 = arith.constant 0 : i32
    %c0_i32_1 = arith.constant 0 : i32
    return %arg0, %arg1, %c0_i32, %c0_i32_0 : i32, i32, i32, i32
  }
  func.func @transform_2(%arg0: i32, %arg1: i32) -> (i32, i32, i32, i32) {
    %c1_i32 = arith.constant 1 : i32
    %0 = arith.addi %arg1, %c1_i32 : i32
    %c8_i32 = arith.constant 8 : i32
    %1 = arith.muli %0, %c8_i32 : i32
    %c15_i32 = arith.constant 15 : i32
    %2 = arith.minsi %1, %c15_i32 : i32
    %c0_i32 = arith.constant 0 : i32
    %c0_i32_0 = arith.constant 0 : i32
    %c0_i32_1 = arith.constant 0 : i32
    return %arg0, %2, %c0_i32, %c0_i32_0 : i32, i32, i32, i32
  }
  func.func @transform_3(%arg0: i32, %arg1: i32) -> (i32, i32) {
    %c0_i32 = arith.constant 0 : i32
    %c0_i32_0 = arith.constant 0 : i32
    %c0_i32_1 = arith.constant 0 : i32
    return %c0_i32, %c0_i32_0 : i32, i32
  }
  func.func @transform_4(%arg0: i32, %arg1: i32) -> (i32, i32) {
    %c0_i32 = arith.constant 0 : i32
    %c0_i32_0 = arith.constant 0 : i32
    %c0_i32_1 = arith.constant 0 : i32
    return %c0_i32, %c0_i32_0 : i32, i32
  }
  func.func @transform_5(%arg0: i32, %arg1: i32) -> (i32, i32, i32, i32) {
    %c0_i32 = arith.constant 0 : i32
    %c0_i32_0 = arith.constant 0 : i32
    %c0_i32_1 = arith.constant 0 : i32
    %c0_i32_2 = arith.constant 0 : i32
    %c0_i32_3 = arith.constant 0 : i32
    return %c0_i32, %c0_i32_0, %c0_i32_1, %c0_i32_2 : i32, i32, i32, i32
  }
  func.func @transform_6(%arg0: i32, %arg1: i32) -> (i32, i32, i32, i32) {
    %c0_i32 = arith.constant 0 : i32
    %c0_i32_0 = arith.constant 0 : i32
    %c0_i32_1 = arith.constant 0 : i32
    return %arg0, %arg1, %c0_i32, %c0_i32_0 : i32, i32, i32, i32
  }
  func.func @transform_7(%arg0: i32, %arg1: i32) -> (i32, i32, i32, i32) {
    %c0_i32 = arith.constant 0 : i32
    %c0_i32_0 = arith.constant 0 : i32
    %c0_i32_1 = arith.constant 0 : i32
    return %arg0, %arg1, %c0_i32, %c0_i32_0 : i32, i32, i32, i32
  }
}

</mosaic_0001>

<llo_original>
// kernel: basic_block_forward.3
$region0: #{basic_block_forward.3}
  #allocation0 [shape = 'u32[]', space=smem, size = 0x4, offset = 0x4, fixed_abs, tag = 'smem constant byte address 0x4 - core index']
  #allocation1 [shape = 'u32[144,128]{1,0:T(1,128)}', space=vmem, size = 0x12000, scoped, tag = 'internal scratch']
  %s0 = inlined_call_operand.vmem [shape: f32[512,4], index: 0, kind: input, shape index: {}]
  %s1 = inlined_call_operand.vmem [shape: f32[1,4], index: 1, kind: input, shape index: {}]
  %s2 = inlined_call_operand.vmem [shape: f32[1,4], index: 2, kind: input, shape index: {}]
  %s3 = inlined_call_operand.vmem [shape: f32[1,4], index: 3, kind: output, shape index: {0}]
  %s4 = inlined_call_operand.vmem [shape: f32[1,4], index: 4, kind: output, shape index: {1}]
  %5 = xla_tuple %s3, %s4
  %s6 = sld [smem:[#allocation0]]
  $region61: #{basic_block_forward.3} parent=0
    _
  %s8 = ssub.s32 1, %s6
  %s9 = scalar_select 0, %s8, %s6
  loop: start=0, step=1, limit=4
  $region2: #{basic_block_forward.3} parent=0 // loop_pre_header
    _
  $region3: #{basic_block_forward.3} parent=0 // loop_header
    %s11 = sphi 0, %s15
    %p12 = scmp.ge.s32.totalorder %s11, 4
    %s21 = sphi 0, %s23
    %s24 = sphi 0, %s21
    %s25 = sphi 0, %s24
    %s41 = sphi 0, %s25
    %s45 = sphi 0, %s45
    %s47 = sphi 0, %s45
    %s48 = sphi 0, %s47
    %s62 = sphi 0, %s48
    %s66 = sphi 0, %s66
    %s68 = sphi 0, %s66
    %s69 = sphi 0, %s68
    %s83 = sphi 0, %s69
    %s87 = sphi 0, %s87
    %s89 = sphi 0, %s87
    %s90 = sphi 0, %s89
    %s104 = sphi 0, %s90
    %s108 = sphi 0, %s108
    %s110 = sphi 0, %s108
    %s111 = sphi 0, %s110
    %s125 = sphi 0, %s111
  $region4: #{basic_block_forward.3} parent=0 // loop_header_branch
    %14 = sbr.rel (%p12) target = $region8
  $region5: #{basic_block_forward.3} parent=0 // loop_body
    %s16 = ssub.s32 %s11, 1
    %s17 = ssub.s32 %s11, 2
    %s18 = sadd.s32 %s11, 1
    %s19 = ssub.s32 %s11, %s18
    %p20 = scmp.eq.s32.totalorder %s19, 0
    %s22 = sadd.s32 %s21, 1
    %s23 = scalar_select %p20, %s21, %s22
    %p26 = pneg %p20
    %p27 = scmp.eq.s32.totalorder %s11, 1
    %p28 = por %p26, %p27
    %p29 = scmp.ne.s32.totalorder %s21, %s24
    %p30 = scmp.eq.s32.totalorder %s11, 0
    %p31 = por %p29, %p30
    %p32 = scmp.ne.s32.totalorder %s21, %s24
    %p33 = scmp.eq.s32.totalorder %s16, 1
    %p34 = por %p32, %p33
    %p35 = scmp.ne.s32.totalorder %s24, %s25
    %p36 = scmp.eq.s32.totalorder %s16, 0
    %p37 = por %p35, %p36
    %p38 = scmp.ne.s32.totalorder %s24, %s25
    %p39 = scmp.eq.s32.totalorder %s17, 1
    %p40 = por %p38, %p39
    %p42 = scmp.ne.s32.totalorder %s25, %s41
    %p43 = scmp.eq.s32.totalorder %s17, 0
    %p44 = por %p42, %p43
    %s46 = sadd.s32 %s45, 1
    %p49 = scmp.eq.s32.totalorder %s11, 1
    %p50 = scmp.ne.s32.totalorder %s45, %s47
    %p51 = scmp.eq.s32.totalorder %s11, 0
    %p52 = por %p50, %p51
    %p53 = scmp.ne.s32.totalorder %s45, %s47
    %p54 = scmp.eq.s32.totalorder %s16, 1
    %p55 = por %p53, %p54
    %p56 = scmp.ne.s32.totalorder %s47, %s48
    %p57 = scmp.eq.s32.totalorder %s16, 0
    %p58 = por %p56, %p57
    %p59 = scmp.ne.s32.totalorder %s47, %s48
    %p60 = scmp.eq.s32.totalorder %s17, 1
    %p61 = por %p59, %p60
    %p63 = scmp.ne.s32.totalorder %s48, %s62
    %p64 = scmp.eq.s32.totalorder %s17, 0
    %p65 = por %p63, %p64
    %s67 = sadd.s32 %s66, 1
    %p70 = scmp.eq.s32.totalorder %s11, 1
    %p71 = scmp.ne.s32.totalorder %s66, %s68
    %p72 = scmp.eq.s32.totalorder %s11, 0
    %p73 = por %p71, %p72
    %p74 = scmp.ne.s32.totalorder %s66, %s68
    %p75 = scmp.eq.s32.totalorder %s16, 1
    %p76 = por %p74, %p75
    %p77 = scmp.ne.s32.totalorder %s68, %s69
    %p78 = scmp.eq.s32.totalorder %s16, 0
    %p79 = por %p77, %p78
    %p80 = scmp.ne.s32.totalorder %s68, %s69
    %p81 = scmp.eq.s32.totalorder %s17, 1
    %p82 = por %p80, %p81
    %p84 = scmp.ne.s32.totalorder %s69, %s83
    %p85 = scmp.eq.s32.totalorder %s17, 0
    %p86 = por %p84, %p85
    %s88 = sadd.s32 %s87, 1
    %p91 = scmp.eq.s32.totalorder %s11, 1
    %p92 = scmp.ne.s32.totalorder %s87, %s89
    %p93 = scmp.eq.s32.totalorder %s11, 0
    %p94 = por %p92, %p93
    %p95 = scmp.ne.s32.totalorder %s87, %s89
    %p96 = scmp.eq.s32.totalorder %s16, 1
    %p97 = por %p95, %p96
    %p98 = scmp.ne.s32.totalorder %s89, %s90
    %p99 = scmp.eq.s32.totalorder %s16, 0
    %p100 = por %p98, %p99
    %p101 = scmp.ne.s32.totalorder %s89, %s90
    %p102 = scmp.eq.s32.totalorder %s17, 1
    %p103 = por %p101, %p102
    %p105 = scmp.ne.s32.totalorder %s90, %s104
    %p106 = scmp.eq.s32.totalorder %s17, 0
    %p107 = por %p105, %p106
    %s109 = sadd.s32 %s108, 1
    %p112 = scmp.eq.s32.totalorder %s11, 1
    %p113 = scmp.ne.s32.totalorder %s108, %s110
    %p114 = scmp.eq.s32.totalorder %s11, 0
    %p115 = por %p113, %p114
    %p116 = scmp.ne.s32.totalorder %s108, %s110
    %p117 = scmp.eq.s32.totalorder %s16, 1
    %p118 = por %p116, %p117
    %p119 = scmp.ne.s32.totalorder %s110, %s111
    %p120 = scmp.eq.s32.totalorder %s16, 0
    %p121 = por %p119, %p120
    %p122 = scmp.ne.s32.totalorder %s110, %s111
    %p123 = scmp.eq.s32.totalorder %s17, 1
    %p124 = por %p122, %p123
    %p126 = scmp.ne.s32.totalorder %s111, %s125
    %p127 = scmp.eq.s32.totalorder %s17, 0
    %p128 = por %p126, %p127
    %p129 = scmp.le.s32.totalorder 1, %s11
    %p130 = scmp.lt.s32.totalorder %s11, 3
    %p131 = pnand %p129, %p130
    %p132 = pneg %p131
    // Predicated region
    $region9: #{basic_block_forward.3} parent=5 // pred_check
      _
    $region10: #{basic_block_forward.3} parent=5 // pred_check_branch
      %134 = sbr.rel (%p131) target = $region12
    $region11: #{basic_block_forward.3} parent=5 // pred_region
      %s135 = ssub.s32 %s11, 1
      // Predicated region
      $region13: #{basic_block_forward.3} parent=11 // pred_check
        %p136 = pneg %p58
      $region14: #{basic_block_forward.3} parent=11 // pred_check_branch
        %138 = sbr.rel (%p136) target = $region16
      $region15: #{basic_block_forward.3} parent=11 // pred_region
        _
      $region16: #{basic_block_forward.3} parent=11 // pred_fallthru
        _
      // Predicated region
      $region17: #{basic_block_forward.3} parent=11 // pred_check
        %p139 = pneg %p79
      $region18: #{basic_block_forward.3} parent=11 // pred_check_branch
        %141 = sbr.rel (%p139) target = $region20
      $region19: #{basic_block_forward.3} parent=11 // pred_region
        _
      $region20: #{basic_block_forward.3} parent=11 // pred_fallthru
        _
    $region12: #{basic_block_forward.3} parent=5 // pred_fallthru
      _
    %p142 = scmp.lt.s32.totalorder %s11, 2
    // Predicated region
    $region21: #{basic_block_forward.3} parent=5 // pred_check
      %p143 = pneg %p142
    $region22: #{basic_block_forward.3} parent=5 // pred_check_branch
      %145 = sbr.rel (%p143) target = $region24
    $region23: #{basic_block_forward.3} parent=5 // pred_region
      // Predicated region
      $region25: #{basic_block_forward.3} parent=23 // pred_check
        %p146 = pneg %p31
      $region26: #{basic_block_forward.3} parent=23 // pred_check_branch
        %148 = sbr.rel (%p146) target = $region28
      $region27: #{basic_block_forward.3} parent=23 // pred_region
        %s149 = smul.u32 32, %s11
        %p150 = scmp.lt.s32.totalorder %s149, 63
        %s151 = scalar_select %p150, %s149, 63
        %s152 = smul.addr %s151, 8
        %s153 = scalar_lea.vmem %s0, %s152
        %s154 = smul.u32 32, %s11
      $region28: #{basic_block_forward.3} parent=23 // pred_fallthru
        _
    $region24: #{basic_block_forward.3} parent=5 // pred_fallthru
      _
    %p155 = scmp.le.s32.totalorder 1, %s11
    %p156 = scmp.lt.s32.totalorder %s11, 3
    %p157 = pnand %p155, %p156
    %p158 = pneg %p157
    // Predicated region
    $region29: #{basic_block_forward.3} parent=5 // pred_check
      _
    $region30: #{basic_block_forward.3} parent=5 // pred_check_branch
      %160 = sbr.rel (%p157) target = $region32
    $region31: #{basic_block_forward.3} parent=5 // pred_region
      %s161 = ssub.s32 %s11, 1
      %s162 = smul.u32 32, %s16
      %p163 = scmp.lt.s32.totalorder %s162, 63
      %s164 = scalar_select %p163, %s162, 63
      %s165 = smul.addr %s164, 8
      %s166 = scalar_lea.vmem %s0, %s165
      %p167 = pneg %p37
      %p168 = pneg %p34
      %p169 = pneg %p58
      %p170 = pneg %p55
      %p171 = pneg %p79
      %p172 = pneg %p76
      %p173 = pneg %p100
      %p174 = pneg %p97
      %p175 = pneg %p121
      %p176 = pneg %p118
      %s177 = smul.u32 32, %s16
      %p178 = scmp.lt.s32.totalorder %s177, 63
      %s179 = scalar_select %p178, %s177, 63
      %s180 = smul.addr %s179, 8
      %s181 = scalar_lea.vmem %s0, %s180
      %s182 = smul.u32 32, %s16
      %p183 = scmp.eq.s32.totalorder %s16, 0
      // Predicated region
      $region33: #{basic_block_forward.3} parent=31 // pred_check
        %p184 = pneg %p183
      $region34: #{basic_block_forward.3} parent=31 // pred_check_branch
        %186 = sbr.rel (%p184) target = $region36
      $region35: #{basic_block_forward.3} parent=31 // pred_region
        %vm187 = vcmask 24576
        %188 = vst.msk [vmem:[%s3] sm:$0x1] %vm187, 0.0
        %189 = vst.msk [vmem:[%s4] sm:$0x1] %vm187, 0.0
      $region36: #{basic_block_forward.3} parent=31 // pred_fallthru
        _
      %v190 = vld [vmem:[%s181] sm:$0xff]
      %v191 = vld [vmem:[%s181 + $0x8] sm:$0xff]
      %v192 = vld [vmem:[%s181 + $0x10] sm:$0xff]
      %v193 = vld [vmem:[%s181 + $0x18] sm:$0xff]
      %v194 = vld [vmem:[%s181 + $0x20] sm:$0xff]
      %v195 = vld [vmem:[%s181 + $0x28] sm:$0xff]
      %v196 = vld [vmem:[%s181 + $0x30] sm:$0xff]
      %v197 = vld [vmem:[%s181 + $0x38] sm:$0xff]
      %v198 = vld [vmem:[%s181 + $0x40] sm:$0xff]
      %v199 = vld [vmem:[%s181 + $0x48] sm:$0xff]
      %v200 = vld [vmem:[%s181 + $0x50] sm:$0xff]
      %v201 = vld [vmem:[%s181 + $0x58] sm:$0xff]
      %v202 = vld [vmem:[%s181 + $0x60] sm:$0xff]
      %v203 = vld [vmem:[%s181 + $0x68] sm:$0xff]
      %v204 = vld [vmem:[%s181 + $0x70] sm:$0xff]
      %v205 = vld [vmem:[%s181 + $0x78] sm:$0xff]
      %v206 = vld [vmem:[%s181 + $0x80] sm:$0xff]
      %v207 = vld [vmem:[%s181 + $0x88] sm:$0xff]
      %v208 = vld [vmem:[%s181 + $0x90] sm:$0xff]
      %v209 = vld [vmem:[%s181 + $0x98] sm:$0xff]
      %v210 = vld [vmem:[%s181 + $0xa0] sm:$0xff]
      %v211 = vld [vmem:[%s181 + $0xa8] sm:$0xff]
      %v212 = vld [vmem:[%s181 + $0xb0] sm:$0xff]
      %v213 = vld [vmem:[%s181 + $0xb8] sm:$0xff]
      %v214 = vld [vmem:[%s181 + $0xc0] sm:$0xff]
      %v215 = vld [vmem:[%s181 + $0xc8] sm:$0xff]
      %v216 = vld [vmem:[%s181 + $0xd0] sm:$0xff]
      %v217 = vld [vmem:[%s181 + $0xd8] sm:$0xff]
      %v218 = vld [vmem:[%s181 + $0xe0] sm:$0xff]
      %v219 = vld [vmem:[%s181 + $0xe8] sm:$0xff]
      %v220 = vld [vmem:[%s181 + $0xf0] sm:$0xff]
      %v221 = vld [vmem:[%s181 + $0xf8] sm:$0xff]
      %v222 = vld [vmem:[%s3] sm:$0x1]
      %vm223 = vcmask 31744
      %v224 = vsel %vm223, %v190, 0.0
      %v225 = vsel %vm223, %v191, 0.0
      %v226 = vadd.f32 %v224, %v225
      %v227 = vsel %vm223, %v192, 0.0
      %v228 = vadd.f32 %v226, %v227
      %v229 = vsel %vm223, %v193, 0.0
      %v230 = vadd.f32 %v228, %v229
      %v231 = vsel %vm223, %v194, 0.0
      %v232 = vadd.f32 %v230, %v231
      %v233 = vsel %vm223, %v195, 0.0
      %v234 = vadd.f32 %v232, %v233
      %v235 = vsel %vm223, %v196, 0.0
      %v236 = vadd.f32 %v234, %v235
      %v237 = vsel %vm223, %v197, 0.0
      %v238 = vadd.f32 %v236, %v237
      %v239 = vsel %vm223, %v198, 0.0
      %v240 = vadd.f32 %v238, %v239
      %v241 = vsel %vm223, %v199, 0.0
      %v242 = vadd.f32 %v240, %v241
      %v243 = vsel %vm223, %v200, 0.0
      %v244 = vadd.f32 %v242, %v243
      %v245 = vsel %vm223, %v201, 0.0
      %v246 = vadd.f32 %v244, %v245
      %v247 = vsel %vm223, %v202, 0.0
      %v248 = vadd.f32 %v246, %v247
      %v249 = vsel %vm223, %v203, 0.0
      %v250 = vadd.f32 %v248, %v249
      %v251 = vsel %vm223, %v204, 0.0
      %v252 = vadd.f32 %v250, %v251
      %v253 = vsel %vm223, %v205, 0.0
      %v254 = vadd.f32 %v252, %v253
      %v255 = vsel %vm223, %v206, 0.0
      %v256 = vadd.f32 %v254, %v255
      %v257 = vsel %vm223, %v207, 0.0
      %v258 = vadd.f32 %v256, %v257
      %v259 = vsel %vm223, %v208, 0.0
      %v260 = vadd.f32 %v258, %v259
      %v261 = vsel %vm223, %v209, 0.0
      %v262 = vadd.f32 %v260, %v261
      %v263 = vsel %vm223, %v210, 0.0
      %v264 = vadd.f32 %v262, %v263
      %v265 = vsel %vm223, %v211, 0.0
      %v266 = vadd.f32 %v264, %v265
      %v267 = vsel %vm223, %v212, 0.0
      %v268 = vadd.f32 %v266, %v267
      %v269 = vsel %vm223, %v213, 0.0
      %v270 = vadd.f32 %v268, %v269
      %v271 = vsel %vm223, %v214, 0.0
      %v272 = vadd.f32 %v270, %v271
      %v273 = vsel %vm223, %v215, 0.0
      %v274 = vadd.f32 %v272, %v273
      %v275 = vsel %vm223, %v216, 0.0
      %v276 = vadd.f32 %v274, %v275
      %v277 = vsel %vm223, %v217, 0.0
      %v278 = vadd.f32 %v276, %v277
      %v279 = vsel %vm223, %v218, 0.0
      %v280 = vadd.f32 %v278, %v279
      %v281 = vsel %vm223, %v219, 0.0
      %v282 = vadd.f32 %v280, %v281
      %v283 = vsel %vm223, %v220, 0.0
      %v284 = vadd.f32 %v282, %v283
      %v285 = vsel %vm223, %v221, 0.0
      %v286 = vadd.f32 %v284, %v285
      %v287 = vrot.slane %v286, 4
      %v288 = vadd.f32 %v286, %v287
      %v289 = vrot.slane %v288, 2
      %v290 = vadd.f32 %v288, %v289
      %v291 = vrot.slane %v290, 1
      %v292 = vadd.f32 %v290, %v291
      %v293 = vadd.f32 %v222, %v292
      %vm294 = vcmask 24576
      %295 = vst.msk [vmem:[%s3] sm:$0x1] %vm294, %v293
      %v296 = vld [vmem:[%s4] sm:$0x1]
      %v297 = vmul.f32 %v190, %v190
      %v298 = vmul.f32 %v191, %v191
      %v299 = vmul.f32 %v192, %v192
      %v300 = vmul.f32 %v193, %v193
      %v301 = vmul.f32 %v194, %v194
      %v302 = vmul.f32 %v195, %v195
      %v303 = vmul.f32 %v196, %v196
      %v304 = vmul.f32 %v197, %v197
      %v305 = vmul.f32 %v198, %v198
      %v306 = vmul.f32 %v199, %v199
      %v307 = vmul.f32 %v200, %v200
      %v308 = vmul.f32 %v201, %v201
      %v309 = vmul.f32 %v202, %v202
      %v310 = vmul.f32 %v203, %v203
      %v311 = vmul.f32 %v204, %v204
      %v312 = vmul.f32 %v205, %v205
      %v313 = vmul.f32 %v206, %v206
      %v314 = vmul.f32 %v207, %v207
      %v315 = vmul.f32 %v208, %v208
      %v316 = vmul.f32 %v209, %v209
      %v317 = vmul.f32 %v210, %v210
      %v318 = vmul.f32 %v211, %v211
      %v319 = vmul.f32 %v212, %v212
      %v320 = vmul.f32 %v213, %v213
      %v321 = vmul.f32 %v214, %v214
      %v322 = vmul.f32 %v215, %v215
      %v323 = vmul.f32 %v216, %v216
      %v324 = vmul.f32 %v217, %v217
      %v325 = vmul.f32 %v218, %v218
      %v326 = vmul.f32 %v219, %v219
      %v327 = vmul.f32 %v220, %v220
      %v328 = vmul.f32 %v221, %v221
      %v329 = vsel %vm223, %v297, 0.0
      %v330 = vsel %vm223, %v298, 0.0
      %v331 = vadd.f32 %v329, %v330
      %v332 = vsel %vm223, %v299, 0.0
      %v333 = vadd.f32 %v331, %v332
      %v334 = vsel %vm223, %v300, 0.0
      %v335 = vadd.f32 %v333, %v334
      %v336 = vsel %vm223, %v301, 0.0
      %v337 = vadd.f32 %v335, %v336
      %v338 = vsel %vm223, %v302, 0.0
      %v339 = vadd.f32 %v337, %v338
      %v340 = vsel %vm223, %v303, 0.0
      %v341 = vadd.f32 %v339, %v340
      %v342 = vsel %vm223, %v304, 0.0
      %v343 = vadd.f32 %v341, %v342
      %v344 = vsel %vm223, %v305, 0.0
      %v345 = vadd.f32 %v343, %v344
      %v346 = vsel %vm223, %v306, 0.0
      %v347 = vadd.f32 %v345, %v346
      %v348 = vsel %vm223, %v307, 0.0
      %v349 = vadd.f32 %v347, %v348
      %v350 = vsel %vm223, %v308, 0.0
      %v351 = vadd.f32 %v349, %v350
      %v352 = vsel %vm223, %v309, 0.0
      %v353 = vadd.f32 %v351, %v352
      %v354 = vsel %vm223, %v310, 0.0
      %v355 = vadd.f32 %v353, %v354
      %v356 = vsel %vm223, %v311, 0.0
      %v357 = vadd.f32 %v355, %v356
      %v358 = vsel %vm223, %v312, 0.0
      %v359 = vadd.f32 %v357, %v358
      %v360 = vsel %vm223, %v313, 0.0
      %v361 = vadd.f32 %v359, %v360
      %v362 = vsel %vm223, %v314, 0.0
      %v363 = vadd.f32 %v361, %v362
      %v364 = vsel %vm223, %v315, 0.0
      %v365 = vadd.f32 %v363, %v364
      %v366 = vsel %vm223, %v316, 0.0
      %v367 = vadd.f32 %v365, %v366
      %v368 = vsel %vm223, %v317, 0.0
      %v369 = vadd.f32 %v367, %v368
      %v370 = vsel %vm223, %v318, 0.0
      %v371 = vadd.f32 %v369, %v370
      %v372 = vsel %vm223, %v319, 0.0
      %v373 = vadd.f32 %v371, %v372
      %v374 = vsel %vm223, %v320, 0.0
      %v375 = vadd.f32 %v373, %v374
      %v376 = vsel %vm223, %v321, 0.0
      %v377 = vadd.f32 %v375, %v376
      %v378 = vsel %vm223, %v322, 0.0
      %v379 = vadd.f32 %v377, %v378
      %v380 = vsel %vm223, %v323, 0.0
      %v381 = vadd.f32 %v379, %v380
      %v382 = vsel %vm223, %v324, 0.0
      %v383 = vadd.f32 %v381, %v382
      %v384 = vsel %vm223, %v325, 0.0
      %v385 = vadd.f32 %v383, %v384
      %v386 = vsel %vm223, %v326, 0.0
      %v387 = vadd.f32 %v385, %v386
      %v388 = vsel %vm223, %v327, 0.0
      %v389 = vadd.f32 %v387, %v388
      %v390 = vsel %vm223, %v328, 0.0
      %v391 = vadd.f32 %v389, %v390
      %v392 = vrot.slane %v391, 4
      %v393 = vadd.f32 %v391, %v392
      %v394 = vrot.slane %v393, 2
      %v395 = vadd.f32 %v393, %v394
      %v396 = vrot.slane %v395, 1
      %v397 = vadd.f32 %v395, %v396
      %v398 = vadd.f32 %v296, %v397
      %399 = vst.msk [vmem:[%s4] sm:$0x1] %vm294, %v398
      %p400 = scmp.eq.s32.totalorder %s16, 1
      // Predicated region
      $region37: #{basic_block_forward.3} parent=31 // pred_check
        %p401 = pneg %p400
      $region38: #{basic_block_forward.3} parent=31 // pred_check_branch
        %403 = sbr.rel (%p401) target = $region40
      $region39: #{basic_block_forward.3} parent=31 // pred_region
        %v404 = vld [vmem:[%s3] sm:$0x1]
        %v405 = vrcp.pop 512.0
        %v406 = vmul.f32 %v404, %v405
        %v407 = vld [vmem:[%s4] sm:$0x1]
        %v408 = vmul.f32 %v407, %v405
        %v409 = vmul.f32 %v406, %v406
        %v410 = vsub.f32 %v408, %v409
        %v411 = vmax.f32 %v410, 0.0
        %v412 = vadd.f32 %v411, 1e-05
        %v413 = vrsqrt.pop %v412
        %v414 = vld [vmem:[%s1] sm:$0x1]
        %v415 = vmul.f32 %v414, %v413
        %416 = vst.msk [vmem:[%s3] sm:$0x1] %vm294, %v415
        %v417 = vld [vmem:[%s2] sm:$0x1]
        %v418 = vmul.f32 %v406, %v415
        %v419 = vsub.f32 %v417, %v418
        %420 = vst.msk [vmem:[%s4] sm:$0x1] %vm294, %v419
      $region40: #{basic_block_forward.3} parent=31 // pred_fallthru
        _
      // Predicated region
      $region41: #{basic_block_forward.3} parent=31 // pred_check
        %p421 = pneg %p97
      $region42: #{basic_block_forward.3} parent=31 // pred_check_branch
        %423 = sbr.rel (%p421) target = $region44
      $region43: #{basic_block_forward.3} parent=31 // pred_region
        _
      $region44: #{basic_block_forward.3} parent=31 // pred_fallthru
        _
      // Predicated region
      $region45: #{basic_block_forward.3} parent=31 // pred_check
        %p424 = pneg %p118
      $region46: #{basic_block_forward.3} parent=31 // pred_check_branch
        %426 = sbr.rel (%p424) target = $region48
      $region47: #{basic_block_forward.3} parent=31 // pred_region
        _
      $region48: #{basic_block_forward.3} parent=31 // pred_fallthru
        _
      // Predicated region
      $region49: #{basic_block_forward.3} parent=31 // pred_check
        %p427 = pneg %p97
      $region50: #{basic_block_forward.3} parent=31 // pred_check_branch
        %429 = sbr.rel (%p427) target = $region52
      $region51: #{basic_block_forward.3} parent=31 // pred_region
        _
      $region52: #{basic_block_forward.3} parent=31 // pred_fallthru
        _
      // Predicated region
      $region53: #{basic_block_forward.3} parent=31 // pred_check
        %p430 = pneg %p118
      $region54: #{basic_block_forward.3} parent=31 // pred_check_branch
        %432 = sbr.rel (%p430) target = $region56
      $region55: #{basic_block_forward.3} parent=31 // pred_region
        _
      $region56: #{basic_block_forward.3} parent=31 // pred_fallthru
        _
    $region32: #{basic_block_forward.3} parent=5 // pred_fallthru
      _
    %p433 = scmp.le.s32.totalorder 2, %s11
    // Predicated region
    $region57: #{basic_block_forward.3} parent=5 // pred_check
      %p434 = pneg %p433
    $region58: #{basic_block_forward.3} parent=5 // pred_check_branch
      %436 = sbr.rel (%p434) target = $region60
    $region59: #{basic_block_forward.3} parent=5 // pred_region
      %s437 = ssub.s32 %s11, 2
    $region60: #{basic_block_forward.3} parent=5 // pred_fallthru
      _
  $region6: #{basic_block_forward.3} parent=0 // loop_footer
    %s15 = sadd.s32 1, %s11
  $region7: #{basic_block_forward.3} parent=0 // loop_footer_branch
    %10 = sbr.rel target = $region3
  $region8: #{basic_block_forward.3} parent=0 // loop_exit
    _

// kernel: basic_block_forward.4
$region0: #{basic_block_forward.4}
  #allocation0 [shape = 'u32[]', space=smem, size = 0x4, offset = 0x4, fixed_abs, tag = 'smem constant byte address 0x4 - core index']
  #allocation1 [shape = 'u32[144,128]{1,0:T(1,128)}', space=vmem, size = 0x12000, scoped, tag = 'internal scratch']
  #allocation2 [shape = 'f32[10,18,4]{2,1,0:T(8,128)}', space=vmem, size = 0x1e000, scoped, tag = 'scratch operand']
  %s0 = inlined_call_operand.vmem [shape: f32[2,16,16,4], index: 0, kind: input, shape index: {}, may-alias: {0,1,2}]
  %s1 = inlined_call_operand.vmem [shape: f32[2,16,16,4], index: 1, kind: input, shape index: {}, may-alias: {0,1,2}]
  %s2 = inlined_call_operand.vmem [shape: f32[2,16,16,4], index: 2, kind: input, shape index: {}, may-alias: {0,1,2}]
  %s3 = inlined_call_operand.vmem [shape: f32[1,4], index: 3, kind: input, shape index: {}]
  %s4 = inlined_call_operand.vmem [shape: f32[1,4], index: 4, kind: input, shape index: {}]
  %s5 = inlined_call_operand.vmem [shape: f32[3,3,4,4], index: 5, kind: input, shape index: {}]
  %s6 = inlined_call_operand.vmem [shape: f32[2,16,16,4], index: 6, kind: output, shape index: {0}]
  %s7 = inlined_call_operand.vmem [shape: f32[2,2,2,4], index: 7, kind: output, shape index: {1}]
  %8 = xla_tuple %s6, %s7
  %s9 = sld [smem:[#allocation0]]
  $region81: #{basic_block_forward.4} parent=0
    _
  %s11 = ssub.s32 1, %s9
  %s12 = scalar_select 0, %s11, %s9
  loop: start=0, step=1, limit=6
  $region2: #{basic_block_forward.4} parent=0 // loop_pre_header
    _
  $region3: #{basic_block_forward.4} parent=0 // loop_header
    %s14 = sphi 0, %s18
    %p15 = scmp.ge.s32.totalorder %s14, 6
    %s21 = sphi 0, %s33
    %s22 = sphi 0, %s29
    %s23 = sphi 0, %s21
    %s24 = sphi 0, %s22
    %s25 = sphi 0, %s23
    %s26 = sphi 0, %s24
    %s46 = sphi 0, %s48
    %s49 = sphi 0, %s46
    %s50 = sphi 0, %s49
    %s66 = sphi 0, %s50
    %s74 = sphi 0, %s76
    %s77 = sphi 0, %s74
    %s78 = sphi 0, %s77
    %s94 = sphi 0, %s78
    %s110 = sphi 0, %s112
    %s113 = sphi 0, %s110
    %s114 = sphi 0, %s113
    %s130 = sphi 0, %s114
    %s134 = sphi 0, %s134
    %s136 = sphi 0, %s134
    %s137 = sphi 0, %s136
    %s151 = sphi 0, %s137
    %s155 = sphi 0, %s155
    %s157 = sphi 0, %s155
    %s158 = sphi 0, %s157
    %s172 = sphi 0, %s158
    %s176 = sphi 0, %s176
    %s178 = sphi 0, %s176
    %s179 = sphi 0, %s178
    %s193 = sphi 0, %s179
    %s201 = sphi 0, %s203
    %s204 = sphi 0, %s201
    %s205 = sphi 0, %s204
    %s221 = sphi 0, %s205
    %s229 = sphi 0, %s231
    %s232 = sphi 0, %s229
    %s233 = sphi 0, %s232
    %s249 = sphi 0, %s233
  $region4: #{basic_block_forward.4} parent=0 // loop_header_branch
    %17 = sbr.rel (%p15) target = $region8
  $region5: #{basic_block_forward.4} parent=0 // loop_body
    %s19 = ssub.s32 %s14, 1
    %s20 = ssub.s32 %s14, 2
    %s27 = sadd.s32 1, %s22
    %p28 = scmp.ge.s32.totalorder %s27, 2
    %s29 = scalar_select %p28, 0, %s27
    %s30 = sadd.s32 1, %s21
    %s31 = scalar_select %p28, %s30, %s21
    %p32 = scmp.ge.s32.totalorder %s31, 2
    %s33 = scalar_select %p32, 0, %s31
    %s34 = smul.u32 %s22, 8
    %s35 = ssub.s32 %s34, 1
    %p36 = scmp.gt.s32.totalorder %s35, 0
    %s37 = scalar_select %p36, %s35, 0
    %s38 = smul.u32 %s29, 8
    %s39 = ssub.s32 %s38, 1
    %p40 = scmp.gt.s32.totalorder %s39, 0
    %s41 = scalar_select %p40, %s39, 0
    %s42 = ssub.s32 %s21, %s33
    %s43 = ssub.s32 %s37, %s41
    %s44 = sor.u32 %s42, %s43
    %p45 = scmp.eq.s32.totalorder %s44, 0
    %s47 = sadd.s32 %s46, 1
    %s48 = scalar_select %p45, %s46, %s47
    %p51 = pneg %p45
    %p52 = scmp.eq.s32.totalorder %s14, 3
    %p53 = por %p51, %p52
    %p54 = scmp.ne.s32.totalorder %s46, %s49
    %p55 = scmp.eq.s32.totalorder %s14, 0
    %p56 = por %p54, %p55
    %p57 = scmp.ne.s32.totalorder %s46, %s49
    %p58 = scmp.eq.s32.totalorder %s19, 3
    %p59 = por %p57, %p58
    %p60 = scmp.ne.s32.totalorder %s49, %s50
    %p61 = scmp.eq.s32.totalorder %s19, 0
    %p62 = por %p60, %p61
    %p63 = scmp.ne.s32.totalorder %s49, %s50
    %p64 = scmp.eq.s32.totalorder %s20, 3
    %p65 = por %p63, %p64
    %p67 = scmp.ne.s32.totalorder %s50, %s66
    %p68 = scmp.eq.s32.totalorder %s20, 0
    %p69 = por %p67, %p68
    %s70 = ssub.s32 %s21, %s33
    %s71 = ssub.s32 %s22, %s29
    %s72 = sor.u32 %s70, %s71
    %p73 = scmp.eq.s32.totalorder %s72, 0
    %s75 = sadd.s32 %s74, 1
    %s76 = scalar_select %p73, %s74, %s75
    %p79 = pneg %p73
    %p80 = scmp.eq.s32.totalorder %s14, 3
    %p81 = por %p79, %p80
    %p82 = scmp.ne.s32.totalorder %s74, %s77
    %p83 = scmp.eq.s32.totalorder %s14, 0
    %p84 = por %p82, %p83
    %p85 = scmp.ne.s32.totalorder %s74, %s77
    %p86 = scmp.eq.s32.totalorder %s19, 3
    %p87 = por %p85, %p86
    %p88 = scmp.ne.s32.totalorder %s77, %s78
    %p89 = scmp.eq.s32.totalorder %s19, 0
    %p90 = por %p88, %p89
    %p91 = scmp.ne.s32.totalorder %s77, %s78
    %p92 = scmp.eq.s32.totalorder %s20, 3
    %p93 = por %p91, %p92
    %p95 = scmp.ne.s32.totalorder %s78, %s94
    %p96 = scmp.eq.s32.totalorder %s20, 0
    %p97 = por %p95, %p96
    %s98 = sadd.s32 %s22, 1
    %s99 = smul.u32 %s98, 8
    %p100 = scmp.lt.s32.totalorder %s99, 15
    %s101 = scalar_select %p100, %s99, 15
    %s102 = sadd.s32 %s29, 1
    %s103 = smul.u32 %s102, 8
    %p104 = scmp.lt.s32.totalorder %s103, 15
    %s105 = scalar_select %p104, %s103, 15
    %s106 = ssub.s32 %s21, %s33
    %s107 = ssub.s32 %s101, %s105
    %s108 = sor.u32 %s106, %s107
    %p109 = scmp.eq.s32.totalorder %s108, 0
    %s111 = sadd.s32 %s110, 1
    %s112 = scalar_select %p109, %s110, %s111
    %p115 = pneg %p109
    %p116 = scmp.eq.s32.totalorder %s14, 3
    %p117 = por %p115, %p116
    %p118 = scmp.ne.s32.totalorder %s110, %s113
    %p119 = scmp.eq.s32.totalorder %s14, 0
    %p120 = por %p118, %p119
    %p121 = scmp.ne.s32.totalorder %s110, %s113
    %p122 = scmp.eq.s32.totalorder %s19, 3
    %p123 = por %p121, %p122
    %p124 = scmp.ne.s32.totalorder %s113, %s114
    %p125 = scmp.eq.s32.totalorder %s19, 0
    %p126 = por %p124, %p125
    %p127 = scmp.ne.s32.totalorder %s113, %s114
    %p128 = scmp.eq.s32.totalorder %s20, 3
    %p129 = por %p127, %p128
    %p131 = scmp.ne.s32.totalorder %s114, %s130
    %p132 = scmp.eq.s32.totalorder %s20, 0
    %p133 = por %p131, %p132
    %s135 = sadd.s32 %s134, 1
    %p138 = scmp.eq.s32.totalorder %s14, 3
    %p139 = scmp.ne.s32.totalorder %s134, %s136
    %p140 = scmp.eq.s32.totalorder %s14, 0
    %p141 = por %p139, %p140
    %p142 = scmp.ne.s32.totalorder %s134, %s136
    %p143 = scmp.eq.s32.totalorder %s19, 3
    %p144 = por %p142, %p143
    %p145 = scmp.ne.s32.totalorder %s136, %s137
    %p146 = scmp.eq.s32.totalorder %s19, 0
    %p147 = por %p145, %p146
    %p148 = scmp.ne.s32.totalorder %s136, %s137
    %p149 = scmp.eq.s32.totalorder %s20, 3
    %p150 = por %p148, %p149
    %p152 = scmp.ne.s32.totalorder %s137, %s151
    %p153 = scmp.eq.s32.totalorder %s20, 0
    %p154 = por %p152, %p153
    %s156 = sadd.s32 %s155, 1
    %p159 = scmp.eq.s32.totalorder %s14, 3
    %p160 = scmp.ne.s32.totalorder %s155, %s157
    %p161 = scmp.eq.s32.totalorder %s14, 0
    %p162 = por %p160, %p161
    %p163 = scmp.ne.s32.totalorder %s155, %s157
    %p164 = scmp.eq.s32.totalorder %s19, 3
    %p165 = por %p163, %p164
    %p166 = scmp.ne.s32.totalorder %s157, %s158
    %p167 = scmp.eq.s32.totalorder %s19, 0
    %p168 = por %p166, %p167
    %p169 = scmp.ne.s32.totalorder %s157, %s158
    %p170 = scmp.eq.s32.totalorder %s20, 3
    %p171 = por %p169, %p170
    %p173 = scmp.ne.s32.totalorder %s158, %s172
    %p174 = scmp.eq.s32.totalorder %s20, 0
    %p175 = por %p173, %p174
    %s177 = sadd.s32 %s176, 1
    %p180 = scmp.eq.s32.totalorder %s14, 3
    %p181 = scmp.ne.s32.totalorder %s176, %s178
    %p182 = scmp.eq.s32.totalorder %s14, 0
    %p183 = por %p181, %p182
    %p184 = scmp.ne.s32.totalorder %s176, %s178
    %p185 = scmp.eq.s32.totalorder %s19, 3
    %p186 = por %p184, %p185
    %p187 = scmp.ne.s32.totalorder %s178, %s179
    %p188 = scmp.eq.s32.totalorder %s19, 0
    %p189 = por %p187, %p188
    %p190 = scmp.ne.s32.totalorder %s178, %s179
    %p191 = scmp.eq.s32.totalorder %s20, 3
    %p192 = por %p190, %p191
    %p194 = scmp.ne.s32.totalorder %s179, %s193
    %p195 = scmp.eq.s32.totalorder %s20, 0
    %p196 = por %p194, %p195
    %s197 = ssub.s32 %s21, %s33
    %s198 = ssub.s32 %s22, %s29
    %s199 = sor.u32 %s197, %s198
    %p200 = scmp.eq.s32.totalorder %s199, 0
    %s202 = sadd.s32 %s201, 1
    %s203 = scalar_select %p200, %s201, %s202
    %p206 = pneg %p200
    %p207 = scmp.eq.s32.totalorder %s14, 3
    %p208 = por %p206, %p207
    %p209 = scmp.ne.s32.totalorder %s201, %s204
    %p210 = scmp.eq.s32.totalorder %s14, 0
    %p211 = por %p209, %p210
    %p212 = scmp.ne.s32.totalorder %s201, %s204
    %p213 = scmp.eq.s32.totalorder %s19, 3
    %p214 = por %p212, %p213
    %p215 = scmp.ne.s32.totalorder %s204, %s205
    %p216 = scmp.eq.s32.totalorder %s19, 0
    %p217 = por %p215, %p216
    %p218 = scmp.ne.s32.totalorder %s204, %s205
    %p219 = scmp.eq.s32.totalorder %s20, 3
    %p220 = por %p218, %p219
    %p222 = scmp.ne.s32.totalorder %s205, %s221
    %p223 = scmp.eq.s32.totalorder %s20, 0
    %p224 = por %p222, %p223
    %s225 = ssub.s32 %s21, %s33
    %s226 = ssub.s32 %s22, %s29
    %s227 = sor.u32 %s225, %s226
    %p228 = scmp.eq.s32.totalorder %s227, 0
    %s230 = sadd.s32 %s229, 1
    %s231 = scalar_select %p228, %s229, %s230
    %p234 = pneg %p228
    %p235 = scmp.eq.s32.totalorder %s14, 3
    %p236 = por %p234, %p235
    %p237 = scmp.ne.s32.totalorder %s229, %s232
    %p238 = scmp.eq.s32.totalorder %s14, 0
    %p239 = por %p237, %p238
    %p240 = scmp.ne.s32.totalorder %s229, %s232
    %p241 = scmp.eq.s32.totalorder %s19, 3
    %p242 = por %p240, %p241
    %p243 = scmp.ne.s32.totalorder %s232, %s233
    %p244 = scmp.eq.s32.totalorder %s19, 0
    %p245 = por %p243, %p244
    %p246 = scmp.ne.s32.totalorder %s232, %s233
    %p247 = scmp.eq.s32.totalorder %s20, 3
    %p248 = por %p246, %p247
    %p250 = scmp.ne.s32.totalorder %s233, %s249
    %p251 = scmp.eq.s32.totalorder %s20, 0
    %p252 = por %p250, %p251
    %p253 = scmp.le.s32.totalorder 1, %s14
    %p254 = scmp.lt.s32.totalorder %s14, 5
    %p255 = pnand %p253, %p254
    %p256 = pneg %p255
    // Predicated region
    $region9: #{basic_block_forward.4} parent=5 // pred_check
      _
    $region10: #{basic_block_forward.4} parent=5 // pred_check_branch
      %258 = sbr.rel (%p255) target = $region12
    $region11: #{basic_block_forward.4} parent=5 // pred_region
      %s259 = ssub.s32 %s14, 1
      // Predicated region
      $region13: #{basic_block_forward.4} parent=11 // pred_check
        %p260 = pneg %p147
      $region14: #{basic_block_forward.4} parent=11 // pred_check_branch
        %262 = sbr.rel (%p260) target = $region16
      $region15: #{basic_block_forward.4} parent=11 // pred_region
        _
      $region16: #{basic_block_forward.4} parent=11 // pred_fallthru
        _
      // Predicated region
      $region17: #{basic_block_forward.4} parent=11 // pred_check
        %p263 = pneg %p168
      $region18: #{basic_block_forward.4} parent=11 // pred_check_branch
        %265 = sbr.rel (%p263) target = $region20
      $region19: #{basic_block_forward.4} parent=11 // pred_region
        _
      $region20: #{basic_block_forward.4} parent=11 // pred_fallthru
        _
      // Predicated region
      $region21: #{basic_block_forward.4} parent=11 // pred_check
        %p266 = pneg %p189
      $region22: #{basic_block_forward.4} parent=11 // pred_check_branch
        %268 = sbr.rel (%p266) target = $region24
      $region23: #{basic_block_forward.4} parent=11 // pred_region
        _
      $region24: #{basic_block_forward.4} parent=11 // pred_fallthru
        _
    $region12: #{basic_block_forward.4} parent=5 // pred_fallthru
      _
    %p269 = scmp.lt.s32.totalorder %s14, 4
    // Predicated region
    $region25: #{basic_block_forward.4} parent=5 // pred_check
      %p270 = pneg %p269
    $region26: #{basic_block_forward.4} parent=5 // pred_check_branch
      %272 = sbr.rel (%p270) target = $region28
    $region27: #{basic_block_forward.4} parent=5 // pred_region
      // Predicated region
      $region29: #{basic_block_forward.4} parent=27 // pred_check
        %p273 = pneg %p56
      $region30: #{basic_block_forward.4} parent=27 // pred_check_branch
        %275 = sbr.rel (%p273) target = $region32
      $region31: #{basic_block_forward.4} parent=27 // pred_region
        %s276 = smul.u32 %s22, 8
        %s277 = ssub.s32 %s276, 1
        %p278 = scmp.gt.s32.totalorder %s277, 0
        %s279 = scalar_select %p278, %s277, 0
        %p280 = scmp.lt.s32.totalorder %s21, 1
        %s281 = scalar_select %p280, %s21, 1
        %p282 = scmp.lt.s32.totalorder %s279, 15
        %s283 = scalar_select %p282, %s279, 15
        %s284 = smul.addr %s283, 2
        %s285 = smul.addr %s281, 32
        %s286 = sadd.s32 %s284, %s285
        %s287 = smul.addr %s286, 8
        %s288 = scalar_lea.vmem %s0, %s287
        %s289 = smul.u32 %s22, 8
        %s290 = ssub.s32 %s289, 1
        %p291 = scmp.gt.s32.totalorder %s290, 0
        %s292 = scalar_select %p291, %s290, 0
      $region32: #{basic_block_forward.4} parent=27 // pred_fallthru
        _
      // Predicated region
      $region33: #{basic_block_forward.4} parent=27 // pred_check
        %p293 = pneg %p84
      $region34: #{basic_block_forward.4} parent=27 // pred_check_branch
        %295 = sbr.rel (%p293) target = $region36
      $region35: #{basic_block_forward.4} parent=27 // pred_region
        %s296 = smul.u32 8, %s22
        %p297 = scmp.lt.s32.totalorder %s21, 1
        %s298 = scalar_select %p297, %s21, 1
        %p299 = scmp.lt.s32.totalorder %s296, 15
        %s300 = scalar_select %p299, %s296, 15
        %s301 = smul.addr %s300, 2
        %s302 = smul.addr %s298, 32
        %s303 = sadd.s32 %s301, %s302
        %s304 = smul.addr %s303, 8
        %s305 = scalar_lea.vmem %s1, %s304
        %s306 = smul.u32 8, %s22
      $region36: #{basic_block_forward.4} parent=27 // pred_fallthru
        _
      // Predicated region
      $region37: #{basic_block_forward.4} parent=27 // pred_check
        %p307 = pneg %p120
      $region38: #{basic_block_forward.4} parent=27 // pred_check_branch
        %309 = sbr.rel (%p307) target = $region40
      $region39: #{basic_block_forward.4} parent=27 // pred_region
        %s310 = sadd.s32 %s22, 1
        %s311 = smul.u32 %s310, 8
        %p312 = scmp.lt.s32.totalorder %s311, 15
        %s313 = scalar_select %p312, %s311, 15
        %p314 = scmp.lt.s32.totalorder %s21, 1
        %s315 = scalar_select %p314, %s21, 1
        %p316 = scmp.lt.s32.totalorder %s313, 15
        %s317 = scalar_select %p316, %s313, 15
        %s318 = smul.addr %s317, 2
        %s319 = smul.addr %s315, 32
        %s320 = sadd.s32 %s318, %s319
        %s321 = smul.addr %s320, 8
        %s322 = scalar_lea.vmem %s2, %s321
        %s323 = sadd.s32 %s22, 1
        %s324 = smul.u32 %s323, 8
        %p325 = scmp.lt.s32.totalorder %s324, 15
        %s326 = scalar_select %p325, %s324, 15
      $region40: #{basic_block_forward.4} parent=27 // pred_fallthru
        _
    $region28: #{basic_block_forward.4} parent=5 // pred_fallthru
      _
    %p327 = scmp.le.s32.totalorder 1, %s14
    %p328 = scmp.lt.s32.totalorder %s14, 5
    %p329 = pnand %p327, %p328
    %p330 = pneg %p329
    // Predicated region
    $region41: #{basic_block_forward.4} parent=5 // pred_check
      _
    $region42: #{basic_block_forward.4} parent=5 // pred_check_branch
      %332 = sbr.rel (%p329) target = $region44
    $region43: #{basic_block_forward.4} parent=5 // pred_region
      %s333 = ssub.s32 %s14, 1
      %s334 = smul.u32 %s24, 8
      %s335 = ssub.s32 %s334, 1
      %p336 = scmp.gt.s32.totalorder %s335, 0
      %s337 = scalar_select %p336, %s335, 0
      %p338 = scmp.lt.s32.totalorder %s23, 1
      %s339 = scalar_select %p338, %s23, 1
      %p340 = scmp.lt.s32.totalorder %s337, 15
      %s341 = scalar_select %p340, %s337, 15
      %s342 = smul.addr %s341, 2
      %s343 = smul.addr %s339, 32
      %s344 = sadd.s32 %s342, %s343
      %s345 = smul.addr %s344, 8
      %s346 = scalar_lea.vmem %s0, %s345
      %p347 = pneg %p62
      %p348 = pneg %p59
      %s349 = smul.u32 8, %s24
      %p350 = scmp.lt.s32.totalorder %s23, 1
      %s351 = scalar_select %p350, %s23, 1
      %p352 = scmp.lt.s32.totalorder %s349, 15
      %s353 = scalar_select %p352, %s349, 15
      %s354 = smul.addr %s353, 2
      %s355 = smul.addr %s351, 32
      %s356 = sadd.s32 %s354, %s355
      %s357 = smul.addr %s356, 8
      %s358 = scalar_lea.vmem %s1, %s357
      %p359 = pneg %p90
      %p360 = pneg %p87
      %s361 = sadd.s32 %s24, 1
      %s362 = smul.u32 %s361, 8
      %p363 = scmp.lt.s32.totalorder %s362, 15
      %s364 = scalar_select %p363, %s362, 15
      %p365 = scmp.lt.s32.totalorder %s23, 1
      %s366 = scalar_select %p365, %s23, 1
      %p367 = scmp.lt.s32.totalorder %s364, 15
      %s368 = scalar_select %p367, %s364, 15
      %s369 = smul.addr %s368, 2
      %s370 = smul.addr %s366, 32
      %s371 = sadd.s32 %s369, %s370
      %s372 = smul.addr %s371, 8
      %s373 = scalar_lea.vmem %s2, %s372
      %p374 = pneg %p126
      %p375 = pneg %p123
      %p376 = pneg %p147
      %p377 = pneg %p144
      %p378 = pneg %p168
      %p379 = pneg %p165
      %p380 = pneg %p189
      %p381 = pneg %p186
      %p382 = pneg %p217
      %p383 = pneg %p214
      %s384 = smul.u32 8, %s24
      %p385 = scmp.lt.s32.totalorder %s23, 1
      %s386 = scalar_select %p385, %s23, 1
      %p387 = scmp.lt.s32.totalorder %s384, 15
      %s388 = scalar_select %p387, %s384, 15
      %s389 = smul.addr %s388, 2
      %s390 = smul.addr %s386, 32
      %s391 = sadd.s32 %s389, %s390
      %s392 = smul.addr %s391, 8
      %s393 = scalar_lea.vmem %s6, %s392
      %p394 = pneg %p245
      %p395 = pneg %p242
      %p396 = scmp.lt.s32.totalorder %s23, 1
      %s397 = scalar_select %p396, %s23, 1
      %p398 = scmp.lt.s32.totalorder %s24, 1
      %s399 = scalar_select %p398, %s24, 1
      %s400 = smul.addr %s397, 2
      %s401 = sadd.s32 %s399, %s400
      %s402 = smul.addr %s401, 2
      %s403 = scalar_lea.vmem %s7, %s402
      %s404 = smul.u32 %s24, 8
      %s405 = ssub.s32 %s404, 1
      %p406 = scmp.gt.s32.totalorder %s405, 0
      %s407 = scalar_select %p406, %s405, 0
      %p408 = scmp.lt.s32.totalorder %s23, 1
      %s409 = scalar_select %p408, %s23, 1
      %p410 = scmp.lt.s32.totalorder %s407, 15
      %s411 = scalar_select %p410, %s407, 15
      %s412 = smul.addr %s411, 2
      %s413 = smul.addr %s409, 32
      %s414 = sadd.s32 %s412, %s413
      %s415 = smul.addr %s414, 8
      %s416 = scalar_lea.vmem %s0, %s415
      %s417 = smul.u32 %s24, 8
      %s418 = ssub.s32 %s417, 1
      %p419 = scmp.gt.s32.totalorder %s418, 0
      %s420 = scalar_select %p419, %s418, 0
      %s421 = smul.u32 8, %s24
      %p422 = scmp.lt.s32.totalorder %s23, 1
      %s423 = scalar_select %p422, %s23, 1
      %p424 = scmp.lt.s32.totalorder %s421, 15
      %s425 = scalar_select %p424, %s421, 15
      %s426 = smul.addr %s425, 2
      %s427 = smul.addr %s423, 32
      %s428 = sadd.s32 %s426, %s427
      %s429 = smul.addr %s428, 8
      %s430 = scalar_lea.vmem %s1, %s429
      %s431 = smul.u32 8, %s24
      %s432 = sadd.s32 %s24, 1
      %s433 = smul.u32 %s432, 8
      %p434 = scmp.lt.s32.totalorder %s433, 15
      %s435 = scalar_select %p434, %s433, 15
      %p436 = scmp.lt.s32.totalorder %s23, 1
      %s437 = scalar_select %p436, %s23, 1
      %p438 = scmp.lt.s32.totalorder %s435, 15
      %s439 = scalar_select %p438, %s435, 15
      %s440 = smul.addr %s439, 2
      %s441 = smul.addr %s437, 32
      %s442 = sadd.s32 %s440, %s441
      %s443 = smul.addr %s442, 8
      %s444 = scalar_lea.vmem %s2, %s443
      %s445 = sadd.s32 %s24, 1
      %s446 = smul.u32 %s445, 8
      %p447 = scmp.lt.s32.totalorder %s446, 15
      %s448 = scalar_select %p447, %s446, 15
      %s449 = smul.u32 8, %s24
      %p450 = scmp.lt.s32.totalorder %s23, 1
      %s451 = scalar_select %p450, %s23, 1
      %p452 = scmp.lt.s32.totalorder %s449, 15
      %s453 = scalar_select %p452, %s449, 15
      %s454 = smul.addr %s453, 2
      %s455 = smul.addr %s451, 32
      %s456 = sadd.s32 %s454, %s455
      %s457 = smul.addr %s456, 8
      %s458 = scalar_lea.vmem %s6, %s457
      %s459 = smul.u32 8, %s24
      %p460 = scmp.lt.s32.totalorder %s23, 1
      %s461 = scalar_select %p460, %s23, 1
      %p462 = scmp.lt.s32.totalorder %s24, 1
      %s463 = scalar_select %p462, %s24, 1
      %s464 = smul.addr %s461, 2
      %s465 = sadd.s32 %s463, %s464
      %s466 = smul.addr %s465, 2
      %s467 = scalar_lea.vmem %s7, %s466
      %v468 = vld [vmem:[%s3] sm:$0x1]
      %v469 = vld [vmem:[%s4] sm:$0x1]
      %vm470 = vcmask 24576
      %471 = vst.msk [vmem:[#allocation2] sm:$0x1] %vm470, 0.0
      %472 = vst.msk [vmem:[#allocation2 + $0x18] sm:$0x1] %vm470, 0.0
      %473 = vst.msk [vmem:[#allocation2 + $0x30] sm:$0x1] %vm470, 0.0
      %474 = vst.msk [vmem:[#allocation2 + $0x48] sm:$0x1] %vm470, 0.0
      %475 = vst.msk [vmem:[#allocation2 + $0x60] sm:$0x1] %vm470, 0.0
      %476 = vst.msk [vmem:[#allocation2 + $0x78] sm:$0x1] %vm470, 0.0
      %477 = vst.msk [vmem:[#allocation2 + $0x90] sm:$0x1] %vm470, 0.0
      %478 = vst.msk [vmem:[#allocation2 + $0xa8] sm:$0x1] %vm470, 0.0
      %479 = vst.msk [vmem:[#allocation2 + $0xc0] sm:$0x1] %vm470, 0.0
      %480 = vst.msk [vmem:[#allocation2 + $0xd8] sm:$0x1] %vm470, 0.0
      %481 = vst.msk [vmem:[#allocation2 + $0x11] sm:$0x1] %vm470, 0.0
      %482 = vst.msk [vmem:[#allocation2 + $0x29] sm:$0x1] %vm470, 0.0
      %483 = vst.msk [vmem:[#allocation2 + $0x41] sm:$0x1] %vm470, 0.0
      %484 = vst.msk [vmem:[#allocation2 + $0x59] sm:$0x1] %vm470, 0.0
      %485 = vst.msk [vmem:[#allocation2 + $0x71] sm:$0x1] %vm470, 0.0
      %486 = vst.msk [vmem:[#allocation2 + $0x89] sm:$0x1] %vm470, 0.0
      %487 = vst.msk [vmem:[#allocation2 + $0xa1] sm:$0x1] %vm470, 0.0
      %488 = vst.msk [vmem:[#allocation2 + $0xb9] sm:$0x1] %vm470, 0.0
      %489 = vst.msk [vmem:[#allocation2 + $0xd1] sm:$0x1] %vm470, 0.0
      %490 = vst.msk [vmem:[#allocation2 + $0xe9] sm:$0x1] %vm470, 0.0
      %v491 = vld [vmem:[%s430] sm:$0xff]
      %v492 = vld [vmem:[%s430 + $0x8] sm:$0xff]
      %v493 = vld [vmem:[%s430 + $0x10] sm:$0xff]
      %v494 = vld [vmem:[%s430 + $0x18] sm:$0xff]
      %v495 = vld [vmem:[%s430 + $0x20] sm:$0xff]
      %v496 = vld [vmem:[%s430 + $0x28] sm:$0xff]
      %v497 = vld [vmem:[%s430 + $0x30] sm:$0xff]
      %v498 = vld [vmem:[%s430 + $0x38] sm:$0xff]
      %v499 = vld [vmem:[%s430 + $0x40] sm:$0xff]
      %v500 = vld [vmem:[%s430 + $0x48] sm:$0xff]
      %v501 = vld [vmem:[%s430 + $0x50] sm:$0xff]
      %v502 = vld [vmem:[%s430 + $0x58] sm:$0xff]
      %v503 = vld [vmem:[%s430 + $0x60] sm:$0xff]
      %v504 = vld [vmem:[%s430 + $0x68] sm:$0xff]
      %v505 = vld [vmem:[%s430 + $0x70] sm:$0xff]
      %v506 = vld [vmem:[%s430 + $0x78] sm:$0xff]
      %v508 = vlaneseq
      %v509 = vshrl.u32 %v508, 7
      %v510 = vsub.s32 0, %v509
      %v511 = vrot.slane %v468, %v510
      %v513 = vmul.f32 %v491, %v511
      %v514 = vmul.f32 %v492, %v511
      %v515 = vmul.f32 %v493, %v511
      %v516 = vmul.f32 %v494, %v511
      %v517 = vmul.f32 %v495, %v511
      %v518 = vmul.f32 %v496, %v511
      %v519 = vmul.f32 %v497, %v511
      %v520 = vmul.f32 %v498, %v511
      %v521 = vmul.f32 %v499, %v511
      %v522 = vmul.f32 %v500, %v511
      %v523 = vmul.f32 %v501, %v511
      %v524 = vmul.f32 %v502, %v511
      %v525 = vmul.f32 %v503, %v511
      %v526 = vmul.f32 %v504, %v511
      %v527 = vmul.f32 %v505, %v511
      %v528 = vmul.f32 %v506, %v511
      %v530 = vlaneseq
      %v531 = vshrl.u32 %v530, 7
      %v532 = vsub.s32 0, %v531
      %v533 = vrot.slane %v469, %v532
      %v535 = vadd.f32 %v513, %v533
      %v536 = vadd.f32 %v514, %v533
      %v537 = vadd.f32 %v515, %v533
      %v538 = vadd.f32 %v516, %v533
      %v539 = vadd.f32 %v517, %v533
      %v540 = vadd.f32 %v518, %v533
      %v541 = vadd.f32 %v519, %v533
      %v542 = vadd.f32 %v520, %v533
      %v543 = vadd.f32 %v521, %v533
      %v544 = vadd.f32 %v522, %v533
      %v545 = vadd.f32 %v523, %v533
      %v546 = vadd.f32 %v524, %v533
      %v547 = vadd.f32 %v525, %v533
      %v548 = vadd.f32 %v526, %v533
      %v549 = vadd.f32 %v527, %v533
      %v550 = vadd.f32 %v528, %v533
      %v551 = vmul.f32 %v535, 0.5
      %v552 = vmul.f32 %v536, 0.5
      %v553 = vmul.f32 %v537, 0.5
      %v554 = vmul.f32 %v538, 0.5
      %v555 = vmul.f32 %v539, 0.5
      %v556 = vmul.f32 %v540, 0.5
      %v557 = vmul.f32 %v541, 0.5
      %v558 = vmul.f32 %v542, 0.5
      %v559 = vmul.f32 %v543, 0.5
      %v560 = vmul.f32 %v544, 0.5
      %v561 = vmul.f32 %v545, 0.5
      %v562 = vmul.f32 %v546, 0.5
      %v563 = vmul.f32 %v547, 0.5
      %v564 = vmul.f32 %v548, 0.5
      %v565 = vmul.f32 %v549, 0.5
      %v566 = vmul.f32 %v550, 0.5
      %v567 = vmul.f32 %v535, 0.70710677
      %v568 = vmul.f32 %v536, 0.70710677
      %v569 = vmul.f32 %v537, 0.70710677
      %v570 = vmul.f32 %v538, 0.70710677
      %v571 = vmul.f32 %v539, 0.70710677
      %v572 = vmul.f32 %v540, 0.70710677
      %v573 = vmul.f32 %v541, 0.70710677
      %v574 = vmul.f32 %v542, 0.70710677
      %v575 = vmul.f32 %v543, 0.70710677
      %v576 = vmul.f32 %v544, 0.70710677
      %v577 = vmul.f32 %v545, 0.70710677
      %v578 = vmul.f32 %v546, 0.70710677
      %v579 = vmul.f32 %v547, 0.70710677
      %v580 = vmul.f32 %v548, 0.70710677
      %v581 = vmul.f32 %v549, 0.70710677
      %v582 = vmul.f32 %v550, 0.70710677
      %v583 = verf.f32.pop %v567
      %v584 = verf.f32.pop %v568
      %v585 = verf.f32.pop %v569
      %v586 = verf.f32.pop %v570
      %v587 = verf.f32.pop %v571
      %v588 = verf.f32.pop %v572
      %v589 = verf.f32.pop %v573
      %v590 = verf.f32.pop %v574
      %v591 = verf.f32.pop %v575
      %v592 = verf.f32.pop %v576
      %v593 = verf.f32.pop %v577
      %v594 = verf.f32.pop %v578
      %v595 = verf.f32.pop %v579
      %v596 = verf.f32.pop %v580
      %v597 = verf.f32.pop %v581
      %v598 = verf.f32.pop %v582
      %v599 = vadd.f32 %v583, 1.0
      %v600 = vadd.f32 %v584, 1.0
      %v601 = vadd.f32 %v585, 1.0
      %v602 = vadd.f32 %v586, 1.0
      %v603 = vadd.f32 %v587, 1.0
      %v604 = vadd.f32 %v588, 1.0
      %v605 = vadd.f32 %v589, 1.0
      %v606 = vadd.f32 %v590, 1.0
      %v607 = vadd.f32 %v591, 1.0
      %v608 = vadd.f32 %v592, 1.0
      %v609 = vadd.f32 %v593, 1.0
      %v610 = vadd.f32 %v594, 1.0
      %v611 = vadd.f32 %v595, 1.0
      %v612 = vadd.f32 %v596, 1.0
      %v613 = vadd.f32 %v597, 1.0
      %v614 = vadd.f32 %v598, 1.0
      %v615 = vmul.f32 %v551, %v599
      %v616 = vmul.f32 %v552, %v600
      %v617 = vmul.f32 %v553, %v601
      %v618 = vmul.f32 %v554, %v602
      %v619 = vmul.f32 %v555, %v603
      %v620 = vmul.f32 %v556, %v604
      %v621 = vmul.f32 %v557, %v605
      %v622 = vmul.f32 %v558, %v606
      %v623 = vmul.f32 %v559, %v607
      %v624 = vmul.f32 %v560, %v608
      %v625 = vmul.f32 %v561, %v609
      %v626 = vmul.f32 %v562, %v610
      %v627 = vmul.f32 %v563, %v611
      %v628 = vmul.f32 %v564, %v612
      %v629 = vmul.f32 %v565, %v613
      %v630 = vmul.f32 %v566, %v614
      %s631 = scalar_lea.vmem [#allocation2], 24
      %vm632 = vcmask 31744
      %633 = vst.msk [vmem:[%s631 + $0x1] sm:$0xff] %vm632, %v615
      %634 = vst.msk [vmem:[%s631 + $0x9] sm:$0xff] %vm632, %v616
      %635 = vst.msk [vmem:[%s631 + $0x19] sm:$0xff] %vm632, %v617
      %636 = vst.msk [vmem:[%s631 + $0x21] sm:$0xff] %vm632, %v618
      %637 = vst.msk [vmem:[%s631 + $0x31] sm:$0xff] %vm632, %v619
      %638 = vst.msk [vmem:[%s631 + $0x39] sm:$0xff] %vm632, %v620
      %639 = vst.msk [vmem:[%s631 + $0x49] sm:$0xff] %vm632, %v621
      %640 = vst.msk [vmem:[%s631 + $0x51] sm:$0xff] %vm632, %v622
      %641 = vst.msk [vmem:[%s631 + $0x61] sm:$0xff] %vm632, %v623
      %642 = vst.msk [vmem:[%s631 + $0x69] sm:$0xff] %vm632, %v624
      %643 = vst.msk [vmem:[%s631 + $0x79] sm:$0xff] %vm632, %v625
      %644 = vst.msk [vmem:[%s631 + $0x81] sm:$0xff] %vm632, %v626
      %645 = vst.msk [vmem:[%s631 + $0x91] sm:$0xff] %vm632, %v627
      %646 = vst.msk [vmem:[%s631 + $0x99] sm:$0xff] %vm632, %v628
      %647 = vst.msk [vmem:[%s631 + $0xa9] sm:$0xff] %vm632, %v629
      %648 = vst.msk [vmem:[%s631 + $0xb1] sm:$0xff] %vm632, %v630
      %p649 = scmp.eq.s32.totalorder %s24, 0
      // Predicated region
      $region45: #{basic_block_forward.4} parent=43 // pred_check
        %p650 = pneg %p649
      $region46: #{basic_block_forward.4} parent=43 // pred_check_branch
        %652 = sbr.rel (%p650) target = $region48
      $region47: #{basic_block_forward.4} parent=43 // pred_region
        %653 = vst.msk [vmem:[#allocation2 + $0x1] sm:$0xff] %vm632, 0.0
        %654 = vst.msk [vmem:[#allocation2 + $0x9] sm:$0xff] %vm632, 0.0
      $region48: #{basic_block_forward.4} parent=43 // pred_fallthru
        _
      %p655 = scmp.gt.s32.totalorder %s24, 0
      // Predicated region
      $region49: #{basic_block_forward.4} parent=43 // pred_check
        %p656 = pneg %p655
      $region50: #{basic_block_forward.4} parent=43 // pred_check_branch
        %658 = sbr.rel (%p656) target = $region52
      $region51: #{basic_block_forward.4} parent=43 // pred_region
        %v659 = vld [vmem:[%s416] sm:$0xff]
        %v660 = vld [vmem:[%s416 + $0x8] sm:$0xff]
        %v661 = vmul.f32 %v659, %v511
        %v662 = vmul.f32 %v660, %v511
        %v663 = vadd.f32 %v661, %v533
        %v664 = vadd.f32 %v662, %v533
        %v665 = vmul.f32 %v663, 0.5
        %v666 = vmul.f32 %v664, 0.5
        %v667 = vmul.f32 %v663, 0.70710677
        %v668 = vmul.f32 %v664, 0.70710677
        %v669 = verf.f32.pop %v667
        %v670 = verf.f32.pop %v668
        %v671 = vadd.f32 %v669, 1.0
        %v672 = vadd.f32 %v670, 1.0
        %v673 = vmul.f32 %v665, %v671
        %v674 = vmul.f32 %v666, %v672
        %675 = vst.msk [vmem:[#allocation2 + $0x1] sm:$0xff] %vm632, %v673
        %676 = vst.msk [vmem:[#allocation2 + $0x9] sm:$0xff] %vm632, %v674
      $region52: #{basic_block_forward.4} parent=43 // pred_fallthru
        _
      %p677 = scmp.eq.s32.totalorder %s24, 1
      // Predicated region
      $region53: #{basic_block_forward.4} parent=43 // pred_check
        %p678 = pneg %p677
      $region54: #{basic_block_forward.4} parent=43 // pred_check_branch
        %680 = sbr.rel (%p678) target = $region56
      $region55: #{basic_block_forward.4} parent=43 // pred_region
        %s681 = scalar_lea.vmem [#allocation2], 216
        %682 = vst.msk [vmem:[%s681 + $0x1] sm:$0xff] %vm632, 0.0
        %683 = vst.msk [vmem:[%s681 + $0x9] sm:$0xff] %vm632, 0.0
      $region56: #{basic_block_forward.4} parent=43 // pred_fallthru
        _
      %p684 = scmp.lt.s32.totalorder %s24, 1
      // Predicated region
      $region57: #{basic_block_forward.4} parent=43 // pred_check
        %p685 = pneg %p684
      $region58: #{basic_block_forward.4} parent=43 // pred_check_branch
        %687 = sbr.rel (%p685) target = $region60
      $region59: #{basic_block_forward.4} parent=43 // pred_region
        %v688 = vld [vmem:[%s444] sm:$0xff]
        %v689 = vld [vmem:[%s444 + $0x8] sm:$0xff]
        %v690 = vmul.f32 %v688, %v511
        %v691 = vmul.f32 %v689, %v511
        %v692 = vadd.f32 %v690, %v533
        %v693 = vadd.f32 %v691, %v533
        %v694 = vmul.f32 %v692, 0.5
        %v695 = vmul.f32 %v693, 0.5
        %v696 = vmul.f32 %v692, 0.70710677
        %v697 = vmul.f32 %v693, 0.70710677
        %v698 = verf.f32.pop %v696
        %v699 = verf.f32.pop %v697
        %v700 = vadd.f32 %v698, 1.0
        %v701 = vadd.f32 %v699, 1.0
        %v702 = vmul.f32 %v694, %v700
        %v703 = vmul.f32 %v695, %v701
        %s704 = scalar_lea.vmem [#allocation2], 216
        %705 = vst.msk [vmem:[%s704 + $0x1] sm:$0xff] %vm632, %v702
        %706 = vst.msk [vmem:[%s704 + $0x9] sm:$0xff] %vm632, %v703
      $region60: #{basic_block_forward.4} parent=43 // pred_fallthru
        _
      %v707 = vld [vmem:[#allocation2] sm:$0xff]
      %v708 = vld [vmem:[#allocation2 + $0x8] sm:$0xff]
      %v709 = vld [vmem:[#allocation2 + $0x18] sm:$0xff]
      %v710 = vld [vmem:[#allocation2 + $0x20] sm:$0xff]
      %v711 = vld [vmem:[#allocation2 + $0x30] sm:$0xff]
      %v712 = vld [vmem:[#allocation2 + $0x38] sm:$0xff]
      %v713 = vld [vmem:[#allocation2 + $0x48] sm:$0xff]
      %v714 = vld [vmem:[#allocation2 + $0x50] sm:$0xff]
      %v715 = vld [vmem:[#allocation2 + $0x60] sm:$0xff]
      %v716 = vld [vmem:[#allocation2 + $0x68] sm:$0xff]
      %v717 = vld [vmem:[#allocation2 + $0x78] sm:$0xff]
      %v718 = vld [vmem:[#allocation2 + $0x80] sm:$0xff]
      %v719 = vld [vmem:[#allocation2 + $0x90] sm:$0xff]
      %v720 = vld [vmem:[#allocation2 + $0x98] sm:$0xff]
      %v721 = vld [vmem:[#allocation2 + $0xa8] sm:$0xff]
      %v722 = vld [vmem:[#allocation2 + $0xb0] sm:$0xff]
      %v723 = vld [vmem:[#allocation2 + $0xc0] sm:$0xff]
      %v724 = vld [vmem:[#allocation2 + $0xc8] sm:$0xff]
      %v725 = vld [vmem:[#allocation2 + $0xd8] sm:$0xff]
      %v726 = vld [vmem:[#allocation2 + $0xe0] sm:$0xff]
      %v727 = vld [vmem:[#allocation2 + $0x1] sm:$0xff]
      %v728 = vld [vmem:[#allocation2 + $0x9] sm:$0xff]
      %v729 = vld [vmem:[#allocation2 + $0x19] sm:$0xff]
      %v730 = vld [vmem:[#allocation2 + $0x21] sm:$0xff]
      %v731 = vld [vmem:[#allocation2 + $0x31] sm:$0xff]
      %v732 = vld [vmem:[#allocation2 + $0x39] sm:$0xff]
      %v733 = vld [vmem:[#allocation2 + $0x49] sm:$0xff]
      %v734 = vld [vmem:[#allocation2 + $0x51] sm:$0xff]
      %v735 = vld [vmem:[#allocation2 + $0x61] sm:$0xff]
      %v736 = vld [vmem:[#allocation2 + $0x69] sm:$0xff]
      %v737 = vld [vmem:[#allocation2 + $0x79] sm:$0xff]
      %v738 = vld [vmem:[#allocation2 + $0x81] sm:$0xff]
      %v739 = vld [vmem:[#allocation2 + $0x91] sm:$0xff]
      %v740 = vld [vmem:[#allocation2 + $0x99] sm:$0xff]
      %v741 = vld [vmem:[#allocation2 + $0xa9] sm:$0xff]
      %v742 = vld [vmem:[#allocation2 + $0xb1] sm:$0xff]
      %v743 = vld [vmem:[#allocation2 + $0xc1] sm:$0xff]
      %v744 = vld [vmem:[#allocation2 + $0xc9] sm:$0xff]
      %v745 = vld [vmem:[#allocation2 + $0xd9] sm:$0xff]
      %v746 = vld [vmem:[#allocation2 + $0xe1] sm:$0xff]
      %v747 = vld [vmem:[#allocation2 + $0x2] sm:$0xff]
      %v748 = vld [vmem:[#allocation2 + $0xa] sm:$0xff]
      %v749 = vld [vmem:[#allocation2 + $0x1a] sm:$0xff]
      %v750 = vld [vmem:[#allocation2 + $0x22] sm:$0xff]
      %v751 = vld [vmem:[#allocation2 + $0x32] sm:$0xff]
      %v752 = vld [vmem:[#allocation2 + $0x3a] sm:$0xff]
      %v753 = vld [vmem:[#allocation2 + $0x4a] sm:$0xff]
      %v754 = vld [vmem:[#allocation2 + $0x52] sm:$0xff]
      %v755 = vld [vmem:[#allocation2 + $0x62] sm:$0xff]
      %v756 = vld [vmem:[#allocation2 + $0x6a] sm:$0xff]
      %v757 = vld [vmem:[#allocation2 + $0x7a] sm:$0xff]
      %v758 = vld [vmem:[#allocation2 + $0x82] sm:$0xff]
      %v759 = vld [vmem:[#allocation2 + $0x92] sm:$0xff]
      %v760 = vld [vmem:[#allocation2 + $0x9a] sm:$0xff]
      %v761 = vld [vmem:[#allocation2 + $0xaa] sm:$0xff]
      %v762 = vld [vmem:[#allocation2 + $0xb2] sm:$0xff]
      %v763 = vld [vmem:[#allocation2 + $0xc2] sm:$0xff]
      %v764 = vld [vmem:[#allocation2 + $0xca] sm:$0xff]
      %v765 = vld [vmem:[#allocation2 + $0xda] sm:$0xff]
      %v766 = vld [vmem:[#allocation2 + $0xe2] sm:$0xff]
      %787 = vrot.lane.b32.xlu0 %v727, 4
      %v788 = vpop.permute.xlu0 %787
      %789 = vrot.lane.b32.xlu0 %v728, 4
      %v790 = vpop.permute.xlu0 %789
      %791 = vrot.lane.b32.xlu0 %v729, 4
      %v792 = vpop.permute.xlu0 %791
      %793 = vrot.lane.b32.xlu0 %v730, 4
      %v794 = vpop.permute.xlu0 %793
      %795 = vrot.lane.b32.xlu0 %v731, 4
      %v796 = vpop.permute.xlu0 %795
      %797 = vrot.lane.b32.xlu0 %v732, 4
      %v798 = vpop.permute.xlu0 %797
      %799 = vrot.lane.b32.xlu0 %v733, 4
      %v800 = vpop.permute.xlu0 %799
      %801 = vrot.lane.b32.xlu0 %v734, 4
      %v802 = vpop.permute.xlu0 %801
      %803 = vrot.lane.b32.xlu0 %v735, 4
      %v804 = vpop.permute.xlu0 %803
      %805 = vrot.lane.b32.xlu0 %v736, 4
      %v806 = vpop.permute.xlu0 %805
      %807 = vrot.lane.b32.xlu0 %v737, 4
      %v808 = vpop.permute.xlu0 %807
      %809 = vrot.lane.b32.xlu0 %v738, 4
      %v810 = vpop.permute.xlu0 %809
      %811 = vrot.lane.b32.xlu0 %v739, 4
      %v812 = vpop.permute.xlu0 %811
      %813 = vrot.lane.b32.xlu0 %v740, 4
      %v814 = vpop.permute.xlu0 %813
      %815 = vrot.lane.b32.xlu0 %v741, 4
      %v816 = vpop.permute.xlu0 %815
      %817 = vrot.lane.b32.xlu0 %v742, 4
      %v818 = vpop.permute.xlu0 %817
      %819 = vrot.lane.b32.xlu0 %v743, 4
      %v820 = vpop.permute.xlu0 %819
      %821 = vrot.lane.b32.xlu0 %v744, 4
      %v822 = vpop.permute.xlu0 %821
      %823 = vrot.lane.b32.xlu0 %v745, 4
      %v824 = vpop.permute.xlu0 %823
      %825 = vrot.lane.b32.xlu0 %v746, 4
      %v826 = vpop.permute.xlu0 %825
      %867 = vrot.lane.b32.xlu0 %v747, 8
      %v868 = vpop.permute.xlu0 %867
      %869 = vrot.lane.b32.xlu0 %v748, 8
      %v870 = vpop.permute.xlu0 %869
      %871 = vrot.lane.b32.xlu0 %v749, 8
      %v872 = vpop.permute.xlu0 %871
      %873 = vrot.lane.b32.xlu0 %v750, 8
      %v874 = vpop.permute.xlu0 %873
      %875 = vrot.lane.b32.xlu0 %v751, 8
      %v876 = vpop.permute.xlu0 %875
      %877 = vrot.lane.b32.xlu0 %v752, 8
      %v878 = vpop.permute.xlu0 %877
      %879 = vrot.lane.b32.xlu0 %v753, 8
      %v880 = vpop.permute.xlu0 %879
      %881 = vrot.lane.b32.xlu0 %v754, 8
      %v882 = vpop.permute.xlu0 %881
      %883 = vrot.lane.b32.xlu0 %v755, 8
      %v884 = vpop.permute.xlu0 %883
      %885 = vrot.lane.b32.xlu0 %v756, 8
      %v886 = vpop.permute.xlu0 %885
      %887 = vrot.lane.b32.xlu0 %v757, 8
      %v888 = vpop.permute.xlu0 %887
      %889 = vrot.lane.b32.xlu0 %v758, 8
      %v890 = vpop.permute.xlu0 %889
      %891 = vrot.lane.b32.xlu0 %v759, 8
      %v892 = vpop.permute.xlu0 %891
      %893 = vrot.lane.b32.xlu0 %v760, 8
      %v894 = vpop.permute.xlu0 %893
      %895 = vrot.lane.b32.xlu0 %v761, 8
      %v896 = vpop.permute.xlu0 %895
      %897 = vrot.lane.b32.xlu0 %v762, 8
      %v898 = vpop.permute.xlu0 %897
      %899 = vrot.lane.b32.xlu0 %v763, 8
      %v900 = vpop.permute.xlu0 %899
      %901 = vrot.lane.b32.xlu0 %v764, 8
      %v902 = vpop.permute.xlu0 %901
      %903 = vrot.lane.b32.xlu0 %v765, 8
      %v904 = vpop.permute.xlu0 %903
      %905 = vrot.lane.b32.xlu0 %v766, 8
      %v906 = vpop.permute.xlu0 %905
      %v927 = vsel %vm632, %v707, %v788
      %v928 = vsel %vm632, %v708, %v790
      %v929 = vsel %vm632, %v709, %v792
      %v930 = vsel %vm632, %v710, %v794
      %v931 = vsel %vm632, %v711, %v796
      %v932 = vsel %vm632, %v712, %v798
      %v933 = vsel %vm632, %v713, %v800
      %v934 = vsel %vm632, %v714, %v802
      %v935 = vsel %vm632, %v715, %v804
      %v936 = vsel %vm632, %v716, %v806
      %v937 = vsel %vm632, %v717, %v808
      %v938 = vsel %vm632, %v718, %v810
      %v939 = vsel %vm632, %v719, %v812
      %v940 = vsel %vm632, %v720, %v814
      %v941 = vsel %vm632, %v721, %v816
      %v942 = vsel %vm632, %v722, %v818
      %v943 = vsel %vm632, %v723, %v820
      %v944 = vsel %vm632, %v724, %v822
      %v945 = vsel %vm632, %v725, %v824
      %v946 = vsel %vm632, %v726, %v826
      %vm947 = vcmask 64512
      %v948 = vsel %vm947, %v927, %v868
      %v949 = vsel %vm947, %v928, %v870
      %v950 = vsel %vm947, %v929, %v872
      %v951 = vsel %vm947, %v930, %v874
      %v952 = vsel %vm947, %v931, %v876
      %v953 = vsel %vm947, %v932, %v878
      %v954 = vsel %vm947, %v933, %v880
      %v955 = vsel %vm947, %v934, %v882
      %v956 = vsel %vm947, %v935, %v884
      %v957 = vsel %vm947, %v936, %v886
      %v958 = vsel %vm947, %v937, %v888
      %v959 = vsel %vm947, %v938, %v890
      %v960 = vsel %vm947, %v939, %v892
      %v961 = vsel %vm947, %v940, %v894
      %v962 = vsel %vm947, %v941, %v896
      %v963 = vsel %vm947, %v942, %v898
      %v964 = vsel %vm947, %v943, %v900
      %v965 = vsel %vm947, %v944, %v902
      %v966 = vsel %vm947, %v945, %v904
      %v967 = vsel %vm947, %v946, %v906
      %v968 = vld [vmem:[%s5] sm:$0xf]
      %s969 = scalar_lea.vmem %s5, 4
      %v970 = vld [vmem:[%s969] sm:$0xf]
      %s971 = scalar_lea.vmem %s5, 8
      %v972 = vld [vmem:[%s971] sm:$0xf]
      %v974 = vrot.slane %v970, 4
      %vm976 = vcmask 1043456
      %v977 = vsel %vm976, %v968, %v974
      %s978 = scalar_lea.vmem %s5, 12
      %v979 = vld [vmem:[%s978] sm:$0xf]
      %s980 = scalar_lea.vmem %s5, 16
      %v981 = vld [vmem:[%s980] sm:$0xf]
      %s982 = scalar_lea.vmem %s5, 20
      %v983 = vld [vmem:[%s982] sm:$0xf]
      %v985 = vrot.slane %v981, 4
      %v987 = vsel %vm976, %v979, %v985
      %vm988 = vcmask 97280
      %v990 = vsel %vm988, %v950, 0
      %v993 = vsel %vm988, %v951, 0
      %v996 = vsel %vm988, %v952, 0
      %v999 = vsel %vm988, %v953, 0
      %v1002 = vsel %vm988, %v954, 0
      %v1005 = vsel %vm988, %v955, 0
      %v1008 = vsel %vm988, %v956, 0
      %v1011 = vsel %vm988, %v957, 0
      %v1014 = vsel %vm988, %v958, 0
      %v1017 = vsel %vm988, %v959, 0
      %v1020 = vsel %vm988, %v960, 0
      %v1023 = vsel %vm988, %v961, 0
      %v1026 = vsel %vm988, %v962, 0
      %v1029 = vsel %vm988, %v963, 0
      %v1032 = vsel %vm988, %v964, 0
      %v1035 = vsel %vm988, %v965, 0
      %v1038 = vsel %vm976, %v983, 0
      %1040 = vmatprep.subr.mxu0 0.0
      %1041 = vmatpush1.msra.mxu0 0.0
      %1042 = vmatprep.subr.mxu0 0.0
      %1043 = vmatpush1.msra.mxu0 0.0
      %1044 = vmatprep.subr.mxu0 0.0
      %1045 = vmatpush1.msra.mxu0 0.0
      %1046 = vmatprep.subr.mxu0 0.0
      %1047 = vmatpush1.msra.mxu0 0.0
      %1048 = vmatprep.subr.mxu0 0.0
      %1049 = vmatpush1.msra.mxu0 0.0
      %1050 = vmatprep.subr.mxu0 0.0
      %1051 = vmatpush1.msra.mxu0 0.0
      %1052 = vmatprep.subr.mxu0 0.0
      %1053 = vmatpush1.msra.mxu0 0.0
      %1054 = vmatprep.subr.mxu0 0.0
      %1055 = vmatpush1.msra.mxu0 0.0
      %1056 = vmatprep.subr.mxu0 0.0
      %1057 = vmatpush1.msra.mxu0 0.0
      %1058 = vmatprep.subr.mxu0 0.0
      %1059 = vmatpush1.msra.mxu0 0.0
      %1060 = vmatprep.subr.mxu0 0.0
      %1061 = vmatpush1.msra.mxu0 0.0
      %1062 = vmatprep.subr.mxu0 0.0
      %1063 = vmatpush1.msra.mxu0 0.0
      %1064 = vmatprep.subr.mxu0 0.0
      %1065 = vmatpush1.msra.mxu0 0.0
      %1066 = vmatprep.subr.mxu0 0.0
      %1067 = vmatpush1.msra.mxu0 0.0
      %1068 = vmatprep.subr.mxu0 0.0
      %1069 = vmatpush1.msra.mxu0 %v1038
      %1070 = vmatprep.subr.mxu0 0.0
      %1071 = vmatpush1.msra.mxu0 %v987
      %1072 = vmatprep.subr.mxu0 0.0
      %1073 = vmatpush2.msra.mxu0 0.0
      %1074 = vmatprep.subr.mxu0 0.0
      %1075 = vmatpush2.msra.mxu0 0.0
      %1076 = vmatprep.subr.mxu0 0.0
      %1077 = vmatpush2.msra.mxu0 0.0
      %1078 = vmatprep.subr.mxu0 0.0
      %1079 = vmatpush2.msra.mxu0 0.0
      %1080 = vmatprep.subr.mxu0 0.0
      %1081 = vmatpush2.msra.mxu0 0.0
      %1082 = vmatprep.subr.mxu0 0.0
      %1083 = vmatpush2.msra.mxu0 0.0
      %1084 = vmatprep.subr.mxu0 0.0
      %1085 = vmatpush2.msra.mxu0 0.0
      %1086 = vmatprep.subr.mxu0 0.0
      %1087 = vmatpush2.msra.mxu0 0.0
      %1088 = vmatprep.subr.mxu0 0.0
      %1089 = vmatpush2.msra.mxu0 0.0
      %1090 = vmatprep.subr.mxu0 0.0
      %1091 = vmatpush2.msra.mxu0 0.0
      %1092 = vmatprep.subr.mxu0 0.0
      %1093 = vmatpush2.msra.mxu0 0.0
      %1094 = vmatprep.subr.mxu0 0.0
      %1095 = vmatpush2.msra.mxu0 0.0
      %1096 = vmatprep.subr.mxu0 0.0
      %1097 = vmatpush2.msra.mxu0 0.0
      %1098 = vmatprep.subr.mxu0 0.0
      %1099 = vmatpush2.msra.mxu0 0.0
      %1100 = vmatprep.subr.mxu0 0.0
      %1101 = vmatpush2.msra.mxu0 0.0
      %1102 = vmatprep.subr.mxu0 0.0
      %1103 = vmatpush2.msra.mxu0 0.0
      %1104 = vmatprep.mubr.f32.mxu0 0.0
      %1105 = vmatmul.mubr.f32.gmra.mxu0 %v990
      %v1106 = vpop.f32.mrf.mxu0
      %v1107 = vadd.f32 0.0, %v1106
      %v1108 = vpop.f32.mrf.mxu0
      %1109 = vmatprep.mubr.f32.mxu0 0.0
      %1110 = vmatmul.mubr.f32.gmra.mxu0 %v993
      %v1111 = vpop.f32.mrf.mxu0
      %v1112 = vadd.f32 0.0, %v1111
      %v1113 = vpop.f32.mrf.mxu0
      %1114 = vmatprep.mubr.f32.mxu0 0.0
      %1115 = vmatmul.mubr.f32.gmra.mxu0 %v996
      %v1116 = vpop.f32.mrf.mxu0
      %v1117 = vadd.f32 0.0, %v1116
      %v1118 = vpop.f32.mrf.mxu0
      %1119 = vmatprep.mubr.f32.mxu0 0.0
      %1120 = vmatmul.mubr.f32.gmra.mxu0 %v999
      %v1121 = vpop.f32.mrf.mxu0
      %v1122 = vadd.f32 0.0, %v1121
      %v1123 = vpop.f32.mrf.mxu0
      %1124 = vmatprep.mubr.f32.mxu0 0.0
      %1125 = vmatmul.mubr.f32.gmra.mxu0 %v1002
      %v1126 = vpop.f32.mrf.mxu0
      %v1127 = vadd.f32 0.0, %v1126
      %v1128 = vpop.f32.mrf.mxu0
      %1129 = vmatprep.mubr.f32.mxu0 0.0
      %1130 = vmatmul.mubr.f32.gmra.mxu0 %v1005
      %v1131 = vpop.f32.mrf.mxu0
      %v1132 = vadd.f32 0.0, %v1131
      %v1133 = vpop.f32.mrf.mxu0
      %1134 = vmatprep.mubr.f32.mxu0 0.0
      %1135 = vmatmul.mubr.f32.gmra.mxu0 %v1008
      %v1136 = vpop.f32.mrf.mxu0
      %v1137 = vadd.f32 0.0, %v1136
      %v1138 = vpop.f32.mrf.mxu0
      %1139 = vmatprep.mubr.f32.mxu0 0.0
      %1140 = vmatmul.mubr.f32.gmra.mxu0 %v1011
      %v1141 = vpop.f32.mrf.mxu0
      %v1142 = vadd.f32 0.0, %v1141
      %v1143 = vpop.f32.mrf.mxu0
      %1144 = vmatprep.mubr.f32.mxu0 0.0
      %1145 = vmatmul.mubr.f32.gmra.mxu0 %v1014
      %v1146 = vpop.f32.mrf.mxu0
      %v1147 = vadd.f32 0.0, %v1146
      %v1148 = vpop.f32.mrf.mxu0
      %1149 = vmatprep.mubr.f32.mxu0 0.0
      %1150 = vmatmul.mubr.f32.gmra.mxu0 %v1017
      %v1151 = vpop.f32.mrf.mxu0
      %v1152 = vadd.f32 0.0, %v1151
      %v1153 = vpop.f32.mrf.mxu0
      %1154 = vmatprep.mubr.f32.mxu0 0.0
      %1155 = vmatmul.mubr.f32.gmra.mxu0 %v1020
      %v1156 = vpop.f32.mrf.mxu0
      %v1157 = vadd.f32 0.0, %v1156
      %v1158 = vpop.f32.mrf.mxu0
      %1159 = vmatprep.mubr.f32.mxu0 0.0
      %1160 = vmatmul.mubr.f32.gmra.mxu0 %v1023
      %v1161 = vpop.f32.mrf.mxu0
      %v1162 = vadd.f32 0.0, %v1161
      %v1163 = vpop.f32.mrf.mxu0
      %1164 = vmatprep.mubr.f32.mxu0 0.0
      %1165 = vmatmul.mubr.f32.gmra.mxu0 %v1026
      %v1166 = vpop.f32.mrf.mxu0
      %v1167 = vadd.f32 0.0, %v1166
      %v1168 = vpop.f32.mrf.mxu0
      %1169 = vmatprep.mubr.f32.mxu0 0.0
      %1170 = vmatmul.mubr.f32.gmra.mxu0 %v1029
      %v1171 = vpop.f32.mrf.mxu0
      %v1172 = vadd.f32 0.0, %v1171
      %v1173 = vpop.f32.mrf.mxu0
      %1174 = vmatprep.mubr.f32.mxu0 0.0
      %1175 = vmatmul.mubr.f32.gmra.mxu0 %v1032
      %v1176 = vpop.f32.mrf.mxu0
      %v1177 = vadd.f32 0.0, %v1176
      %v1178 = vpop.f32.mrf.mxu0
      %1179 = vmatprep.mubr.f32.mxu0 0.0
      %1180 = vmatmul.mubr.f32.gmra.mxu0 %v1035
      %v1181 = vpop.f32.mrf.mxu0
      %v1182 = vadd.f32 0.0, %v1181
      %v1183 = vpop.f32.mrf.mxu0
      %1184 = vdwg.mxu0
      %v1186 = vsel %vm988, %v948, 0
      %v1189 = vsel %vm988, %v949, 0
      %v1192 = vsel %vm976, %v972, 0
      %1194 = vmatprep.subr.mxu0 0.0
      %1195 = vmatpush1.msra.mxu0 0.0
      %1196 = vmatprep.subr.mxu0 0.0
      %1197 = vmatpush1.msra.mxu0 0.0
      %1198 = vmatprep.subr.mxu0 0.0
      %1199 = vmatpush1.msra.mxu0 0.0
      %1200 = vmatprep.subr.mxu0 0.0
      %1201 = vmatpush1.msra.mxu0 0.0
      %1202 = vmatprep.subr.mxu0 0.0
      %1203 = vmatpush1.msra.mxu0 0.0
      %1204 = vmatprep.subr.mxu0 0.0
      %1205 = vmatpush1.msra.mxu0 0.0
      %1206 = vmatprep.subr.mxu0 0.0
      %1207 = vmatpush1.msra.mxu0 0.0
      %1208 = vmatprep.subr.mxu0 0.0
      %1209 = vmatpush1.msra.mxu0 0.0
      %1210 = vmatprep.subr.mxu0 0.0
      %1211 = vmatpush1.msra.mxu0 0.0
      %1212 = vmatprep.subr.mxu0 0.0
      %1213 = vmatpush1.msra.mxu0 0.0
      %1214 = vmatprep.subr.mxu0 0.0
      %1215 = vmatpush1.msra.mxu0 0.0
      %1216 = vmatprep.subr.mxu0 0.0
      %1217 = vmatpush1.msra.mxu0 0.0
      %1218 = vmatprep.subr.mxu0 0.0
      %1219 = vmatpush1.msra.mxu0 0.0
      %1220 = vmatprep.subr.mxu0 0.0
      %1221 = vmatpush1.msra.mxu0 0.0
      %1222 = vmatprep.subr.mxu0 0.0
      %1223 = vmatpush1.msra.mxu0 %v1192
      %1224 = vmatprep.subr.mxu0 0.0
      %1225 = vmatpush1.msra.mxu0 %v977
      %1226 = vmatprep.subr.mxu0 0.0
      %1227 = vmatpush2.msra.mxu0 0.0
      %1228 = vmatprep.subr.mxu0 0.0
      %1229 = vmatpush2.msra.mxu0 0.0
      %1230 = vmatprep.subr.mxu0 0.0
      %1231 = vmatpush2.msra.mxu0 0.0
      %1232 = vmatprep.subr.mxu0 0.0
      %1233 = vmatpush2.msra.mxu0 0.0
      %1234 = vmatprep.subr.mxu0 0.0
      %1235 = vmatpush2.msra.mxu0 0.0
      %1236 = vmatprep.subr.mxu0 0.0
      %1237 = vmatpush2.msra.mxu0 0.0
      %1238 = vmatprep.subr.mxu0 0.0
      %1239 = vmatpush2.msra.mxu0 0.0
      %1240 = vmatprep.subr.mxu0 0.0
      %1241 = vmatpush2.msra.mxu0 0.0
      %1242 = vmatprep.subr.mxu0 0.0
      %1243 = vmatpush2.msra.mxu0 0.0
      %1244 = vmatprep.subr.mxu0 0.0
      %1245 = vmatpush2.msra.mxu0 0.0
      %1246 = vmatprep.subr.mxu0 0.0
      %1247 = vmatpush2.msra.mxu0 0.0
      %1248 = vmatprep.subr.mxu0 0.0
      %1249 = vmatpush2.msra.mxu0 0.0
      %1250 = vmatprep.subr.mxu0 0.0
      %1251 = vmatpush2.msra.mxu0 0.0
      %1252 = vmatprep.subr.mxu0 0.0
      %1253 = vmatpush2.msra.mxu0 0.0
      %1254 = vmatprep.subr.mxu0 0.0
      %1255 = vmatpush2.msra.mxu0 0.0
      %1256 = vmatprep.subr.mxu0 0.0
      %1257 = vmatpush2.msra.mxu0 0.0
      %1258 = vmatprep.mubr.f32.mxu0 0.0
      %1259 = vmatmul.mubr.f32.gmra.mxu0 %v1186
      %v1260 = vpop.f32.mrf.mxu0
      %v1261 = vadd.f32 %v1107, %v1260
      %v1262 = vpop.f32.mrf.mxu0
      %1263 = vmatprep.mubr.f32.mxu0 0.0
      %1264 = vmatmul.mubr.f32.gmra.mxu0 %v1189
      %v1265 = vpop.f32.mrf.mxu0
      %v1266 = vadd.f32 %v1112, %v1265
      %v1267 = vpop.f32.mrf.mxu0
      %1268 = vmatprep.mubr.f32.mxu0 0.0
      %1269 = vmatmul.mubr.f32.gmra.mxu0 %v990
      %v1270 = vpop.f32.mrf.mxu0
      %v1271 = vadd.f32 %v1117, %v1270
      %v1272 = vpop.f32.mrf.mxu0
      %1273 = vmatprep.mubr.f32.mxu0 0.0
      %1274 = vmatmul.mubr.f32.gmra.mxu0 %v993
      %v1275 = vpop.f32.mrf.mxu0
      %v1276 = vadd.f32 %v1122, %v1275
      %v1277 = vpop.f32.mrf.mxu0
      %1278 = vmatprep.mubr.f32.mxu0 0.0
      %1279 = vmatmul.mubr.f32.gmra.mxu0 %v996
      %v1280 = vpop.f32.mrf.mxu0
      %v1281 = vadd.f32 %v1127, %v1280
      %v1282 = vpop.f32.mrf.mxu0
      %1283 = vmatprep.mubr.f32.mxu0 0.0
      %1284 = vmatmul.mubr.f32.gmra.mxu0 %v999
      %v1285 = vpop.f32.mrf.mxu0
      %v1286 = vadd.f32 %v1132, %v1285
      %v1287 = vpop.f32.mrf.mxu0
      %1288 = vmatprep.mubr.f32.mxu0 0.0
      %1289 = vmatmul.mubr.f32.gmra.mxu0 %v1002
      %v1290 = vpop.f32.mrf.mxu0
      %v1291 = vadd.f32 %v1137, %v1290
      %v1292 = vpop.f32.mrf.mxu0
      %1293 = vmatprep.mubr.f32.mxu0 0.0
      %1294 = vmatmul.mubr.f32.gmra.mxu0 %v1005
      %v1295 = vpop.f32.mrf.mxu0
      %v1296 = vadd.f32 %v1142, %v1295
      %v1297 = vpop.f32.mrf.mxu0
      %1298 = vmatprep.mubr.f32.mxu0 0.0
      %1299 = vmatmul.mubr.f32.gmra.mxu0 %v1008
      %v1300 = vpop.f32.mrf.mxu0
      %v1301 = vadd.f32 %v1147, %v1300
      %v1302 = vpop.f32.mrf.mxu0
      %1303 = vmatprep.mubr.f32.mxu0 0.0
      %1304 = vmatmul.mubr.f32.gmra.mxu0 %v1011
      %v1305 = vpop.f32.mrf.mxu0
      %v1306 = vadd.f32 %v1152, %v1305
      %v1307 = vpop.f32.mrf.mxu0
      %1308 = vmatprep.mubr.f32.mxu0 0.0
      %1309 = vmatmul.mubr.f32.gmra.mxu0 %v1014
      %v1310 = vpop.f32.mrf.mxu0
      %v1311 = vadd.f32 %v1157, %v1310
      %v1312 = vpop.f32.mrf.mxu0
      %1313 = vmatprep.mubr.f32.mxu0 0.0
      %1314 = vmatmul.mubr.f32.gmra.mxu0 %v1017
      %v1315 = vpop.f32.mrf.mxu0
      %v1316 = vadd.f32 %v1162, %v1315
      %v1317 = vpop.f32.mrf.mxu0
      %1318 = vmatprep.mubr.f32.mxu0 0.0
      %1319 = vmatmul.mubr.f32.gmra.mxu0 %v1020
      %v1320 = vpop.f32.mrf.mxu0
      %v1321 = vadd.f32 %v1167, %v1320
      %v1322 = vpop.f32.mrf.mxu0
      %1323 = vmatprep.mubr.f32.mxu0 0.0
      %1324 = vmatmul.mubr.f32.gmra.mxu0 %v1023
      %v1325 = vpop.f32.mrf.mxu0
      %v1326 = vadd.f32 %v1172, %v1325
      %v1327 = vpop.f32.mrf.mxu0
      %1328 = vmatprep.mubr.f32.mxu0 0.0
      %1329 = vmatmul.mubr.f32.gmra.mxu0 %v1026
      %v1330 = vpop.f32.mrf.mxu0
      %v1331 = vadd.f32 %v1177, %v1330
      %v1332 = vpop.f32.mrf.mxu0
      %1333 = vmatprep.mubr.f32.mxu0 0.0
      %1334 = vmatmul.mubr.f32.gmra.mxu0 %v1029
      %v1335 = vpop.f32.mrf.mxu0
      %v1336 = vadd.f32 %v1182, %v1335
      %v1337 = vpop.f32.mrf.mxu0
      %1338 = vdwg.mxu0
      %s1339 = scalar_lea.vmem %s5, 24
      %v1340 = vld [vmem:[%s1339] sm:$0xf]
      %s1341 = scalar_lea.vmem %s5, 28
      %v1342 = vld [vmem:[%s1341] sm:$0xf]
      %s1343 = scalar_lea.vmem %s5, 32
      %v1344 = vld [vmem:[%s1343] sm:$0xf]
      %v1346 = vrot.slane %v1342, 4
      %v1348 = vsel %vm976, %v1340, %v1346
      %v1350 = vsel %vm988, %v966, 0
      %v1353 = vsel %vm988, %v967, 0
      %v1356 = vsel %vm976, %v1344, 0
      %1358 = vmatprep.subr.mxu0 0.0
      %1359 = vmatpush1.msra.mxu0 0.0
      %1360 = vmatprep.subr.mxu0 0.0
      %1361 = vmatpush1.msra.mxu0 0.0
      %1362 = vmatprep.subr.mxu0 0.0
      %1363 = vmatpush1.msra.mxu0 0.0
      %1364 = vmatprep.subr.mxu0 0.0
      %1365 = vmatpush1.msra.mxu0 0.0
      %1366 = vmatprep.subr.mxu0 0.0
      %1367 = vmatpush1.msra.mxu0 0.0
      %1368 = vmatprep.subr.mxu0 0.0
      %1369 = vmatpush1.msra.mxu0 0.0
      %1370 = vmatprep.subr.mxu0 0.0
      %1371 = vmatpush1.msra.mxu0 0.0
      %1372 = vmatprep.subr.mxu0 0.0
      %1373 = vmatpush1.msra.mxu0 0.0
      %1374 = vmatprep.subr.mxu0 0.0
      %1375 = vmatpush1.msra.mxu0 0.0
      %1376 = vmatprep.subr.mxu0 0.0
      %1377 = vmatpush1.msra.mxu0 0.0
      %1378 = vmatprep.subr.mxu0 0.0
      %1379 = vmatpush1.msra.mxu0 0.0
      %1380 = vmatprep.subr.mxu0 0.0
      %1381 = vmatpush1.msra.mxu0 0.0
      %1382 = vmatprep.subr.mxu0 0.0
      %1383 = vmatpush1.msra.mxu0 0.0
      %1384 = vmatprep.subr.mxu0 0.0
      %1385 = vmatpush1.msra.mxu0 0.0
      %1386 = vmatprep.subr.mxu0 0.0
      %1387 = vmatpush1.msra.mxu0 %v1356
      %1388 = vmatprep.subr.mxu0 0.0
      %1389 = vmatpush1.msra.mxu0 %v1348
      %1390 = vmatprep.subr.mxu0 0.0
      %1391 = vmatpush2.msra.mxu0 0.0
      %1392 = vmatprep.subr.mxu0 0.0
      %1393 = vmatpush2.msra.mxu0 0.0
      %1394 = vmatprep.subr.mxu0 0.0
      %1395 = vmatpush2.msra.mxu0 0.0
      %1396 = vmatprep.subr.mxu0 0.0
      %1397 = vmatpush2.msra.mxu0 0.0
      %1398 = vmatprep.subr.mxu0 0.0
      %1399 = vmatpush2.msra.mxu0 0.0
      %1400 = vmatprep.subr.mxu0 0.0
      %1401 = vmatpush2.msra.mxu0 0.0
      %1402 = vmatprep.subr.mxu0 0.0
      %1403 = vmatpush2.msra.mxu0 0.0
      %1404 = vmatprep.subr.mxu0 0.0
      %1405 = vmatpush2.msra.mxu0 0.0
      %1406 = vmatprep.subr.mxu0 0.0
      %1407 = vmatpush2.msra.mxu0 0.0
      %1408 = vmatprep.subr.mxu0 0.0
      %1409 = vmatpush2.msra.mxu0 0.0
      %1410 = vmatprep.subr.mxu0 0.0
      %1411 = vmatpush2.msra.mxu0 0.0
      %1412 = vmatprep.subr.mxu0 0.0
      %1413 = vmatpush2.msra.mxu0 0.0
      %1414 = vmatprep.subr.mxu0 0.0
      %1415 = vmatpush2.msra.mxu0 0.0
      %1416 = vmatprep.subr.mxu0 0.0
      %1417 = vmatpush2.msra.mxu0 0.0
      %1418 = vmatprep.subr.mxu0 0.0
      %1419 = vmatpush2.msra.mxu0 0.0
      %1420 = vmatprep.subr.mxu0 0.0
      %1421 = vmatpush2.msra.mxu0 0.0
      %1422 = vmatprep.mubr.f32.mxu0 0.0
      %1423 = vmatmul.mubr.f32.gmra.mxu0 %v996
      %v1424 = vpop.f32.mrf.mxu0
      %v1425 = vadd.f32 0.0, %v1424
      %v1426 = vpop.f32.mrf.mxu0
      %1427 = vmatprep.mubr.f32.mxu0 0.0
      %1428 = vmatmul.mubr.f32.gmra.mxu0 %v999
      %v1429 = vpop.f32.mrf.mxu0
      %v1430 = vadd.f32 0.0, %v1429
      %v1431 = vpop.f32.mrf.mxu0
      %1432 = vmatprep.mubr.f32.mxu0 0.0
      %1433 = vmatmul.mubr.f32.gmra.mxu0 %v1002
      %v1434 = vpop.f32.mrf.mxu0
      %v1435 = vadd.f32 0.0, %v1434
      %v1436 = vpop.f32.mrf.mxu0
      %1437 = vmatprep.mubr.f32.mxu0 0.0
      %1438 = vmatmul.mubr.f32.gmra.mxu0 %v1005
      %v1439 = vpop.f32.mrf.mxu0
      %v1440 = vadd.f32 0.0, %v1439
      %v1441 = vpop.f32.mrf.mxu0
      %1442 = vmatprep.mubr.f32.mxu0 0.0
      %1443 = vmatmul.mubr.f32.gmra.mxu0 %v1008
      %v1444 = vpop.f32.mrf.mxu0
      %v1445 = vadd.f32 0.0, %v1444
      %v1446 = vpop.f32.mrf.mxu0
      %1447 = vmatprep.mubr.f32.mxu0 0.0
      %1448 = vmatmul.mubr.f32.gmra.mxu0 %v1011
      %v1449 = vpop.f32.mrf.mxu0
      %v1450 = vadd.f32 0.0, %v1449
      %v1451 = vpop.f32.mrf.mxu0
      %1452 = vmatprep.mubr.f32.mxu0 0.0
      %1453 = vmatmul.mubr.f32.gmra.mxu0 %v1014
      %v1454 = vpop.f32.mrf.mxu0
      %v1455 = vadd.f32 0.0, %v1454
      %v1456 = vpop.f32.mrf.mxu0
      %1457 = vmatprep.mubr.f32.mxu0 0.0
      %1458 = vmatmul.mubr.f32.gmra.mxu0 %v1017
      %v1459 = vpop.f32.mrf.mxu0
      %v1460 = vadd.f32 0.0, %v1459
      %v1461 = vpop.f32.mrf.mxu0
      %1462 = vmatprep.mubr.f32.mxu0 0.0
      %1463 = vmatmul.mubr.f32.gmra.mxu0 %v1020
      %v1464 = vpop.f32.mrf.mxu0
      %v1465 = vadd.f32 0.0, %v1464
      %v1466 = vpop.f32.mrf.mxu0
      %1467 = vmatprep.mubr.f32.mxu0 0.0
      %1468 = vmatmul.mubr.f32.gmra.mxu0 %v1023
      %v1469 = vpop.f32.mrf.mxu0
      %v1470 = vadd.f32 0.0, %v1469
      %v1471 = vpop.f32.mrf.mxu0
      %1472 = vmatprep.mubr.f32.mxu0 0.0
      %1473 = vmatmul.mubr.f32.gmra.mxu0 %v1026
      %v1474 = vpop.f32.mrf.mxu0
      %v1475 = vadd.f32 0.0, %v1474
      %v1476 = vpop.f32.mrf.mxu0
      %1477 = vmatprep.mubr.f32.mxu0 0.0
      %1478 = vmatmul.mubr.f32.gmra.mxu0 %v1029
      %v1479 = vpop.f32.mrf.mxu0
      %v1480 = vadd.f32 0.0, %v1479
      %v1481 = vpop.f32.mrf.mxu0
      %1482 = vmatprep.mubr.f32.mxu0 0.0
      %1483 = vmatmul.mubr.f32.gmra.mxu0 %v1032
      %v1484 = vpop.f32.mrf.mxu0
      %v1485 = vadd.f32 0.0, %v1484
      %v1486 = vpop.f32.mrf.mxu0
      %1487 = vmatprep.mubr.f32.mxu0 0.0
      %1488 = vmatmul.mubr.f32.gmra.mxu0 %v1035
      %v1489 = vpop.f32.mrf.mxu0
      %v1490 = vadd.f32 0.0, %v1489
      %v1491 = vpop.f32.mrf.mxu0
      %1492 = vmatprep.mubr.f32.mxu0 0.0
      %1493 = vmatmul.mubr.f32.gmra.mxu0 %v1350
      %v1494 = vpop.f32.mrf.mxu0
      %v1495 = vadd.f32 0.0, %v1494
      %v1496 = vpop.f32.mrf.mxu0
      %1497 = vmatprep.mubr.f32.mxu0 0.0
      %1498 = vmatmul.mubr.f32.gmra.mxu0 %v1353
      %v1499 = vpop.f32.mrf.mxu0
      %v1500 = vadd.f32 0.0, %v1499
      %v1501 = vpop.f32.mrf.mxu0
      %1502 = vdwg.mxu0
      %v1503 = vadd.f32 %v1261, %v1425
      %v1504 = vadd.f32 %v1266, %v1430
      %v1505 = vadd.f32 %v1271, %v1435
      %v1506 = vadd.f32 %v1276, %v1440
      %v1507 = vadd.f32 %v1281, %v1445
      %v1508 = vadd.f32 %v1286, %v1450
      %v1509 = vadd.f32 %v1291, %v1455
      %v1510 = vadd.f32 %v1296, %v1460
      %v1511 = vadd.f32 %v1301, %v1465
      %v1512 = vadd.f32 %v1306, %v1470
      %v1513 = vadd.f32 %v1311, %v1475
      %v1514 = vadd.f32 %v1316, %v1480
      %v1515 = vadd.f32 %v1321, %v1485
      %v1516 = vadd.f32 %v1326, %v1490
      %v1517 = vadd.f32 %v1331, %v1495
      %v1518 = vadd.f32 %v1336, %v1500
      %v1519 = vsel %vm632, %v1503, 0.0
      %v1520 = vsel %vm632, %v1504, 0.0
      %v1521 = vadd.f32 %v1519, %v1520
      %v1522 = vsel %vm632, %v1505, 0.0
      %v1523 = vadd.f32 %v1521, %v1522
      %v1524 = vsel %vm632, %v1506, 0.0
      %v1525 = vadd.f32 %v1523, %v1524
      %v1526 = vsel %vm632, %v1507, 0.0
      %v1527 = vadd.f32 %v1525, %v1526
      %v1528 = vsel %vm632, %v1508, 0.0
      %v1529 = vadd.f32 %v1527, %v1528
      %v1530 = vsel %vm632, %v1509, 0.0
      %v1531 = vadd.f32 %v1529, %v1530
      %v1532 = vsel %vm632, %v1510, 0.0
      %v1533 = vadd.f32 %v1531, %v1532
      %v1534 = vsel %vm632, %v1511, 0.0
      %v1535 = vadd.f32 %v1533, %v1534
      %v1536 = vsel %vm632, %v1512, 0.0
      %v1537 = vadd.f32 %v1535, %v1536
      %v1538 = vsel %vm632, %v1513, 0.0
      %v1539 = vadd.f32 %v1537, %v1538
      %v1540 = vsel %vm632, %v1514, 0.0
      %v1541 = vadd.f32 %v1539, %v1540
      %v1542 = vsel %vm632, %v1515, 0.0
      %v1543 = vadd.f32 %v1541, %v1542
      %v1544 = vsel %vm632, %v1516, 0.0
      %v1545 = vadd.f32 %v1543, %v1544
      %v1546 = vsel %vm632, %v1517, 0.0
      %v1547 = vadd.f32 %v1545, %v1546
      %v1548 = vsel %vm632, %v1518, 0.0
      %v1549 = vadd.f32 %v1547, %v1548
      %v1550 = vrot.slane %v1549, 4
      %v1551 = vadd.f32 %v1549, %v1550
      %v1552 = vrot.slane %v1551, 2
      %v1553 = vadd.f32 %v1551, %v1552
      %v1554 = vrot.slane %v1553, 1
      %v1555 = vadd.f32 %v1553, %v1554
      %v1556 = vmul.f32 %v1503, %v1503
      %v1557 = vmul.f32 %v1504, %v1504
      %v1558 = vmul.f32 %v1505, %v1505
      %v1559 = vmul.f32 %v1506, %v1506
      %v1560 = vmul.f32 %v1507, %v1507
      %v1561 = vmul.f32 %v1508, %v1508
      %v1562 = vmul.f32 %v1509, %v1509
      %v1563 = vmul.f32 %v1510, %v1510
      %v1564 = vmul.f32 %v1511, %v1511
      %v1565 = vmul.f32 %v1512, %v1512
      %v1566 = vmul.f32 %v1513, %v1513
      %v1567 = vmul.f32 %v1514, %v1514
      %v1568 = vmul.f32 %v1515, %v1515
      %v1569 = vmul.f32 %v1516, %v1516
      %v1570 = vmul.f32 %v1517, %v1517
      %v1571 = vmul.f32 %v1518, %v1518
      %v1572 = vsel %vm632, %v1556, 0.0
      %v1573 = vsel %vm632, %v1557, 0.0
      %v1574 = vadd.f32 %v1572, %v1573
      %v1575 = vsel %vm632, %v1558, 0.0
      %v1576 = vadd.f32 %v1574, %v1575
      %v1577 = vsel %vm632, %v1559, 0.0
      %v1578 = vadd.f32 %v1576, %v1577
      %v1579 = vsel %vm632, %v1560, 0.0
      %v1580 = vadd.f32 %v1578, %v1579
      %v1581 = vsel %vm632, %v1561, 0.0
      %v1582 = vadd.f32 %v1580, %v1581
      %v1583 = vsel %vm632, %v1562, 0.0
      %v1584 = vadd.f32 %v1582, %v1583
      %v1585 = vsel %vm632, %v1563, 0.0
      %v1586 = vadd.f32 %v1584, %v1585
      %v1587 = vsel %vm632, %v1564, 0.0
      %v1588 = vadd.f32 %v1586, %v1587
      %v1589 = vsel %vm632, %v1565, 0.0
      %v1590 = vadd.f32 %v1588, %v1589
      %v1591 = vsel %vm632, %v1566, 0.0
      %v1592 = vadd.f32 %v1590, %v1591
      %v1593 = vsel %vm632, %v1567, 0.0
      %v1594 = vadd.f32 %v1592, %v1593
      %v1595 = vsel %vm632, %v1568, 0.0
      %v1596 = vadd.f32 %v1594, %v1595
      %v1597 = vsel %vm632, %v1569, 0.0
      %v1598 = vadd.f32 %v1596, %v1597
      %v1599 = vsel %vm632, %v1570, 0.0
      %v1600 = vadd.f32 %v1598, %v1599
      %v1601 = vsel %vm632, %v1571, 0.0
      %v1602 = vadd.f32 %v1600, %v1601
      %v1603 = vrot.slane %v1602, 4
      %v1604 = vadd.f32 %v1602, %v1603
      %v1605 = vrot.slane %v1604, 2
      %v1606 = vadd.f32 %v1604, %v1605
      %v1607 = vrot.slane %v1606, 1
      %v1608 = vadd.f32 %v1606, %v1607
      %vm1609 = vcmask 1040384
      %v1610 = vsel %vm1609, %v1555, %v1608
      %vm1611 = vcmask 25600
      %1612 = vst.msk [vmem:[%s467] sm:$0x3] %vm1611, %v1610
      %1613 = vst.msk [vmem:[%s458] sm:$0xff] %vm632, %v1503
      %1614 = vst.msk [vmem:[%s458 + $0x8] sm:$0xff] %vm632, %v1504
      %1615 = vst.msk [vmem:[%s458 + $0x10] sm:$0xff] %vm632, %v1505
      %1616 = vst.msk [vmem:[%s458 + $0x18] sm:$0xff] %vm632, %v1506
      %1617 = vst.msk [vmem:[%s458 + $0x20] sm:$0xff] %vm632, %v1507
      %1618 = vst.msk [vmem:[%s458 + $0x28] sm:$0xff] %vm632, %v1508
      %1619 = vst.msk [vmem:[%s458 + $0x30] sm:$0xff] %vm632, %v1509
      %1620 = vst.msk [vmem:[%s458 + $0x38] sm:$0xff] %vm632, %v1510
      %1621 = vst.msk [vmem:[%s458 + $0x40] sm:$0xff] %vm632, %v1511
      %1622 = vst.msk [vmem:[%s458 + $0x48] sm:$0xff] %vm632, %v1512
      %1623 = vst.msk [vmem:[%s458 + $0x50] sm:$0xff] %vm632, %v1513
      %1624 = vst.msk [vmem:[%s458 + $0x58] sm:$0xff] %vm632, %v1514
      %1625 = vst.msk [vmem:[%s458 + $0x60] sm:$0xff] %vm632, %v1515
      %1626 = vst.msk [vmem:[%s458 + $0x68] sm:$0xff] %vm632, %v1516
      %1627 = vst.msk [vmem:[%s458 + $0x70] sm:$0xff] %vm632, %v1517
      %1628 = vst.msk [vmem:[%s458 + $0x78] sm:$0xff] %vm632, %v1518
      %s1629 = smul.u32 8, %s24
      %p1630 = scmp.lt.s32.totalorder %s23, 1
      %s1631 = scalar_select %p1630, %s23, 1
      %p1632 = scmp.lt.s32.totalorder %s1629, 15
      %s1633 = scalar_select %p1632, %s1629, 15
      %s1634 = smul.addr %s1633, 2
      %s1635 = smul.addr %s1631, 32
      %s1636 = sadd.s32 %s1634, %s1635
      %s1637 = smul.addr %s1636, 8
      %s1638 = scalar_lea.vmem %s6, %s1637
      %p1639 = scmp.lt.s32.totalorder %s23, 1
      %s1640 = scalar_select %p1639, %s23, 1
      %p1641 = scmp.lt.s32.totalorder %s24, 1
      %s1642 = scalar_select %p1641, %s24, 1
      %s1643 = smul.addr %s1640, 2
      %s1644 = sadd.s32 %s1642, %s1643
      %s1645 = smul.addr %s1644, 2
      %s1646 = scalar_lea.vmem %s7, %s1645
      // Predicated region
      $region61: #{basic_block_forward.4} parent=43 // pred_check
        %p1647 = pneg %p214
      $region62: #{basic_block_forward.4} parent=43 // pred_check_branch
        %1649 = sbr.rel (%p1647) target = $region64
      $region63: #{basic_block_forward.4} parent=43 // pred_region
        %s1650 = smul.u32 8, %s24
      $region64: #{basic_block_forward.4} parent=43 // pred_fallthru
        _
      // Predicated region
      $region65: #{basic_block_forward.4} parent=43 // pred_check
        %p1651 = pneg %p242
      $region66: #{basic_block_forward.4} parent=43 // pred_check_branch
        %1653 = sbr.rel (%p1651) target = $region68
      $region67: #{basic_block_forward.4} parent=43 // pred_region
        _
      $region68: #{basic_block_forward.4} parent=43 // pred_fallthru
        _
    $region44: #{basic_block_forward.4} parent=5 // pred_fallthru
      _
    %p1654 = scmp.le.s32.totalorder 2, %s14
    // Predicated region
    $region69: #{basic_block_forward.4} parent=5 // pred_check
      %p1655 = pneg %p1654
    $region70: #{basic_block_forward.4} parent=5 // pred_check_branch
      %1657 = sbr.rel (%p1655) target = $region72
    $region71: #{basic_block_forward.4} parent=5 // pred_region
      %s1658 = ssub.s32 %s14, 2
      // Predicated region
      $region73: #{basic_block_forward.4} parent=71 // pred_check
        %p1659 = pneg %p220
      $region74: #{basic_block_forward.4} parent=71 // pred_check_branch
        %1661 = sbr.rel (%p1659) target = $region76
      $region75: #{basic_block_forward.4} parent=71 // pred_region
        %s1662 = smul.u32 8, %s26
        %p1663 = scmp.lt.s32.totalorder %s25, 1
        %s1664 = scalar_select %p1663, %s25, 1
        %p1665 = scmp.lt.s32.totalorder %s1662, 15
        %s1666 = scalar_select %p1665, %s1662, 15
        %s1667 = smul.addr %s1666, 2
        %s1668 = smul.addr %s1664, 32
        %s1669 = sadd.s32 %s1667, %s1668
        %s1670 = smul.addr %s1669, 8
        %s1671 = scalar_lea.vmem %s6, %s1670
      $region76: #{basic_block_forward.4} parent=71 // pred_fallthru
        _
      // Predicated region
      $region77: #{basic_block_forward.4} parent=71 // pred_check
        %p1672 = pneg %p248
      $region78: #{basic_block_forward.4} parent=71 // pred_check_branch
        %1674 = sbr.rel (%p1672) target = $region80
      $region79: #{basic_block_forward.4} parent=71 // pred_region
        %p1675 = scmp.lt.s32.totalorder %s25, 1
        %s1676 = scalar_select %p1675, %s25, 1
        %p1677 = scmp.lt.s32.totalorder %s26, 1
        %s1678 = scalar_select %p1677, %s26, 1
        %s1679 = smul.addr %s1676, 2
        %s1680 = sadd.s32 %s1678, %s1679
        %s1681 = smul.addr %s1680, 2
        %s1682 = scalar_lea.vmem %s7, %s1681
      $region80: #{basic_block_forward.4} parent=71 // pred_fallthru
        _
    $region72: #{basic_block_forward.4} parent=5 // pred_fallthru
      _
  $region6: #{basic_block_forward.4} parent=0 // loop_footer
    %s18 = sadd.s32 1, %s14
  $region7: #{basic_block_forward.4} parent=0 // loop_footer_branch
    %13 = sbr.rel target = $region3
  $region8: #{basic_block_forward.4} parent=0 // loop_exit
    _

// kernel: basic_block_forward.5
$region0: #{basic_block_forward.5}
  #allocation0 [shape = 'u32[]', space=smem, size = 0x4, offset = 0x4, fixed_abs, tag = 'smem constant byte address 0x4 - core index']
  #allocation1 [shape = 'u32[144,128]{1,0:T(1,128)}', space=vmem, size = 0x12000, scoped, tag = 'internal scratch']
  #allocation2 [shape = 'f32[10,18,4]{2,1,0:T(8,128)}', space=vmem, size = 0x1e000, scoped, tag = 'scratch operand']
  %s0 = inlined_call_operand.vmem [shape: f32[2,16,16,4], index: 0, kind: input, shape index: {}, may-alias: {0,1,2}]
  %s1 = inlined_call_operand.vmem [shape: f32[2,16,16,4], index: 1, kind: input, shape index: {}, may-alias: {0,1,2}]
  %s2 = inlined_call_operand.vmem [shape: f32[2,16,16,4], index: 2, kind: input, shape index: {}, may-alias: {0,1,2}]
  %s3 = inlined_call_operand.vmem [shape: f32[1,4], index: 3, kind: input, shape index: {}]
  %s4 = inlined_call_operand.vmem [shape: f32[1,4], index: 4, kind: input, shape index: {}]
  %s5 = inlined_call_operand.vmem [shape: f32[3,3,4,4], index: 5, kind: input, shape index: {}]
  %s6 = inlined_call_operand.vmem [shape: f32[2,16,16,4], index: 6, kind: input, shape index: {}]
  %s7 = inlined_call_operand.vmem [shape: f32[2,16,16,4], index: 7, kind: output, shape index: {}]
  %s8 = sld [smem:[#allocation0]]
  $region77: #{basic_block_forward.5} parent=0
    _
  %s10 = ssub.s32 1, %s8
  %s11 = scalar_select 0, %s10, %s8
  loop: start=0, step=1, limit=6
  $region2: #{basic_block_forward.5} parent=0 // loop_pre_header
    _
  $region3: #{basic_block_forward.5} parent=0 // loop_header
    %s13 = sphi 0, %s17
    %p14 = scmp.ge.s32.totalorder %s13, 6
    %s20 = sphi 0, %s32
    %s21 = sphi 0, %s28
    %s22 = sphi 0, %s20
    %s23 = sphi 0, %s21
    %s24 = sphi 0, %s22
    %s25 = sphi 0, %s23
    %s45 = sphi 0, %s47
    %s48 = sphi 0, %s45
    %s49 = sphi 0, %s48
    %s65 = sphi 0, %s49
    %s73 = sphi 0, %s75
    %s76 = sphi 0, %s73
    %s77 = sphi 0, %s76
    %s93 = sphi 0, %s77
    %s109 = sphi 0, %s111
    %s112 = sphi 0, %s109
    %s113 = sphi 0, %s112
    %s129 = sphi 0, %s113
    %s133 = sphi 0, %s133
    %s135 = sphi 0, %s133
    %s136 = sphi 0, %s135
    %s150 = sphi 0, %s136
    %s154 = sphi 0, %s154
    %s156 = sphi 0, %s154
    %s157 = sphi 0, %s156
    %s171 = sphi 0, %s157
    %s175 = sphi 0, %s175
    %s177 = sphi 0, %s175
    %s178 = sphi 0, %s177
    %s192 = sphi 0, %s178
    %s200 = sphi 0, %s202
    %s203 = sphi 0, %s200
    %s204 = sphi 0, %s203
    %s220 = sphi 0, %s204
    %s228 = sphi 0, %s230
    %s231 = sphi 0, %s228
    %s232 = sphi 0, %s231
    %s248 = sphi 0, %s232
  $region4: #{basic_block_forward.5} parent=0 // loop_header_branch
    %16 = sbr.rel (%p14) target = $region8
  $region5: #{basic_block_forward.5} parent=0 // loop_body
    %s18 = ssub.s32 %s13, 1
    %s19 = ssub.s32 %s13, 2
    %s26 = sadd.s32 1, %s21
    %p27 = scmp.ge.s32.totalorder %s26, 2
    %s28 = scalar_select %p27, 0, %s26
    %s29 = sadd.s32 1, %s20
    %s30 = scalar_select %p27, %s29, %s20
    %p31 = scmp.ge.s32.totalorder %s30, 2
    %s32 = scalar_select %p31, 0, %s30
    %s33 = smul.u32 %s21, 8
    %s34 = ssub.s32 %s33, 1
    %p35 = scmp.gt.s32.totalorder %s34, 0
    %s36 = scalar_select %p35, %s34, 0
    %s37 = smul.u32 %s28, 8
    %s38 = ssub.s32 %s37, 1
    %p39 = scmp.gt.s32.totalorder %s38, 0
    %s40 = scalar_select %p39, %s38, 0
    %s41 = ssub.s32 %s20, %s32
    %s42 = ssub.s32 %s36, %s40
    %s43 = sor.u32 %s41, %s42
    %p44 = scmp.eq.s32.totalorder %s43, 0
    %s46 = sadd.s32 %s45, 1
    %s47 = scalar_select %p44, %s45, %s46
    %p50 = pneg %p44
    %p51 = scmp.eq.s32.totalorder %s13, 3
    %p52 = por %p50, %p51
    %p53 = scmp.ne.s32.totalorder %s45, %s48
    %p54 = scmp.eq.s32.totalorder %s13, 0
    %p55 = por %p53, %p54
    %p56 = scmp.ne.s32.totalorder %s45, %s48
    %p57 = scmp.eq.s32.totalorder %s18, 3
    %p58 = por %p56, %p57
    %p59 = scmp.ne.s32.totalorder %s48, %s49
    %p60 = scmp.eq.s32.totalorder %s18, 0
    %p61 = por %p59, %p60
    %p62 = scmp.ne.s32.totalorder %s48, %s49
    %p63 = scmp.eq.s32.totalorder %s19, 3
    %p64 = por %p62, %p63
    %p66 = scmp.ne.s32.totalorder %s49, %s65
    %p67 = scmp.eq.s32.totalorder %s19, 0
    %p68 = por %p66, %p67
    %s69 = ssub.s32 %s20, %s32
    %s70 = ssub.s32 %s21, %s28
    %s71 = sor.u32 %s69, %s70
    %p72 = scmp.eq.s32.totalorder %s71, 0
    %s74 = sadd.s32 %s73, 1
    %s75 = scalar_select %p72, %s73, %s74
    %p78 = pneg %p72
    %p79 = scmp.eq.s32.totalorder %s13, 3
    %p80 = por %p78, %p79
    %p81 = scmp.ne.s32.totalorder %s73, %s76
    %p82 = scmp.eq.s32.totalorder %s13, 0
    %p83 = por %p81, %p82
    %p84 = scmp.ne.s32.totalorder %s73, %s76
    %p85 = scmp.eq.s32.totalorder %s18, 3
    %p86 = por %p84, %p85
    %p87 = scmp.ne.s32.totalorder %s76, %s77
    %p88 = scmp.eq.s32.totalorder %s18, 0
    %p89 = por %p87, %p88
    %p90 = scmp.ne.s32.totalorder %s76, %s77
    %p91 = scmp.eq.s32.totalorder %s19, 3
    %p92 = por %p90, %p91
    %p94 = scmp.ne.s32.totalorder %s77, %s93
    %p95 = scmp.eq.s32.totalorder %s19, 0
    %p96 = por %p94, %p95
    %s97 = sadd.s32 %s21, 1
    %s98 = smul.u32 %s97, 8
    %p99 = scmp.lt.s32.totalorder %s98, 15
    %s100 = scalar_select %p99, %s98, 15
    %s101 = sadd.s32 %s28, 1
    %s102 = smul.u32 %s101, 8
    %p103 = scmp.lt.s32.totalorder %s102, 15
    %s104 = scalar_select %p103, %s102, 15
    %s105 = ssub.s32 %s20, %s32
    %s106 = ssub.s32 %s100, %s104
    %s107 = sor.u32 %s105, %s106
    %p108 = scmp.eq.s32.totalorder %s107, 0
    %s110 = sadd.s32 %s109, 1
    %s111 = scalar_select %p108, %s109, %s110
    %p114 = pneg %p108
    %p115 = scmp.eq.s32.totalorder %s13, 3
    %p116 = por %p114, %p115
    %p117 = scmp.ne.s32.totalorder %s109, %s112
    %p118 = scmp.eq.s32.totalorder %s13, 0
    %p119 = por %p117, %p118
    %p120 = scmp.ne.s32.totalorder %s109, %s112
    %p121 = scmp.eq.s32.totalorder %s18, 3
    %p122 = por %p120, %p121
    %p123 = scmp.ne.s32.totalorder %s112, %s113
    %p124 = scmp.eq.s32.totalorder %s18, 0
    %p125 = por %p123, %p124
    %p126 = scmp.ne.s32.totalorder %s112, %s113
    %p127 = scmp.eq.s32.totalorder %s19, 3
    %p128 = por %p126, %p127
    %p130 = scmp.ne.s32.totalorder %s113, %s129
    %p131 = scmp.eq.s32.totalorder %s19, 0
    %p132 = por %p130, %p131
    %s134 = sadd.s32 %s133, 1
    %p137 = scmp.eq.s32.totalorder %s13, 3
    %p138 = scmp.ne.s32.totalorder %s133, %s135
    %p139 = scmp.eq.s32.totalorder %s13, 0
    %p140 = por %p138, %p139
    %p141 = scmp.ne.s32.totalorder %s133, %s135
    %p142 = scmp.eq.s32.totalorder %s18, 3
    %p143 = por %p141, %p142
    %p144 = scmp.ne.s32.totalorder %s135, %s136
    %p145 = scmp.eq.s32.totalorder %s18, 0
    %p146 = por %p144, %p145
    %p147 = scmp.ne.s32.totalorder %s135, %s136
    %p148 = scmp.eq.s32.totalorder %s19, 3
    %p149 = por %p147, %p148
    %p151 = scmp.ne.s32.totalorder %s136, %s150
    %p152 = scmp.eq.s32.totalorder %s19, 0
    %p153 = por %p151, %p152
    %s155 = sadd.s32 %s154, 1
    %p158 = scmp.eq.s32.totalorder %s13, 3
    %p159 = scmp.ne.s32.totalorder %s154, %s156
    %p160 = scmp.eq.s32.totalorder %s13, 0
    %p161 = por %p159, %p160
    %p162 = scmp.ne.s32.totalorder %s154, %s156
    %p163 = scmp.eq.s32.totalorder %s18, 3
    %p164 = por %p162, %p163
    %p165 = scmp.ne.s32.totalorder %s156, %s157
    %p166 = scmp.eq.s32.totalorder %s18, 0
    %p167 = por %p165, %p166
    %p168 = scmp.ne.s32.totalorder %s156, %s157
    %p169 = scmp.eq.s32.totalorder %s19, 3
    %p170 = por %p168, %p169
    %p172 = scmp.ne.s32.totalorder %s157, %s171
    %p173 = scmp.eq.s32.totalorder %s19, 0
    %p174 = por %p172, %p173
    %s176 = sadd.s32 %s175, 1
    %p179 = scmp.eq.s32.totalorder %s13, 3
    %p180 = scmp.ne.s32.totalorder %s175, %s177
    %p181 = scmp.eq.s32.totalorder %s13, 0
    %p182 = por %p180, %p181
    %p183 = scmp.ne.s32.totalorder %s175, %s177
    %p184 = scmp.eq.s32.totalorder %s18, 3
    %p185 = por %p183, %p184
    %p186 = scmp.ne.s32.totalorder %s177, %s178
    %p187 = scmp.eq.s32.totalorder %s18, 0
    %p188 = por %p186, %p187
    %p189 = scmp.ne.s32.totalorder %s177, %s178
    %p190 = scmp.eq.s32.totalorder %s19, 3
    %p191 = por %p189, %p190
    %p193 = scmp.ne.s32.totalorder %s178, %s192
    %p194 = scmp.eq.s32.totalorder %s19, 0
    %p195 = por %p193, %p194
    %s196 = ssub.s32 %s20, %s32
    %s197 = ssub.s32 %s21, %s28
    %s198 = sor.u32 %s196, %s197
    %p199 = scmp.eq.s32.totalorder %s198, 0
    %s201 = sadd.s32 %s200, 1
    %s202 = scalar_select %p199, %s200, %s201
    %p205 = pneg %p199
    %p206 = scmp.eq.s32.totalorder %s13, 3
    %p207 = por %p205, %p206
    %p208 = scmp.ne.s32.totalorder %s200, %s203
    %p209 = scmp.eq.s32.totalorder %s13, 0
    %p210 = por %p208, %p209
    %p211 = scmp.ne.s32.totalorder %s200, %s203
    %p212 = scmp.eq.s32.totalorder %s18, 3
    %p213 = por %p211, %p212
    %p214 = scmp.ne.s32.totalorder %s203, %s204
    %p215 = scmp.eq.s32.totalorder %s18, 0
    %p216 = por %p214, %p215
    %p217 = scmp.ne.s32.totalorder %s203, %s204
    %p218 = scmp.eq.s32.totalorder %s19, 3
    %p219 = por %p217, %p218
    %p221 = scmp.ne.s32.totalorder %s204, %s220
    %p222 = scmp.eq.s32.totalorder %s19, 0
    %p223 = por %p221, %p222
    %s224 = ssub.s32 %s20, %s32
    %s225 = ssub.s32 %s21, %s28
    %s226 = sor.u32 %s224, %s225
    %p227 = scmp.eq.s32.totalorder %s226, 0
    %s229 = sadd.s32 %s228, 1
    %s230 = scalar_select %p227, %s228, %s229
    %p233 = pneg %p227
    %p234 = scmp.eq.s32.totalorder %s13, 3
    %p235 = por %p233, %p234
    %p236 = scmp.ne.s32.totalorder %s228, %s231
    %p237 = scmp.eq.s32.totalorder %s13, 0
    %p238 = por %p236, %p237
    %p239 = scmp.ne.s32.totalorder %s228, %s231
    %p240 = scmp.eq.s32.totalorder %s18, 3
    %p241 = por %p239, %p240
    %p242 = scmp.ne.s32.totalorder %s231, %s232
    %p243 = scmp.eq.s32.totalorder %s18, 0
    %p244 = por %p242, %p243
    %p245 = scmp.ne.s32.totalorder %s231, %s232
    %p246 = scmp.eq.s32.totalorder %s19, 3
    %p247 = por %p245, %p246
    %p249 = scmp.ne.s32.totalorder %s232, %s248
    %p250 = scmp.eq.s32.totalorder %s19, 0
    %p251 = por %p249, %p250
    %p252 = scmp.le.s32.totalorder 1, %s13
    %p253 = scmp.lt.s32.totalorder %s13, 5
    %p254 = pnand %p252, %p253
    %p255 = pneg %p254
    // Predicated region
    $region9: #{basic_block_forward.5} parent=5 // pred_check
      _
    $region10: #{basic_block_forward.5} parent=5 // pred_check_branch
      %257 = sbr.rel (%p254) target = $region12
    $region11: #{basic_block_forward.5} parent=5 // pred_region
      %s258 = ssub.s32 %s13, 1
      // Predicated region
      $region13: #{basic_block_forward.5} parent=11 // pred_check
        %p259 = pneg %p146
      $region14: #{basic_block_forward.5} parent=11 // pred_check_branch
        %261 = sbr.rel (%p259) target = $region16
      $region15: #{basic_block_forward.5} parent=11 // pred_region
        _
      $region16: #{basic_block_forward.5} parent=11 // pred_fallthru
        _
      // Predicated region
      $region17: #{basic_block_forward.5} parent=11 // pred_check
        %p262 = pneg %p167
      $region18: #{basic_block_forward.5} parent=11 // pred_check_branch
        %264 = sbr.rel (%p262) target = $region20
      $region19: #{basic_block_forward.5} parent=11 // pred_region
        _
      $region20: #{basic_block_forward.5} parent=11 // pred_fallthru
        _
      // Predicated region
      $region21: #{basic_block_forward.5} parent=11 // pred_check
        %p265 = pneg %p188
      $region22: #{basic_block_forward.5} parent=11 // pred_check_branch
        %267 = sbr.rel (%p265) target = $region24
      $region23: #{basic_block_forward.5} parent=11 // pred_region
        _
      $region24: #{basic_block_forward.5} parent=11 // pred_fallthru
        _
    $region12: #{basic_block_forward.5} parent=5 // pred_fallthru
      _
    %p268 = scmp.lt.s32.totalorder %s13, 4
    // Predicated region
    $region25: #{basic_block_forward.5} parent=5 // pred_check
      %p269 = pneg %p268
    $region26: #{basic_block_forward.5} parent=5 // pred_check_branch
      %271 = sbr.rel (%p269) target = $region28
    $region27: #{basic_block_forward.5} parent=5 // pred_region
      // Predicated region
      $region29: #{basic_block_forward.5} parent=27 // pred_check
        %p272 = pneg %p55
      $region30: #{basic_block_forward.5} parent=27 // pred_check_branch
        %274 = sbr.rel (%p272) target = $region32
      $region31: #{basic_block_forward.5} parent=27 // pred_region
        %s275 = smul.u32 %s21, 8
        %s276 = ssub.s32 %s275, 1
        %p277 = scmp.gt.s32.totalorder %s276, 0
        %s278 = scalar_select %p277, %s276, 0
        %p279 = scmp.lt.s32.totalorder %s20, 1
        %s280 = scalar_select %p279, %s20, 1
        %p281 = scmp.lt.s32.totalorder %s278, 15
        %s282 = scalar_select %p281, %s278, 15
        %s283 = smul.addr %s282, 2
        %s284 = smul.addr %s280, 32
        %s285 = sadd.s32 %s283, %s284
        %s286 = smul.addr %s285, 8
        %s287 = scalar_lea.vmem %s0, %s286
        %s288 = smul.u32 %s21, 8
        %s289 = ssub.s32 %s288, 1
        %p290 = scmp.gt.s32.totalorder %s289, 0
        %s291 = scalar_select %p290, %s289, 0
      $region32: #{basic_block_forward.5} parent=27 // pred_fallthru
        _
      // Predicated region
      $region33: #{basic_block_forward.5} parent=27 // pred_check
        %p292 = pneg %p83
      $region34: #{basic_block_forward.5} parent=27 // pred_check_branch
        %294 = sbr.rel (%p292) target = $region36
      $region35: #{basic_block_forward.5} parent=27 // pred_region
        %s295 = smul.u32 8, %s21
        %p296 = scmp.lt.s32.totalorder %s20, 1
        %s297 = scalar_select %p296, %s20, 1
        %p298 = scmp.lt.s32.totalorder %s295, 15
        %s299 = scalar_select %p298, %s295, 15
        %s300 = smul.addr %s299, 2
        %s301 = smul.addr %s297, 32
        %s302 = sadd.s32 %s300, %s301
        %s303 = smul.addr %s302, 8
        %s304 = scalar_lea.vmem %s1, %s303
        %s305 = smul.u32 8, %s21
      $region36: #{basic_block_forward.5} parent=27 // pred_fallthru
        _
      // Predicated region
      $region37: #{basic_block_forward.5} parent=27 // pred_check
        %p306 = pneg %p119
      $region38: #{basic_block_forward.5} parent=27 // pred_check_branch
        %308 = sbr.rel (%p306) target = $region40
      $region39: #{basic_block_forward.5} parent=27 // pred_region
        %s309 = sadd.s32 %s21, 1
        %s310 = smul.u32 %s309, 8
        %p311 = scmp.lt.s32.totalorder %s310, 15
        %s312 = scalar_select %p311, %s310, 15
        %p313 = scmp.lt.s32.totalorder %s20, 1
        %s314 = scalar_select %p313, %s20, 1
        %p315 = scmp.lt.s32.totalorder %s312, 15
        %s316 = scalar_select %p315, %s312, 15
        %s317 = smul.addr %s316, 2
        %s318 = smul.addr %s314, 32
        %s319 = sadd.s32 %s317, %s318
        %s320 = smul.addr %s319, 8
        %s321 = scalar_lea.vmem %s2, %s320
        %s322 = sadd.s32 %s21, 1
        %s323 = smul.u32 %s322, 8
        %p324 = scmp.lt.s32.totalorder %s323, 15
        %s325 = scalar_select %p324, %s323, 15
      $region40: #{basic_block_forward.5} parent=27 // pred_fallthru
        _
      // Predicated region
      $region41: #{basic_block_forward.5} parent=27 // pred_check
        %p326 = pneg %p210
      $region42: #{basic_block_forward.5} parent=27 // pred_check_branch
        %328 = sbr.rel (%p326) target = $region44
      $region43: #{basic_block_forward.5} parent=27 // pred_region
        %s329 = smul.u32 8, %s21
        %p330 = scmp.lt.s32.totalorder %s20, 1
        %s331 = scalar_select %p330, %s20, 1
        %p332 = scmp.lt.s32.totalorder %s329, 15
        %s333 = scalar_select %p332, %s329, 15
        %s334 = smul.addr %s333, 2
        %s335 = smul.addr %s331, 32
        %s336 = sadd.s32 %s334, %s335
        %s337 = smul.addr %s336, 8
        %s338 = scalar_lea.vmem %s6, %s337
        %s339 = smul.u32 8, %s21
      $region44: #{basic_block_forward.5} parent=27 // pred_fallthru
        _
    $region28: #{basic_block_forward.5} parent=5 // pred_fallthru
      _
    %p340 = scmp.le.s32.totalorder 1, %s13
    %p341 = scmp.lt.s32.totalorder %s13, 5
    %p342 = pnand %p340, %p341
    %p343 = pneg %p342
    // Predicated region
    $region45: #{basic_block_forward.5} parent=5 // pred_check
      _
    $region46: #{basic_block_forward.5} parent=5 // pred_check_branch
      %345 = sbr.rel (%p342) target = $region48
    $region47: #{basic_block_forward.5} parent=5 // pred_region
      %s346 = ssub.s32 %s13, 1
      %s347 = smul.u32 %s23, 8
      %s348 = ssub.s32 %s347, 1
      %p349 = scmp.gt.s32.totalorder %s348, 0
      %s350 = scalar_select %p349, %s348, 0
      %p351 = scmp.lt.s32.totalorder %s22, 1
      %s352 = scalar_select %p351, %s22, 1
      %p353 = scmp.lt.s32.totalorder %s350, 15
      %s354 = scalar_select %p353, %s350, 15
      %s355 = smul.addr %s354, 2
      %s356 = smul.addr %s352, 32
      %s357 = sadd.s32 %s355, %s356
      %s358 = smul.addr %s357, 8
      %s359 = scalar_lea.vmem %s0, %s358
      %p360 = pneg %p61
      %p361 = pneg %p58
      %s362 = smul.u32 8, %s23
      %p363 = scmp.lt.s32.totalorder %s22, 1
      %s364 = scalar_select %p363, %s22, 1
      %p365 = scmp.lt.s32.totalorder %s362, 15
      %s366 = scalar_select %p365, %s362, 15
      %s367 = smul.addr %s366, 2
      %s368 = smul.addr %s364, 32
      %s369 = sadd.s32 %s367, %s368
      %s370 = smul.addr %s369, 8
      %s371 = scalar_lea.vmem %s1, %s370
      %p372 = pneg %p89
      %p373 = pneg %p86
      %s374 = sadd.s32 %s23, 1
      %s375 = smul.u32 %s374, 8
      %p376 = scmp.lt.s32.totalorder %s375, 15
      %s377 = scalar_select %p376, %s375, 15
      %p378 = scmp.lt.s32.totalorder %s22, 1
      %s379 = scalar_select %p378, %s22, 1
      %p380 = scmp.lt.s32.totalorder %s377, 15
      %s381 = scalar_select %p380, %s377, 15
      %s382 = smul.addr %s381, 2
      %s383 = smul.addr %s379, 32
      %s384 = sadd.s32 %s382, %s383
      %s385 = smul.addr %s384, 8
      %s386 = scalar_lea.vmem %s2, %s385
      %p387 = pneg %p125
      %p388 = pneg %p122
      %p389 = pneg %p146
      %p390 = pneg %p143
      %p391 = pneg %p167
      %p392 = pneg %p164
      %p393 = pneg %p188
      %p394 = pneg %p185
      %s395 = smul.u32 8, %s23
      %p396 = scmp.lt.s32.totalorder %s22, 1
      %s397 = scalar_select %p396, %s22, 1
      %p398 = scmp.lt.s32.totalorder %s395, 15
      %s399 = scalar_select %p398, %s395, 15
      %s400 = smul.addr %s399, 2
      %s401 = smul.addr %s397, 32
      %s402 = sadd.s32 %s400, %s401
      %s403 = smul.addr %s402, 8
      %s404 = scalar_lea.vmem %s6, %s403
      %p405 = pneg %p216
      %p406 = pneg %p213
      %p407 = pneg %p244
      %p408 = pneg %p241
      %s409 = smul.u32 8, %s23
      %p410 = scmp.lt.s32.totalorder %s22, 1
      %s411 = scalar_select %p410, %s22, 1
      %p412 = scmp.lt.s32.totalorder %s409, 15
      %s413 = scalar_select %p412, %s409, 15
      %s414 = smul.addr %s413, 2
      %s415 = smul.addr %s411, 32
      %s416 = sadd.s32 %s414, %s415
      %s417 = smul.addr %s416, 8
      %s418 = scalar_lea.vmem %s7, %s417
      %s419 = smul.u32 %s23, 8
      %s420 = ssub.s32 %s419, 1
      %p421 = scmp.gt.s32.totalorder %s420, 0
      %s422 = scalar_select %p421, %s420, 0
      %p423 = scmp.lt.s32.totalorder %s22, 1
      %s424 = scalar_select %p423, %s22, 1
      %p425 = scmp.lt.s32.totalorder %s422, 15
      %s426 = scalar_select %p425, %s422, 15
      %s427 = smul.addr %s426, 2
      %s428 = smul.addr %s424, 32
      %s429 = sadd.s32 %s427, %s428
      %s430 = smul.addr %s429, 8
      %s431 = scalar_lea.vmem %s0, %s430
      %s432 = smul.u32 %s23, 8
      %s433 = ssub.s32 %s432, 1
      %p434 = scmp.gt.s32.totalorder %s433, 0
      %s435 = scalar_select %p434, %s433, 0
      %s436 = smul.u32 8, %s23
      %p437 = scmp.lt.s32.totalorder %s22, 1
      %s438 = scalar_select %p437, %s22, 1
      %p439 = scmp.lt.s32.totalorder %s436, 15
      %s440 = scalar_select %p439, %s436, 15
      %s441 = smul.addr %s440, 2
      %s442 = smul.addr %s438, 32
      %s443 = sadd.s32 %s441, %s442
      %s444 = smul.addr %s443, 8
      %s445 = scalar_lea.vmem %s1, %s444
      %s446 = smul.u32 8, %s23
      %s447 = sadd.s32 %s23, 1
      %s448 = smul.u32 %s447, 8
      %p449 = scmp.lt.s32.totalorder %s448, 15
      %s450 = scalar_select %p449, %s448, 15
      %p451 = scmp.lt.s32.totalorder %s22, 1
      %s452 = scalar_select %p451, %s22, 1
      %p453 = scmp.lt.s32.totalorder %s450, 15
      %s454 = scalar_select %p453, %s450, 15
      %s455 = smul.addr %s454, 2
      %s456 = smul.addr %s452, 32
      %s457 = sadd.s32 %s455, %s456
      %s458 = smul.addr %s457, 8
      %s459 = scalar_lea.vmem %s2, %s458
      %s460 = sadd.s32 %s23, 1
      %s461 = smul.u32 %s460, 8
      %p462 = scmp.lt.s32.totalorder %s461, 15
      %s463 = scalar_select %p462, %s461, 15
      %s464 = smul.u32 8, %s23
      %p465 = scmp.lt.s32.totalorder %s22, 1
      %s466 = scalar_select %p465, %s22, 1
      %p467 = scmp.lt.s32.totalorder %s464, 15
      %s468 = scalar_select %p467, %s464, 15
      %s469 = smul.addr %s468, 2
      %s470 = smul.addr %s466, 32
      %s471 = sadd.s32 %s469, %s470
      %s472 = smul.addr %s471, 8
      %s473 = scalar_lea.vmem %s6, %s472
      %s474 = smul.u32 8, %s23
      %s475 = smul.u32 8, %s23
      %p476 = scmp.lt.s32.totalorder %s22, 1
      %s477 = scalar_select %p476, %s22, 1
      %p478 = scmp.lt.s32.totalorder %s475, 15
      %s479 = scalar_select %p478, %s475, 15
      %s480 = smul.addr %s479, 2
      %s481 = smul.addr %s477, 32
      %s482 = sadd.s32 %s480, %s481
      %s483 = smul.addr %s482, 8
      %s484 = scalar_lea.vmem %s7, %s483
      %s485 = smul.u32 8, %s23
      %v486 = vld [vmem:[%s3] sm:$0x1]
      %v487 = vld [vmem:[%s4] sm:$0x1]
      %vm488 = vcmask 24576
      %489 = vst.msk [vmem:[#allocation2] sm:$0x1] %vm488, 0.0
      %490 = vst.msk [vmem:[#allocation2 + $0x18] sm:$0x1] %vm488, 0.0
      %491 = vst.msk [vmem:[#allocation2 + $0x30] sm:$0x1] %vm488, 0.0
      %492 = vst.msk [vmem:[#allocation2 + $0x48] sm:$0x1] %vm488, 0.0
      %493 = vst.msk [vmem:[#allocation2 + $0x60] sm:$0x1] %vm488, 0.0
      %494 = vst.msk [vmem:[#allocation2 + $0x78] sm:$0x1] %vm488, 0.0
      %495 = vst.msk [vmem:[#allocation2 + $0x90] sm:$0x1] %vm488, 0.0
      %496 = vst.msk [vmem:[#allocation2 + $0xa8] sm:$0x1] %vm488, 0.0
      %497 = vst.msk [vmem:[#allocation2 + $0xc0] sm:$0x1] %vm488, 0.0
      %498 = vst.msk [vmem:[#allocation2 + $0xd8] sm:$0x1] %vm488, 0.0
      %499 = vst.msk [vmem:[#allocation2 + $0x11] sm:$0x1] %vm488, 0.0
      %500 = vst.msk [vmem:[#allocation2 + $0x29] sm:$0x1] %vm488, 0.0
      %501 = vst.msk [vmem:[#allocation2 + $0x41] sm:$0x1] %vm488, 0.0
      %502 = vst.msk [vmem:[#allocation2 + $0x59] sm:$0x1] %vm488, 0.0
      %503 = vst.msk [vmem:[#allocation2 + $0x71] sm:$0x1] %vm488, 0.0
      %504 = vst.msk [vmem:[#allocation2 + $0x89] sm:$0x1] %vm488, 0.0
      %505 = vst.msk [vmem:[#allocation2 + $0xa1] sm:$0x1] %vm488, 0.0
      %506 = vst.msk [vmem:[#allocation2 + $0xb9] sm:$0x1] %vm488, 0.0
      %507 = vst.msk [vmem:[#allocation2 + $0xd1] sm:$0x1] %vm488, 0.0
      %508 = vst.msk [vmem:[#allocation2 + $0xe9] sm:$0x1] %vm488, 0.0
      %v509 = vld [vmem:[%s445] sm:$0xff]
      %v510 = vld [vmem:[%s445 + $0x8] sm:$0xff]
      %v511 = vld [vmem:[%s445 + $0x10] sm:$0xff]
      %v512 = vld [vmem:[%s445 + $0x18] sm:$0xff]
      %v513 = vld [vmem:[%s445 + $0x20] sm:$0xff]
      %v514 = vld [vmem:[%s445 + $0x28] sm:$0xff]
      %v515 = vld [vmem:[%s445 + $0x30] sm:$0xff]
      %v516 = vld [vmem:[%s445 + $0x38] sm:$0xff]
      %v517 = vld [vmem:[%s445 + $0x40] sm:$0xff]
      %v518 = vld [vmem:[%s445 + $0x48] sm:$0xff]
      %v519 = vld [vmem:[%s445 + $0x50] sm:$0xff]
      %v520 = vld [vmem:[%s445 + $0x58] sm:$0xff]
      %v521 = vld [vmem:[%s445 + $0x60] sm:$0xff]
      %v522 = vld [vmem:[%s445 + $0x68] sm:$0xff]
      %v523 = vld [vmem:[%s445 + $0x70] sm:$0xff]
      %v524 = vld [vmem:[%s445 + $0x78] sm:$0xff]
      %v526 = vlaneseq
      %v527 = vshrl.u32 %v526, 7
      %v528 = vsub.s32 0, %v527
      %v529 = vrot.slane %v486, %v528
      %v531 = vmul.f32 %v509, %v529
      %v532 = vmul.f32 %v510, %v529
      %v533 = vmul.f32 %v511, %v529
      %v534 = vmul.f32 %v512, %v529
      %v535 = vmul.f32 %v513, %v529
      %v536 = vmul.f32 %v514, %v529
      %v537 = vmul.f32 %v515, %v529
      %v538 = vmul.f32 %v516, %v529
      %v539 = vmul.f32 %v517, %v529
      %v540 = vmul.f32 %v518, %v529
      %v541 = vmul.f32 %v519, %v529
      %v542 = vmul.f32 %v520, %v529
      %v543 = vmul.f32 %v521, %v529
      %v544 = vmul.f32 %v522, %v529
      %v545 = vmul.f32 %v523, %v529
      %v546 = vmul.f32 %v524, %v529
      %v548 = vlaneseq
      %v549 = vshrl.u32 %v548, 7
      %v550 = vsub.s32 0, %v549
      %v551 = vrot.slane %v487, %v550
      %v553 = vadd.f32 %v531, %v551
      %v554 = vadd.f32 %v532, %v551
      %v555 = vadd.f32 %v533, %v551
      %v556 = vadd.f32 %v534, %v551
      %v557 = vadd.f32 %v535, %v551
      %v558 = vadd.f32 %v536, %v551
      %v559 = vadd.f32 %v537, %v551
      %v560 = vadd.f32 %v538, %v551
      %v561 = vadd.f32 %v539, %v551
      %v562 = vadd.f32 %v540, %v551
      %v563 = vadd.f32 %v541, %v551
      %v564 = vadd.f32 %v542, %v551
      %v565 = vadd.f32 %v543, %v551
      %v566 = vadd.f32 %v544, %v551
      %v567 = vadd.f32 %v545, %v551
      %v568 = vadd.f32 %v546, %v551
      %v569 = vmul.f32 %v553, 0.5
      %v570 = vmul.f32 %v554, 0.5
      %v571 = vmul.f32 %v555, 0.5
      %v572 = vmul.f32 %v556, 0.5
      %v573 = vmul.f32 %v557, 0.5
      %v574 = vmul.f32 %v558, 0.5
      %v575 = vmul.f32 %v559, 0.5
      %v576 = vmul.f32 %v560, 0.5
      %v577 = vmul.f32 %v561, 0.5
      %v578 = vmul.f32 %v562, 0.5
      %v579 = vmul.f32 %v563, 0.5
      %v580 = vmul.f32 %v564, 0.5
      %v581 = vmul.f32 %v565, 0.5
      %v582 = vmul.f32 %v566, 0.5
      %v583 = vmul.f32 %v567, 0.5
      %v584 = vmul.f32 %v568, 0.5
      %v585 = vmul.f32 %v553, 0.70710677
      %v586 = vmul.f32 %v554, 0.70710677
      %v587 = vmul.f32 %v555, 0.70710677
      %v588 = vmul.f32 %v556, 0.70710677
      %v589 = vmul.f32 %v557, 0.70710677
      %v590 = vmul.f32 %v558, 0.70710677
      %v591 = vmul.f32 %v559, 0.70710677
      %v592 = vmul.f32 %v560, 0.70710677
      %v593 = vmul.f32 %v561, 0.70710677
      %v594 = vmul.f32 %v562, 0.70710677
      %v595 = vmul.f32 %v563, 0.70710677
      %v596 = vmul.f32 %v564, 0.70710677
      %v597 = vmul.f32 %v565, 0.70710677
      %v598 = vmul.f32 %v566, 0.70710677
      %v599 = vmul.f32 %v567, 0.70710677
      %v600 = vmul.f32 %v568, 0.70710677
      %v601 = verf.f32.pop %v585
      %v602 = verf.f32.pop %v586
      %v603 = verf.f32.pop %v587
      %v604 = verf.f32.pop %v588
      %v605 = verf.f32.pop %v589
      %v606 = verf.f32.pop %v590
      %v607 = verf.f32.pop %v591
      %v608 = verf.f32.pop %v592
      %v609 = verf.f32.pop %v593
      %v610 = verf.f32.pop %v594
      %v611 = verf.f32.pop %v595
      %v612 = verf.f32.pop %v596
      %v613 = verf.f32.pop %v597
      %v614 = verf.f32.pop %v598
      %v615 = verf.f32.pop %v599
      %v616 = verf.f32.pop %v600
      %v617 = vadd.f32 %v601, 1.0
      %v618 = vadd.f32 %v602, 1.0
      %v619 = vadd.f32 %v603, 1.0
      %v620 = vadd.f32 %v604, 1.0
      %v621 = vadd.f32 %v605, 1.0
      %v622 = vadd.f32 %v606, 1.0
      %v623 = vadd.f32 %v607, 1.0
      %v624 = vadd.f32 %v608, 1.0
      %v625 = vadd.f32 %v609, 1.0
      %v626 = vadd.f32 %v610, 1.0
      %v627 = vadd.f32 %v611, 1.0
      %v628 = vadd.f32 %v612, 1.0
      %v629 = vadd.f32 %v613, 1.0
      %v630 = vadd.f32 %v614, 1.0
      %v631 = vadd.f32 %v615, 1.0
      %v632 = vadd.f32 %v616, 1.0
      %v633 = vmul.f32 %v569, %v617
      %v634 = vmul.f32 %v570, %v618
      %v635 = vmul.f32 %v571, %v619
      %v636 = vmul.f32 %v572, %v620
      %v637 = vmul.f32 %v573, %v621
      %v638 = vmul.f32 %v574, %v622
      %v639 = vmul.f32 %v575, %v623
      %v640 = vmul.f32 %v576, %v624
      %v641 = vmul.f32 %v577, %v625
      %v642 = vmul.f32 %v578, %v626
      %v643 = vmul.f32 %v579, %v627
      %v644 = vmul.f32 %v580, %v628
      %v645 = vmul.f32 %v581, %v629
      %v646 = vmul.f32 %v582, %v630
      %v647 = vmul.f32 %v583, %v631
      %v648 = vmul.f32 %v584, %v632
      %s649 = scalar_lea.vmem [#allocation2], 24
      %vm650 = vcmask 31744
      %651 = vst.msk [vmem:[%s649 + $0x1] sm:$0xff] %vm650, %v633
      %652 = vst.msk [vmem:[%s649 + $0x9] sm:$0xff] %vm650, %v634
      %653 = vst.msk [vmem:[%s649 + $0x19] sm:$0xff] %vm650, %v635
      %654 = vst.msk [vmem:[%s649 + $0x21] sm:$0xff] %vm650, %v636
      %655 = vst.msk [vmem:[%s649 + $0x31] sm:$0xff] %vm650, %v637
      %656 = vst.msk [vmem:[%s649 + $0x39] sm:$0xff] %vm650, %v638
      %657 = vst.msk [vmem:[%s649 + $0x49] sm:$0xff] %vm650, %v639
      %658 = vst.msk [vmem:[%s649 + $0x51] sm:$0xff] %vm650, %v640
      %659 = vst.msk [vmem:[%s649 + $0x61] sm:$0xff] %vm650, %v641
      %660 = vst.msk [vmem:[%s649 + $0x69] sm:$0xff] %vm650, %v642
      %661 = vst.msk [vmem:[%s649 + $0x79] sm:$0xff] %vm650, %v643
      %662 = vst.msk [vmem:[%s649 + $0x81] sm:$0xff] %vm650, %v644
      %663 = vst.msk [vmem:[%s649 + $0x91] sm:$0xff] %vm650, %v645
      %664 = vst.msk [vmem:[%s649 + $0x99] sm:$0xff] %vm650, %v646
      %665 = vst.msk [vmem:[%s649 + $0xa9] sm:$0xff] %vm650, %v647
      %666 = vst.msk [vmem:[%s649 + $0xb1] sm:$0xff] %vm650, %v648
      %p667 = scmp.eq.s32.totalorder %s23, 0
      // Predicated region
      $region49: #{basic_block_forward.5} parent=47 // pred_check
        %p668 = pneg %p667
      $region50: #{basic_block_forward.5} parent=47 // pred_check_branch
        %670 = sbr.rel (%p668) target = $region52
      $region51: #{basic_block_forward.5} parent=47 // pred_region
        %671 = vst.msk [vmem:[#allocation2 + $0x1] sm:$0xff] %vm650, 0.0
        %672 = vst.msk [vmem:[#allocation2 + $0x9] sm:$0xff] %vm650, 0.0
      $region52: #{basic_block_forward.5} parent=47 // pred_fallthru
        _
      %p673 = scmp.gt.s32.totalorder %s23, 0
      // Predicated region
      $region53: #{basic_block_forward.5} parent=47 // pred_check
        %p674 = pneg %p673
      $region54: #{basic_block_forward.5} parent=47 // pred_check_branch
        %676 = sbr.rel (%p674) target = $region56
      $region55: #{basic_block_forward.5} parent=47 // pred_region
        %v677 = vld [vmem:[%s431] sm:$0xff]
        %v678 = vld [vmem:[%s431 + $0x8] sm:$0xff]
        %v679 = vmul.f32 %v677, %v529
        %v680 = vmul.f32 %v678, %v529
        %v681 = vadd.f32 %v679, %v551
        %v682 = vadd.f32 %v680, %v551
        %v683 = vmul.f32 %v681, 0.5
        %v684 = vmul.f32 %v682, 0.5
        %v685 = vmul.f32 %v681, 0.70710677
        %v686 = vmul.f32 %v682, 0.70710677
        %v687 = verf.f32.pop %v685
        %v688 = verf.f32.pop %v686
        %v689 = vadd.f32 %v687, 1.0
        %v690 = vadd.f32 %v688, 1.0
        %v691 = vmul.f32 %v683, %v689
        %v692 = vmul.f32 %v684, %v690
        %693 = vst.msk [vmem:[#allocation2 + $0x1] sm:$0xff] %vm650, %v691
        %694 = vst.msk [vmem:[#allocation2 + $0x9] sm:$0xff] %vm650, %v692
      $region56: #{basic_block_forward.5} parent=47 // pred_fallthru
        _
      %p695 = scmp.eq.s32.totalorder %s23, 1
      // Predicated region
      $region57: #{basic_block_forward.5} parent=47 // pred_check
        %p696 = pneg %p695
      $region58: #{basic_block_forward.5} parent=47 // pred_check_branch
        %698 = sbr.rel (%p696) target = $region60
      $region59: #{basic_block_forward.5} parent=47 // pred_region
        %s699 = scalar_lea.vmem [#allocation2], 216
        %700 = vst.msk [vmem:[%s699 + $0x1] sm:$0xff] %vm650, 0.0
        %701 = vst.msk [vmem:[%s699 + $0x9] sm:$0xff] %vm650, 0.0
      $region60: #{basic_block_forward.5} parent=47 // pred_fallthru
        _
      %p702 = scmp.lt.s32.totalorder %s23, 1
      // Predicated region
      $region61: #{basic_block_forward.5} parent=47 // pred_check
        %p703 = pneg %p702
      $region62: #{basic_block_forward.5} parent=47 // pred_check_branch
        %705 = sbr.rel (%p703) target = $region64
      $region63: #{basic_block_forward.5} parent=47 // pred_region
        %v706 = vld [vmem:[%s459] sm:$0xff]
        %v707 = vld [vmem:[%s459 + $0x8] sm:$0xff]
        %v708 = vmul.f32 %v706, %v529
        %v709 = vmul.f32 %v707, %v529
        %v710 = vadd.f32 %v708, %v551
        %v711 = vadd.f32 %v709, %v551
        %v712 = vmul.f32 %v710, 0.5
        %v713 = vmul.f32 %v711, 0.5
        %v714 = vmul.f32 %v710, 0.70710677
        %v715 = vmul.f32 %v711, 0.70710677
        %v716 = verf.f32.pop %v714
        %v717 = verf.f32.pop %v715
        %v718 = vadd.f32 %v716, 1.0
        %v719 = vadd.f32 %v717, 1.0
        %v720 = vmul.f32 %v712, %v718
        %v721 = vmul.f32 %v713, %v719
        %s722 = scalar_lea.vmem [#allocation2], 216
        %723 = vst.msk [vmem:[%s722 + $0x1] sm:$0xff] %vm650, %v720
        %724 = vst.msk [vmem:[%s722 + $0x9] sm:$0xff] %vm650, %v721
      $region64: #{basic_block_forward.5} parent=47 // pred_fallthru
        _
      %v725 = vld [vmem:[#allocation2] sm:$0xff]
      %v726 = vld [vmem:[#allocation2 + $0x8] sm:$0xff]
      %v727 = vld [vmem:[#allocation2 + $0x18] sm:$0xff]
      %v728 = vld [vmem:[#allocation2 + $0x20] sm:$0xff]
      %v729 = vld [vmem:[#allocation2 + $0x30] sm:$0xff]
      %v730 = vld [vmem:[#allocation2 + $0x38] sm:$0xff]
      %v731 = vld [vmem:[#allocation2 + $0x48] sm:$0xff]
      %v732 = vld [vmem:[#allocation2 + $0x50] sm:$0xff]
      %v733 = vld [vmem:[#allocation2 + $0x60] sm:$0xff]
      %v734 = vld [vmem:[#allocation2 + $0x68] sm:$0xff]
      %v735 = vld [vmem:[#allocation2 + $0x78] sm:$0xff]
      %v736 = vld [vmem:[#allocation2 + $0x80] sm:$0xff]
      %v737 = vld [vmem:[#allocation2 + $0x90] sm:$0xff]
      %v738 = vld [vmem:[#allocation2 + $0x98] sm:$0xff]
      %v739 = vld [vmem:[#allocation2 + $0xa8] sm:$0xff]
      %v740 = vld [vmem:[#allocation2 + $0xb0] sm:$0xff]
      %v741 = vld [vmem:[#allocation2 + $0xc0] sm:$0xff]
      %v742 = vld [vmem:[#allocation2 + $0xc8] sm:$0xff]
      %v743 = vld [vmem:[#allocation2 + $0xd8] sm:$0xff]
      %v744 = vld [vmem:[#allocation2 + $0xe0] sm:$0xff]
      %v745 = vld [vmem:[#allocation2 + $0x1] sm:$0xff]
      %v746 = vld [vmem:[#allocation2 + $0x9] sm:$0xff]
      %v747 = vld [vmem:[#allocation2 + $0x19] sm:$0xff]
      %v748 = vld [vmem:[#allocation2 + $0x21] sm:$0xff]
      %v749 = vld [vmem:[#allocation2 + $0x31] sm:$0xff]
      %v750 = vld [vmem:[#allocation2 + $0x39] sm:$0xff]
      %v751 = vld [vmem:[#allocation2 + $0x49] sm:$0xff]
      %v752 = vld [vmem:[#allocation2 + $0x51] sm:$0xff]
      %v753 = vld [vmem:[#allocation2 + $0x61] sm:$0xff]
      %v754 = vld [vmem:[#allocation2 + $0x69] sm:$0xff]
      %v755 = vld [vmem:[#allocation2 + $0x79] sm:$0xff]
      %v756 = vld [vmem:[#allocation2 + $0x81] sm:$0xff]
      %v757 = vld [vmem:[#allocation2 + $0x91] sm:$0xff]
      %v758 = vld [vmem:[#allocation2 + $0x99] sm:$0xff]
      %v759 = vld [vmem:[#allocation2 + $0xa9] sm:$0xff]
      %v760 = vld [vmem:[#allocation2 + $0xb1] sm:$0xff]
      %v761 = vld [vmem:[#allocation2 + $0xc1] sm:$0xff]
      %v762 = vld [vmem:[#allocation2 + $0xc9] sm:$0xff]
      %v763 = vld [vmem:[#allocation2 + $0xd9] sm:$0xff]
      %v764 = vld [vmem:[#allocation2 + $0xe1] sm:$0xff]
      %v765 = vld [vmem:[#allocation2 + $0x2] sm:$0xff]
      %v766 = vld [vmem:[#allocation2 + $0xa] sm:$0xff]
      %v767 = vld [vmem:[#allocation2 + $0x1a] sm:$0xff]
      %v768 = vld [vmem:[#allocation2 + $0x22] sm:$0xff]
      %v769 = vld [vmem:[#allocation2 + $0x32] sm:$0xff]
      %v770 = vld [vmem:[#allocation2 + $0x3a] sm:$0xff]
      %v771 = vld [vmem:[#allocation2 + $0x4a] sm:$0xff]
      %v772 = vld [vmem:[#allocation2 + $0x52] sm:$0xff]
      %v773 = vld [vmem:[#allocation2 + $0x62] sm:$0xff]
      %v774 = vld [vmem:[#allocation2 + $0x6a] sm:$0xff]
      %v775 = vld [vmem:[#allocation2 + $0x7a] sm:$0xff]
      %v776 = vld [vmem:[#allocation2 + $0x82] sm:$0xff]
      %v777 = vld [vmem:[#allocation2 + $0x92] sm:$0xff]
      %v778 = vld [vmem:[#allocation2 + $0x9a] sm:$0xff]
      %v779 = vld [vmem:[#allocation2 + $0xaa] sm:$0xff]
      %v780 = vld [vmem:[#allocation2 + $0xb2] sm:$0xff]
      %v781 = vld [vmem:[#allocation2 + $0xc2] sm:$0xff]
      %v782 = vld [vmem:[#allocation2 + $0xca] sm:$0xff]
      %v783 = vld [vmem:[#allocation2 + $0xda] sm:$0xff]
      %v784 = vld [vmem:[#allocation2 + $0xe2] sm:$0xff]
      %805 = vrot.lane.b32.xlu0 %v745, 4
      %v806 = vpop.permute.xlu0 %805
      %807 = vrot.lane.b32.xlu0 %v746, 4
      %v808 = vpop.permute.xlu0 %807
      %809 = vrot.lane.b32.xlu0 %v747, 4
      %v810 = vpop.permute.xlu0 %809
      %811 = vrot.lane.b32.xlu0 %v748, 4
      %v812 = vpop.permute.xlu0 %811
      %813 = vrot.lane.b32.xlu0 %v749, 4
      %v814 = vpop.permute.xlu0 %813
      %815 = vrot.lane.b32.xlu0 %v750, 4
      %v816 = vpop.permute.xlu0 %815
      %817 = vrot.lane.b32.xlu0 %v751, 4
      %v818 = vpop.permute.xlu0 %817
      %819 = vrot.lane.b32.xlu0 %v752, 4
      %v820 = vpop.permute.xlu0 %819
      %821 = vrot.lane.b32.xlu0 %v753, 4
      %v822 = vpop.permute.xlu0 %821
      %823 = vrot.lane.b32.xlu0 %v754, 4
      %v824 = vpop.permute.xlu0 %823
      %825 = vrot.lane.b32.xlu0 %v755, 4
      %v826 = vpop.permute.xlu0 %825
      %827 = vrot.lane.b32.xlu0 %v756, 4
      %v828 = vpop.permute.xlu0 %827
      %829 = vrot.lane.b32.xlu0 %v757, 4
      %v830 = vpop.permute.xlu0 %829
      %831 = vrot.lane.b32.xlu0 %v758, 4
      %v832 = vpop.permute.xlu0 %831
      %833 = vrot.lane.b32.xlu0 %v759, 4
      %v834 = vpop.permute.xlu0 %833
      %835 = vrot.lane.b32.xlu0 %v760, 4
      %v836 = vpop.permute.xlu0 %835
      %837 = vrot.lane.b32.xlu0 %v761, 4
      %v838 = vpop.permute.xlu0 %837
      %839 = vrot.lane.b32.xlu0 %v762, 4
      %v840 = vpop.permute.xlu0 %839
      %841 = vrot.lane.b32.xlu0 %v763, 4
      %v842 = vpop.permute.xlu0 %841
      %843 = vrot.lane.b32.xlu0 %v764, 4
      %v844 = vpop.permute.xlu0 %843
      %885 = vrot.lane.b32.xlu0 %v765, 8
      %v886 = vpop.permute.xlu0 %885
      %887 = vrot.lane.b32.xlu0 %v766, 8
      %v888 = vpop.permute.xlu0 %887
      %889 = vrot.lane.b32.xlu0 %v767, 8
      %v890 = vpop.permute.xlu0 %889
      %891 = vrot.lane.b32.xlu0 %v768, 8
      %v892 = vpop.permute.xlu0 %891
      %893 = vrot.lane.b32.xlu0 %v769, 8
      %v894 = vpop.permute.xlu0 %893
      %895 = vrot.lane.b32.xlu0 %v770, 8
      %v896 = vpop.permute.xlu0 %895
      %897 = vrot.lane.b32.xlu0 %v771, 8
      %v898 = vpop.permute.xlu0 %897
      %899 = vrot.lane.b32.xlu0 %v772, 8
      %v900 = vpop.permute.xlu0 %899
      %901 = vrot.lane.b32.xlu0 %v773, 8
      %v902 = vpop.permute.xlu0 %901
      %903 = vrot.lane.b32.xlu0 %v774, 8
      %v904 = vpop.permute.xlu0 %903
      %905 = vrot.lane.b32.xlu0 %v775, 8
      %v906 = vpop.permute.xlu0 %905
      %907 = vrot.lane.b32.xlu0 %v776, 8
      %v908 = vpop.permute.xlu0 %907
      %909 = vrot.lane.b32.xlu0 %v777, 8
      %v910 = vpop.permute.xlu0 %909
      %911 = vrot.lane.b32.xlu0 %v778, 8
      %v912 = vpop.permute.xlu0 %911
      %913 = vrot.lane.b32.xlu0 %v779, 8
      %v914 = vpop.permute.xlu0 %913
      %915 = vrot.lane.b32.xlu0 %v780, 8
      %v916 = vpop.permute.xlu0 %915
      %917 = vrot.lane.b32.xlu0 %v781, 8
      %v918 = vpop.permute.xlu0 %917
      %919 = vrot.lane.b32.xlu0 %v782, 8
      %v920 = vpop.permute.xlu0 %919
      %921 = vrot.lane.b32.xlu0 %v783, 8
      %v922 = vpop.permute.xlu0 %921
      %923 = vrot.lane.b32.xlu0 %v784, 8
      %v924 = vpop.permute.xlu0 %923
      %v945 = vsel %vm650, %v725, %v806
      %v946 = vsel %vm650, %v726, %v808
      %v947 = vsel %vm650, %v727, %v810
      %v948 = vsel %vm650, %v728, %v812
      %v949 = vsel %vm650, %v729, %v814
      %v950 = vsel %vm650, %v730, %v816
      %v951 = vsel %vm650, %v731, %v818
      %v952 = vsel %vm650, %v732, %v820
      %v953 = vsel %vm650, %v733, %v822
      %v954 = vsel %vm650, %v734, %v824
      %v955 = vsel %vm650, %v735, %v826
      %v956 = vsel %vm650, %v736, %v828
      %v957 = vsel %vm650, %v737, %v830
      %v958 = vsel %vm650, %v738, %v832
      %v959 = vsel %vm650, %v739, %v834
      %v960 = vsel %vm650, %v740, %v836
      %v961 = vsel %vm650, %v741, %v838
      %v962 = vsel %vm650, %v742, %v840
      %v963 = vsel %vm650, %v743, %v842
      %v964 = vsel %vm650, %v744, %v844
      %vm965 = vcmask 64512
      %v966 = vsel %vm965, %v945, %v886
      %v967 = vsel %vm965, %v946, %v888
      %v968 = vsel %vm965, %v947, %v890
      %v969 = vsel %vm965, %v948, %v892
      %v970 = vsel %vm965, %v949, %v894
      %v971 = vsel %vm965, %v950, %v896
      %v972 = vsel %vm965, %v951, %v898
      %v973 = vsel %vm965, %v952, %v900
      %v974 = vsel %vm965, %v953, %v902
      %v975 = vsel %vm965, %v954, %v904
      %v976 = vsel %vm965, %v955, %v906
      %v977 = vsel %vm965, %v956, %v908
      %v978 = vsel %vm965, %v957, %v910
      %v979 = vsel %vm965, %v958, %v912
      %v980 = vsel %vm965, %v959, %v914
      %v981 = vsel %vm965, %v960, %v916
      %v982 = vsel %vm965, %v961, %v918
      %v983 = vsel %vm965, %v962, %v920
      %v984 = vsel %vm965, %v963, %v922
      %v985 = vsel %vm965, %v964, %v924
      %v986 = vld [vmem:[%s5] sm:$0xf]
      %s987 = scalar_lea.vmem %s5, 4
      %v988 = vld [vmem:[%s987] sm:$0xf]
      %s989 = scalar_lea.vmem %s5, 8
      %v990 = vld [vmem:[%s989] sm:$0xf]
      %v992 = vrot.slane %v988, 4
      %vm994 = vcmask 1043456
      %v995 = vsel %vm994, %v986, %v992
      %s996 = scalar_lea.vmem %s5, 12
      %v997 = vld [vmem:[%s996] sm:$0xf]
      %s998 = scalar_lea.vmem %s5, 16
      %v999 = vld [vmem:[%s998] sm:$0xf]
      %s1000 = scalar_lea.vmem %s5, 20
      %v1001 = vld [vmem:[%s1000] sm:$0xf]
      %v1003 = vrot.slane %v999, 4
      %v1005 = vsel %vm994, %v997, %v1003
      %vm1006 = vcmask 97280
      %v1008 = vsel %vm1006, %v968, 0
      %v1011 = vsel %vm1006, %v969, 0
      %v1014 = vsel %vm1006, %v970, 0
      %v1017 = vsel %vm1006, %v971, 0
      %v1020 = vsel %vm1006, %v972, 0
      %v1023 = vsel %vm1006, %v973, 0
      %v1026 = vsel %vm1006, %v974, 0
      %v1029 = vsel %vm1006, %v975, 0
      %v1032 = vsel %vm1006, %v976, 0
      %v1035 = vsel %vm1006, %v977, 0
      %v1038 = vsel %vm1006, %v978, 0
      %v1041 = vsel %vm1006, %v979, 0
      %v1044 = vsel %vm1006, %v980, 0
      %v1047 = vsel %vm1006, %v981, 0
      %v1050 = vsel %vm1006, %v982, 0
      %v1053 = vsel %vm1006, %v983, 0
      %v1056 = vsel %vm994, %v1001, 0
      %1058 = vmatprep.subr.mxu0 0.0
      %1059 = vmatpush1.msra.mxu0 0.0
      %1060 = vmatprep.subr.mxu0 0.0
      %1061 = vmatpush1.msra.mxu0 0.0
      %1062 = vmatprep.subr.mxu0 0.0
      %1063 = vmatpush1.msra.mxu0 0.0
      %1064 = vmatprep.subr.mxu0 0.0
      %1065 = vmatpush1.msra.mxu0 0.0
      %1066 = vmatprep.subr.mxu0 0.0
      %1067 = vmatpush1.msra.mxu0 0.0
      %1068 = vmatprep.subr.mxu0 0.0
      %1069 = vmatpush1.msra.mxu0 0.0
      %1070 = vmatprep.subr.mxu0 0.0
      %1071 = vmatpush1.msra.mxu0 0.0
      %1072 = vmatprep.subr.mxu0 0.0
      %1073 = vmatpush1.msra.mxu0 0.0
      %1074 = vmatprep.subr.mxu0 0.0
      %1075 = vmatpush1.msra.mxu0 0.0
      %1076 = vmatprep.subr.mxu0 0.0
      %1077 = vmatpush1.msra.mxu0 0.0
      %1078 = vmatprep.subr.mxu0 0.0
      %1079 = vmatpush1.msra.mxu0 0.0
      %1080 = vmatprep.subr.mxu0 0.0
      %1081 = vmatpush1.msra.mxu0 0.0
      %1082 = vmatprep.subr.mxu0 0.0
      %1083 = vmatpush1.msra.mxu0 0.0
      %1084 = vmatprep.subr.mxu0 0.0
      %1085 = vmatpush1.msra.mxu0 0.0
      %1086 = vmatprep.subr.mxu0 0.0
      %1087 = vmatpush1.msra.mxu0 %v1056
      %1088 = vmatprep.subr.mxu0 0.0
      %1089 = vmatpush1.msra.mxu0 %v1005
      %1090 = vmatprep.subr.mxu0 0.0
      %1091 = vmatpush2.msra.mxu0 0.0
      %1092 = vmatprep.subr.mxu0 0.0
      %1093 = vmatpush2.msra.mxu0 0.0
      %1094 = vmatprep.subr.mxu0 0.0
      %1095 = vmatpush2.msra.mxu0 0.0
      %1096 = vmatprep.subr.mxu0 0.0
      %1097 = vmatpush2.msra.mxu0 0.0
      %1098 = vmatprep.subr.mxu0 0.0
      %1099 = vmatpush2.msra.mxu0 0.0
      %1100 = vmatprep.subr.mxu0 0.0
      %1101 = vmatpush2.msra.mxu0 0.0
      %1102 = vmatprep.subr.mxu0 0.0
      %1103 = vmatpush2.msra.mxu0 0.0
      %1104 = vmatprep.subr.mxu0 0.0
      %1105 = vmatpush2.msra.mxu0 0.0
      %1106 = vmatprep.subr.mxu0 0.0
      %1107 = vmatpush2.msra.mxu0 0.0
      %1108 = vmatprep.subr.mxu0 0.0
      %1109 = vmatpush2.msra.mxu0 0.0
      %1110 = vmatprep.subr.mxu0 0.0
      %1111 = vmatpush2.msra.mxu0 0.0
      %1112 = vmatprep.subr.mxu0 0.0
      %1113 = vmatpush2.msra.mxu0 0.0
      %1114 = vmatprep.subr.mxu0 0.0
      %1115 = vmatpush2.msra.mxu0 0.0
      %1116 = vmatprep.subr.mxu0 0.0
      %1117 = vmatpush2.msra.mxu0 0.0
      %1118 = vmatprep.subr.mxu0 0.0
      %1119 = vmatpush2.msra.mxu0 0.0
      %1120 = vmatprep.subr.mxu0 0.0
      %1121 = vmatpush2.msra.mxu0 0.0
      %1122 = vmatprep.mubr.f32.mxu0 0.0
      %1123 = vmatmul.mubr.f32.gmra.mxu0 %v1008
      %v1124 = vpop.f32.mrf.mxu0
      %v1125 = vadd.f32 0.0, %v1124
      %v1126 = vpop.f32.mrf.mxu0
      %1127 = vmatprep.mubr.f32.mxu0 0.0
      %1128 = vmatmul.mubr.f32.gmra.mxu0 %v1011
      %v1129 = vpop.f32.mrf.mxu0
      %v1130 = vadd.f32 0.0, %v1129
      %v1131 = vpop.f32.mrf.mxu0
      %1132 = vmatprep.mubr.f32.mxu0 0.0
      %1133 = vmatmul.mubr.f32.gmra.mxu0 %v1014
      %v1134 = vpop.f32.mrf.mxu0
      %v1135 = vadd.f32 0.0, %v1134
      %v1136 = vpop.f32.mrf.mxu0
      %1137 = vmatprep.mubr.f32.mxu0 0.0
      %1138 = vmatmul.mubr.f32.gmra.mxu0 %v1017
      %v1139 = vpop.f32.mrf.mxu0
      %v1140 = vadd.f32 0.0, %v1139
      %v1141 = vpop.f32.mrf.mxu0
      %1142 = vmatprep.mubr.f32.mxu0 0.0
      %1143 = vmatmul.mubr.f32.gmra.mxu0 %v1020
      %v1144 = vpop.f32.mrf.mxu0
      %v1145 = vadd.f32 0.0, %v1144
      %v1146 = vpop.f32.mrf.mxu0
      %1147 = vmatprep.mubr.f32.mxu0 0.0
      %1148 = vmatmul.mubr.f32.gmra.mxu0 %v1023
      %v1149 = vpop.f32.mrf.mxu0
      %v1150 = vadd.f32 0.0, %v1149
      %v1151 = vpop.f32.mrf.mxu0
      %1152 = vmatprep.mubr.f32.mxu0 0.0
      %1153 = vmatmul.mubr.f32.gmra.mxu0 %v1026
      %v1154 = vpop.f32.mrf.mxu0
      %v1155 = vadd.f32 0.0, %v1154
      %v1156 = vpop.f32.mrf.mxu0
      %1157 = vmatprep.mubr.f32.mxu0 0.0
      %1158 = vmatmul.mubr.f32.gmra.mxu0 %v1029
      %v1159 = vpop.f32.mrf.mxu0
      %v1160 = vadd.f32 0.0, %v1159
      %v1161 = vpop.f32.mrf.mxu0
      %1162 = vmatprep.mubr.f32.mxu0 0.0
      %1163 = vmatmul.mubr.f32.gmra.mxu0 %v1032
      %v1164 = vpop.f32.mrf.mxu0
      %v1165 = vadd.f32 0.0, %v1164
      %v1166 = vpop.f32.mrf.mxu0
      %1167 = vmatprep.mubr.f32.mxu0 0.0
      %1168 = vmatmul.mubr.f32.gmra.mxu0 %v1035
      %v1169 = vpop.f32.mrf.mxu0
      %v1170 = vadd.f32 0.0, %v1169
      %v1171 = vpop.f32.mrf.mxu0
      %1172 = vmatprep.mubr.f32.mxu0 0.0
      %1173 = vmatmul.mubr.f32.gmra.mxu0 %v1038
      %v1174 = vpop.f32.mrf.mxu0
      %v1175 = vadd.f32 0.0, %v1174
      %v1176 = vpop.f32.mrf.mxu0
      %1177 = vmatprep.mubr.f32.mxu0 0.0
      %1178 = vmatmul.mubr.f32.gmra.mxu0 %v1041
      %v1179 = vpop.f32.mrf.mxu0
      %v1180 = vadd.f32 0.0, %v1179
      %v1181 = vpop.f32.mrf.mxu0
      %1182 = vmatprep.mubr.f32.mxu0 0.0
      %1183 = vmatmul.mubr.f32.gmra.mxu0 %v1044
      %v1184 = vpop.f32.mrf.mxu0
      %v1185 = vadd.f32 0.0, %v1184
      %v1186 = vpop.f32.mrf.mxu0
      %1187 = vmatprep.mubr.f32.mxu0 0.0
      %1188 = vmatmul.mubr.f32.gmra.mxu0 %v1047
      %v1189 = vpop.f32.mrf.mxu0
      %v1190 = vadd.f32 0.0, %v1189
      %v1191 = vpop.f32.mrf.mxu0
      %1192 = vmatprep.mubr.f32.mxu0 0.0
      %1193 = vmatmul.mubr.f32.gmra.mxu0 %v1050
      %v1194 = vpop.f32.mrf.mxu0
      %v1195 = vadd.f32 0.0, %v1194
      %v1196 = vpop.f32.mrf.mxu0
      %1197 = vmatprep.mubr.f32.mxu0 0.0
      %1198 = vmatmul.mubr.f32.gmra.mxu0 %v1053
      %v1199 = vpop.f32.mrf.mxu0
      %v1200 = vadd.f32 0.0, %v1199
      %v1201 = vpop.f32.mrf.mxu0
      %1202 = vdwg.mxu0
      %v1204 = vsel %vm1006, %v966, 0
      %v1207 = vsel %vm1006, %v967, 0
      %v1210 = vsel %vm994, %v990, 0
      %1212 = vmatprep.subr.mxu0 0.0
      %1213 = vmatpush1.msra.mxu0 0.0
      %1214 = vmatprep.subr.mxu0 0.0
      %1215 = vmatpush1.msra.mxu0 0.0
      %1216 = vmatprep.subr.mxu0 0.0
      %1217 = vmatpush1.msra.mxu0 0.0
      %1218 = vmatprep.subr.mxu0 0.0
      %1219 = vmatpush1.msra.mxu0 0.0
      %1220 = vmatprep.subr.mxu0 0.0
      %1221 = vmatpush1.msra.mxu0 0.0
      %1222 = vmatprep.subr.mxu0 0.0
      %1223 = vmatpush1.msra.mxu0 0.0
      %1224 = vmatprep.subr.mxu0 0.0
      %1225 = vmatpush1.msra.mxu0 0.0
      %1226 = vmatprep.subr.mxu0 0.0
      %1227 = vmatpush1.msra.mxu0 0.0
      %1228 = vmatprep.subr.mxu0 0.0
      %1229 = vmatpush1.msra.mxu0 0.0
      %1230 = vmatprep.subr.mxu0 0.0
      %1231 = vmatpush1.msra.mxu0 0.0
      %1232 = vmatprep.subr.mxu0 0.0
      %1233 = vmatpush1.msra.mxu0 0.0
      %1234 = vmatprep.subr.mxu0 0.0
      %1235 = vmatpush1.msra.mxu0 0.0
      %1236 = vmatprep.subr.mxu0 0.0
      %1237 = vmatpush1.msra.mxu0 0.0
      %1238 = vmatprep.subr.mxu0 0.0
      %1239 = vmatpush1.msra.mxu0 0.0
      %1240 = vmatprep.subr.mxu0 0.0
      %1241 = vmatpush1.msra.mxu0 %v1210
      %1242 = vmatprep.subr.mxu0 0.0
      %1243 = vmatpush1.msra.mxu0 %v995
      %1244 = vmatprep.subr.mxu0 0.0
      %1245 = vmatpush2.msra.mxu0 0.0
      %1246 = vmatprep.subr.mxu0 0.0
      %1247 = vmatpush2.msra.mxu0 0.0
      %1248 = vmatprep.subr.mxu0 0.0
      %1249 = vmatpush2.msra.mxu0 0.0
      %1250 = vmatprep.subr.mxu0 0.0
      %1251 = vmatpush2.msra.mxu0 0.0
      %1252 = vmatprep.subr.mxu0 0.0
      %1253 = vmatpush2.msra.mxu0 0.0
      %1254 = vmatprep.subr.mxu0 0.0
      %1255 = vmatpush2.msra.mxu0 0.0
      %1256 = vmatprep.subr.mxu0 0.0
      %1257 = vmatpush2.msra.mxu0 0.0
      %1258 = vmatprep.subr.mxu0 0.0
      %1259 = vmatpush2.msra.mxu0 0.0
      %1260 = vmatprep.subr.mxu0 0.0
      %1261 = vmatpush2.msra.mxu0 0.0
      %1262 = vmatprep.subr.mxu0 0.0
      %1263 = vmatpush2.msra.mxu0 0.0
      %1264 = vmatprep.subr.mxu0 0.0
      %1265 = vmatpush2.msra.mxu0 0.0
      %1266 = vmatprep.subr.mxu0 0.0
      %1267 = vmatpush2.msra.mxu0 0.0
      %1268 = vmatprep.subr.mxu0 0.0
      %1269 = vmatpush2.msra.mxu0 0.0
      %1270 = vmatprep.subr.mxu0 0.0
      %1271 = vmatpush2.msra.mxu0 0.0
      %1272 = vmatprep.subr.mxu0 0.0
      %1273 = vmatpush2.msra.mxu0 0.0
      %1274 = vmatprep.subr.mxu0 0.0
      %1275 = vmatpush2.msra.mxu0 0.0
      %1276 = vmatprep.mubr.f32.mxu0 0.0
      %1277 = vmatmul.mubr.f32.gmra.mxu0 %v1204
      %v1278 = vpop.f32.mrf.mxu0
      %v1279 = vadd.f32 %v1125, %v1278
      %v1280 = vpop.f32.mrf.mxu0
      %1281 = vmatprep.mubr.f32.mxu0 0.0
      %1282 = vmatmul.mubr.f32.gmra.mxu0 %v1207
      %v1283 = vpop.f32.mrf.mxu0
      %v1284 = vadd.f32 %v1130, %v1283
      %v1285 = vpop.f32.mrf.mxu0
      %1286 = vmatprep.mubr.f32.mxu0 0.0
      %1287 = vmatmul.mubr.f32.gmra.mxu0 %v1008
      %v1288 = vpop.f32.mrf.mxu0
      %v1289 = vadd.f32 %v1135, %v1288
      %v1290 = vpop.f32.mrf.mxu0
      %1291 = vmatprep.mubr.f32.mxu0 0.0
      %1292 = vmatmul.mubr.f32.gmra.mxu0 %v1011
      %v1293 = vpop.f32.mrf.mxu0
      %v1294 = vadd.f32 %v1140, %v1293
      %v1295 = vpop.f32.mrf.mxu0
      %1296 = vmatprep.mubr.f32.mxu0 0.0
      %1297 = vmatmul.mubr.f32.gmra.mxu0 %v1014
      %v1298 = vpop.f32.mrf.mxu0
      %v1299 = vadd.f32 %v1145, %v1298
      %v1300 = vpop.f32.mrf.mxu0
      %1301 = vmatprep.mubr.f32.mxu0 0.0
      %1302 = vmatmul.mubr.f32.gmra.mxu0 %v1017
      %v1303 = vpop.f32.mrf.mxu0
      %v1304 = vadd.f32 %v1150, %v1303
      %v1305 = vpop.f32.mrf.mxu0
      %1306 = vmatprep.mubr.f32.mxu0 0.0
      %1307 = vmatmul.mubr.f32.gmra.mxu0 %v1020
      %v1308 = vpop.f32.mrf.mxu0
      %v1309 = vadd.f32 %v1155, %v1308
      %v1310 = vpop.f32.mrf.mxu0
      %1311 = vmatprep.mubr.f32.mxu0 0.0
      %1312 = vmatmul.mubr.f32.gmra.mxu0 %v1023
      %v1313 = vpop.f32.mrf.mxu0
      %v1314 = vadd.f32 %v1160, %v1313
      %v1315 = vpop.f32.mrf.mxu0
      %1316 = vmatprep.mubr.f32.mxu0 0.0
      %1317 = vmatmul.mubr.f32.gmra.mxu0 %v1026
      %v1318 = vpop.f32.mrf.mxu0
      %v1319 = vadd.f32 %v1165, %v1318
      %v1320 = vpop.f32.mrf.mxu0
      %1321 = vmatprep.mubr.f32.mxu0 0.0
      %1322 = vmatmul.mubr.f32.gmra.mxu0 %v1029
      %v1323 = vpop.f32.mrf.mxu0
      %v1324 = vadd.f32 %v1170, %v1323
      %v1325 = vpop.f32.mrf.mxu0
      %1326 = vmatprep.mubr.f32.mxu0 0.0
      %1327 = vmatmul.mubr.f32.gmra.mxu0 %v1032
      %v1328 = vpop.f32.mrf.mxu0
      %v1329 = vadd.f32 %v1175, %v1328
      %v1330 = vpop.f32.mrf.mxu0
      %1331 = vmatprep.mubr.f32.mxu0 0.0
      %1332 = vmatmul.mubr.f32.gmra.mxu0 %v1035
      %v1333 = vpop.f32.mrf.mxu0
      %v1334 = vadd.f32 %v1180, %v1333
      %v1335 = vpop.f32.mrf.mxu0
      %1336 = vmatprep.mubr.f32.mxu0 0.0
      %1337 = vmatmul.mubr.f32.gmra.mxu0 %v1038
      %v1338 = vpop.f32.mrf.mxu0
      %v1339 = vadd.f32 %v1185, %v1338
      %v1340 = vpop.f32.mrf.mxu0
      %1341 = vmatprep.mubr.f32.mxu0 0.0
      %1342 = vmatmul.mubr.f32.gmra.mxu0 %v1041
      %v1343 = vpop.f32.mrf.mxu0
      %v1344 = vadd.f32 %v1190, %v1343
      %v1345 = vpop.f32.mrf.mxu0
      %1346 = vmatprep.mubr.f32.mxu0 0.0
      %1347 = vmatmul.mubr.f32.gmra.mxu0 %v1044
      %v1348 = vpop.f32.mrf.mxu0
      %v1349 = vadd.f32 %v1195, %v1348
      %v1350 = vpop.f32.mrf.mxu0
      %1351 = vmatprep.mubr.f32.mxu0 0.0
      %1352 = vmatmul.mubr.f32.gmra.mxu0 %v1047
      %v1353 = vpop.f32.mrf.mxu0
      %v1354 = vadd.f32 %v1200, %v1353
      %v1355 = vpop.f32.mrf.mxu0
      %1356 = vdwg.mxu0
      %s1357 = scalar_lea.vmem %s5, 24
      %v1358 = vld [vmem:[%s1357] sm:$0xf]
      %s1359 = scalar_lea.vmem %s5, 28
      %v1360 = vld [vmem:[%s1359] sm:$0xf]
      %s1361 = scalar_lea.vmem %s5, 32
      %v1362 = vld [vmem:[%s1361] sm:$0xf]
      %v1364 = vrot.slane %v1360, 4
      %v1366 = vsel %vm994, %v1358, %v1364
      %v1368 = vsel %vm1006, %v984, 0
      %v1371 = vsel %vm1006, %v985, 0
      %v1374 = vsel %vm994, %v1362, 0
      %1376 = vmatprep.subr.mxu0 0.0
      %1377 = vmatpush1.msra.mxu0 0.0
      %1378 = vmatprep.subr.mxu0 0.0
      %1379 = vmatpush1.msra.mxu0 0.0
      %1380 = vmatprep.subr.mxu0 0.0
      %1381 = vmatpush1.msra.mxu0 0.0
      %1382 = vmatprep.subr.mxu0 0.0
      %1383 = vmatpush1.msra.mxu0 0.0
      %1384 = vmatprep.subr.mxu0 0.0
      %1385 = vmatpush1.msra.mxu0 0.0
      %1386 = vmatprep.subr.mxu0 0.0
      %1387 = vmatpush1.msra.mxu0 0.0
      %1388 = vmatprep.subr.mxu0 0.0
      %1389 = vmatpush1.msra.mxu0 0.0
      %1390 = vmatprep.subr.mxu0 0.0
      %1391 = vmatpush1.msra.mxu0 0.0
      %1392 = vmatprep.subr.mxu0 0.0
      %1393 = vmatpush1.msra.mxu0 0.0
      %1394 = vmatprep.subr.mxu0 0.0
      %1395 = vmatpush1.msra.mxu0 0.0
      %1396 = vmatprep.subr.mxu0 0.0
      %1397 = vmatpush1.msra.mxu0 0.0
      %1398 = vmatprep.subr.mxu0 0.0
      %1399 = vmatpush1.msra.mxu0 0.0
      %1400 = vmatprep.subr.mxu0 0.0
      %1401 = vmatpush1.msra.mxu0 0.0
      %1402 = vmatprep.subr.mxu0 0.0
      %1403 = vmatpush1.msra.mxu0 0.0
      %1404 = vmatprep.subr.mxu0 0.0
      %1405 = vmatpush1.msra.mxu0 %v1374
      %1406 = vmatprep.subr.mxu0 0.0
      %1407 = vmatpush1.msra.mxu0 %v1366
      %1408 = vmatprep.subr.mxu0 0.0
      %1409 = vmatpush2.msra.mxu0 0.0
      %1410 = vmatprep.subr.mxu0 0.0
      %1411 = vmatpush2.msra.mxu0 0.0
      %1412 = vmatprep.subr.mxu0 0.0
      %1413 = vmatpush2.msra.mxu0 0.0
      %1414 = vmatprep.subr.mxu0 0.0
      %1415 = vmatpush2.msra.mxu0 0.0
      %1416 = vmatprep.subr.mxu0 0.0
      %1417 = vmatpush2.msra.mxu0 0.0
      %1418 = vmatprep.subr.mxu0 0.0
      %1419 = vmatpush2.msra.mxu0 0.0
      %1420 = vmatprep.subr.mxu0 0.0
      %1421 = vmatpush2.msra.mxu0 0.0
      %1422 = vmatprep.subr.mxu0 0.0
      %1423 = vmatpush2.msra.mxu0 0.0
      %1424 = vmatprep.subr.mxu0 0.0
      %1425 = vmatpush2.msra.mxu0 0.0
      %1426 = vmatprep.subr.mxu0 0.0
      %1427 = vmatpush2.msra.mxu0 0.0
      %1428 = vmatprep.subr.mxu0 0.0
      %1429 = vmatpush2.msra.mxu0 0.0
      %1430 = vmatprep.subr.mxu0 0.0
      %1431 = vmatpush2.msra.mxu0 0.0
      %1432 = vmatprep.subr.mxu0 0.0
      %1433 = vmatpush2.msra.mxu0 0.0
      %1434 = vmatprep.subr.mxu0 0.0
      %1435 = vmatpush2.msra.mxu0 0.0
      %1436 = vmatprep.subr.mxu0 0.0
      %1437 = vmatpush2.msra.mxu0 0.0
      %1438 = vmatprep.subr.mxu0 0.0
      %1439 = vmatpush2.msra.mxu0 0.0
      %1440 = vmatprep.mubr.f32.mxu0 0.0
      %1441 = vmatmul.mubr.f32.gmra.mxu0 %v1014
      %v1442 = vpop.f32.mrf.mxu0
      %v1443 = vadd.f32 0.0, %v1442
      %v1444 = vpop.f32.mrf.mxu0
      %1445 = vmatprep.mubr.f32.mxu0 0.0
      %1446 = vmatmul.mubr.f32.gmra.mxu0 %v1017
      %v1447 = vpop.f32.mrf.mxu0
      %v1448 = vadd.f32 0.0, %v1447
      %v1449 = vpop.f32.mrf.mxu0
      %1450 = vmatprep.mubr.f32.mxu0 0.0
      %1451 = vmatmul.mubr.f32.gmra.mxu0 %v1020
      %v1452 = vpop.f32.mrf.mxu0
      %v1453 = vadd.f32 0.0, %v1452
      %v1454 = vpop.f32.mrf.mxu0
      %1455 = vmatprep.mubr.f32.mxu0 0.0
      %1456 = vmatmul.mubr.f32.gmra.mxu0 %v1023
      %v1457 = vpop.f32.mrf.mxu0
      %v1458 = vadd.f32 0.0, %v1457
      %v1459 = vpop.f32.mrf.mxu0
      %1460 = vmatprep.mubr.f32.mxu0 0.0
      %1461 = vmatmul.mubr.f32.gmra.mxu0 %v1026
      %v1462 = vpop.f32.mrf.mxu0
      %v1463 = vadd.f32 0.0, %v1462
      %v1464 = vpop.f32.mrf.mxu0
      %1465 = vmatprep.mubr.f32.mxu0 0.0
      %1466 = vmatmul.mubr.f32.gmra.mxu0 %v1029
      %v1467 = vpop.f32.mrf.mxu0
      %v1468 = vadd.f32 0.0, %v1467
      %v1469 = vpop.f32.mrf.mxu0
      %1470 = vmatprep.mubr.f32.mxu0 0.0
      %1471 = vmatmul.mubr.f32.gmra.mxu0 %v1032
      %v1472 = vpop.f32.mrf.mxu0
      %v1473 = vadd.f32 0.0, %v1472
      %v1474 = vpop.f32.mrf.mxu0
      %1475 = vmatprep.mubr.f32.mxu0 0.0
      %1476 = vmatmul.mubr.f32.gmra.mxu0 %v1035
      %v1477 = vpop.f32.mrf.mxu0
      %v1478 = vadd.f32 0.0, %v1477
      %v1479 = vpop.f32.mrf.mxu0
      %1480 = vmatprep.mubr.f32.mxu0 0.0
      %1481 = vmatmul.mubr.f32.gmra.mxu0 %v1038
      %v1482 = vpop.f32.mrf.mxu0
      %v1483 = vadd.f32 0.0, %v1482
      %v1484 = vpop.f32.mrf.mxu0
      %1485 = vmatprep.mubr.f32.mxu0 0.0
      %1486 = vmatmul.mubr.f32.gmra.mxu0 %v1041
      %v1487 = vpop.f32.mrf.mxu0
      %v1488 = vadd.f32 0.0, %v1487
      %v1489 = vpop.f32.mrf.mxu0
      %1490 = vmatprep.mubr.f32.mxu0 0.0
      %1491 = vmatmul.mubr.f32.gmra.mxu0 %v1044
      %v1492 = vpop.f32.mrf.mxu0
      %v1493 = vadd.f32 0.0, %v1492
      %v1494 = vpop.f32.mrf.mxu0
      %1495 = vmatprep.mubr.f32.mxu0 0.0
      %1496 = vmatmul.mubr.f32.gmra.mxu0 %v1047
      %v1497 = vpop.f32.mrf.mxu0
      %v1498 = vadd.f32 0.0, %v1497
      %v1499 = vpop.f32.mrf.mxu0
      %1500 = vmatprep.mubr.f32.mxu0 0.0
      %1501 = vmatmul.mubr.f32.gmra.mxu0 %v1050
      %v1502 = vpop.f32.mrf.mxu0
      %v1503 = vadd.f32 0.0, %v1502
      %v1504 = vpop.f32.mrf.mxu0
      %1505 = vmatprep.mubr.f32.mxu0 0.0
      %1506 = vmatmul.mubr.f32.gmra.mxu0 %v1053
      %v1507 = vpop.f32.mrf.mxu0
      %v1508 = vadd.f32 0.0, %v1507
      %v1509 = vpop.f32.mrf.mxu0
      %1510 = vmatprep.mubr.f32.mxu0 0.0
      %1511 = vmatmul.mubr.f32.gmra.mxu0 %v1368
      %v1512 = vpop.f32.mrf.mxu0
      %v1513 = vadd.f32 0.0, %v1512
      %v1514 = vpop.f32.mrf.mxu0
      %1515 = vmatprep.mubr.f32.mxu0 0.0
      %1516 = vmatmul.mubr.f32.gmra.mxu0 %v1371
      %v1517 = vpop.f32.mrf.mxu0
      %v1518 = vadd.f32 0.0, %v1517
      %v1519 = vpop.f32.mrf.mxu0
      %1520 = vdwg.mxu0
      %v1521 = vadd.f32 %v1279, %v1443
      %v1522 = vadd.f32 %v1284, %v1448
      %v1523 = vadd.f32 %v1289, %v1453
      %v1524 = vadd.f32 %v1294, %v1458
      %v1525 = vadd.f32 %v1299, %v1463
      %v1526 = vadd.f32 %v1304, %v1468
      %v1527 = vadd.f32 %v1309, %v1473
      %v1528 = vadd.f32 %v1314, %v1478
      %v1529 = vadd.f32 %v1319, %v1483
      %v1530 = vadd.f32 %v1324, %v1488
      %v1531 = vadd.f32 %v1329, %v1493
      %v1532 = vadd.f32 %v1334, %v1498
      %v1533 = vadd.f32 %v1339, %v1503
      %v1534 = vadd.f32 %v1344, %v1508
      %v1535 = vadd.f32 %v1349, %v1513
      %v1536 = vadd.f32 %v1354, %v1518
      %v1537 = vld [vmem:[%s473] sm:$0xff]
      %v1538 = vld [vmem:[%s473 + $0x8] sm:$0xff]
      %v1539 = vld [vmem:[%s473 + $0x10] sm:$0xff]
      %v1540 = vld [vmem:[%s473 + $0x18] sm:$0xff]
      %v1541 = vld [vmem:[%s473 + $0x20] sm:$0xff]
      %v1542 = vld [vmem:[%s473 + $0x28] sm:$0xff]
      %v1543 = vld [vmem:[%s473 + $0x30] sm:$0xff]
      %v1544 = vld [vmem:[%s473 + $0x38] sm:$0xff]
      %v1545 = vld [vmem:[%s473 + $0x40] sm:$0xff]
      %v1546 = vld [vmem:[%s473 + $0x48] sm:$0xff]
      %v1547 = vld [vmem:[%s473 + $0x50] sm:$0xff]
      %v1548 = vld [vmem:[%s473 + $0x58] sm:$0xff]
      %v1549 = vld [vmem:[%s473 + $0x60] sm:$0xff]
      %v1550 = vld [vmem:[%s473 + $0x68] sm:$0xff]
      %v1551 = vld [vmem:[%s473 + $0x70] sm:$0xff]
      %v1552 = vld [vmem:[%s473 + $0x78] sm:$0xff]
      %v1553 = vadd.f32 %v1521, %v1537
      %v1554 = vadd.f32 %v1522, %v1538
      %v1555 = vadd.f32 %v1523, %v1539
      %v1556 = vadd.f32 %v1524, %v1540
      %v1557 = vadd.f32 %v1525, %v1541
      %v1558 = vadd.f32 %v1526, %v1542
      %v1559 = vadd.f32 %v1527, %v1543
      %v1560 = vadd.f32 %v1528, %v1544
      %v1561 = vadd.f32 %v1529, %v1545
      %v1562 = vadd.f32 %v1530, %v1546
      %v1563 = vadd.f32 %v1531, %v1547
      %v1564 = vadd.f32 %v1532, %v1548
      %v1565 = vadd.f32 %v1533, %v1549
      %v1566 = vadd.f32 %v1534, %v1550
      %v1567 = vadd.f32 %v1535, %v1551
      %v1568 = vadd.f32 %v1536, %v1552
      %1569 = vst.msk [vmem:[%s484] sm:$0xff] %vm650, %v1553
      %1570 = vst.msk [vmem:[%s484 + $0x8] sm:$0xff] %vm650, %v1554
      %1571 = vst.msk [vmem:[%s484 + $0x10] sm:$0xff] %vm650, %v1555
      %1572 = vst.msk [vmem:[%s484 + $0x18] sm:$0xff] %vm650, %v1556
      %1573 = vst.msk [vmem:[%s484 + $0x20] sm:$0xff] %vm650, %v1557
      %1574 = vst.msk [vmem:[%s484 + $0x28] sm:$0xff] %vm650, %v1558
      %1575 = vst.msk [vmem:[%s484 + $0x30] sm:$0xff] %vm650, %v1559
      %1576 = vst.msk [vmem:[%s484 + $0x38] sm:$0xff] %vm650, %v1560
      %1577 = vst.msk [vmem:[%s484 + $0x40] sm:$0xff] %vm650, %v1561
      %1578 = vst.msk [vmem:[%s484 + $0x48] sm:$0xff] %vm650, %v1562
      %1579 = vst.msk [vmem:[%s484 + $0x50] sm:$0xff] %vm650, %v1563
      %1580 = vst.msk [vmem:[%s484 + $0x58] sm:$0xff] %vm650, %v1564
      %1581 = vst.msk [vmem:[%s484 + $0x60] sm:$0xff] %vm650, %v1565
      %1582 = vst.msk [vmem:[%s484 + $0x68] sm:$0xff] %vm650, %v1566
      %1583 = vst.msk [vmem:[%s484 + $0x70] sm:$0xff] %vm650, %v1567
      %1584 = vst.msk [vmem:[%s484 + $0x78] sm:$0xff] %vm650, %v1568
      %s1585 = smul.u32 8, %s23
      %p1586 = scmp.lt.s32.totalorder %s22, 1
      %s1587 = scalar_select %p1586, %s22, 1
      %p1588 = scmp.lt.s32.totalorder %s1585, 15
      %s1589 = scalar_select %p1588, %s1585, 15
      %s1590 = smul.addr %s1589, 2
      %s1591 = smul.addr %s1587, 32
      %s1592 = sadd.s32 %s1590, %s1591
      %s1593 = smul.addr %s1592, 8
      %s1594 = scalar_lea.vmem %s7, %s1593
      // Predicated region
      $region65: #{basic_block_forward.5} parent=47 // pred_check
        %p1595 = pneg %p241
      $region66: #{basic_block_forward.5} parent=47 // pred_check_branch
        %1597 = sbr.rel (%p1595) target = $region68
      $region67: #{basic_block_forward.5} parent=47 // pred_region
        %s1598 = smul.u32 8, %s23
      $region68: #{basic_block_forward.5} parent=47 // pred_fallthru
        _
    $region48: #{basic_block_forward.5} parent=5 // pred_fallthru
      _
    %p1599 = scmp.le.s32.totalorder 2, %s13
    // Predicated region
    $region69: #{basic_block_forward.5} parent=5 // pred_check
      %p1600 = pneg %p1599
    $region70: #{basic_block_forward.5} parent=5 // pred_check_branch
      %1602 = sbr.rel (%p1600) target = $region72
    $region71: #{basic_block_forward.5} parent=5 // pred_region
      %s1603 = ssub.s32 %s13, 2
      // Predicated region
      $region73: #{basic_block_forward.5} parent=71 // pred_check
        %p1604 = pneg %p247
      $region74: #{basic_block_forward.5} parent=71 // pred_check_branch
        %1606 = sbr.rel (%p1604) target = $region76
      $region75: #{basic_block_forward.5} parent=71 // pred_region
        %s1607 = smul.u32 8, %s25
        %p1608 = scmp.lt.s32.totalorder %s24, 1
        %s1609 = scalar_select %p1608, %s24, 1
        %p1610 = scmp.lt.s32.totalorder %s1607, 15
        %s1611 = scalar_select %p1610, %s1607, 15
        %s1612 = smul.addr %s1611, 2
        %s1613 = smul.addr %s1609, 32
        %s1614 = sadd.s32 %s1612, %s1613
        %s1615 = smul.addr %s1614, 8
        %s1616 = scalar_lea.vmem %s7, %s1615
      $region76: #{basic_block_forward.5} parent=71 // pred_fallthru
        _
    $region72: #{basic_block_forward.5} parent=5 // pred_fallthru
      _
  $region6: #{basic_block_forward.5} parent=0 // loop_footer
    %s17 = sadd.s32 1, %s13
  $region7: #{basic_block_forward.5} parent=0 // loop_footer_branch
    %12 = sbr.rel target = $region3
  $region8: #{basic_block_forward.5} parent=0 // loop_exit
    _

</llo_original>
